<compile_context>
chip_gen: v7x
topology: tpu7x:2x2x1
jax: 0.10.0
libtpu: 0.0.40
codegen_flags: <defaults>
</compile_context>

<pallas_src>
import jax
import jax.numpy as jnp
from jax import lax
from jax.experimental import pallas as pl
from jax.experimental.pallas import tpu as pltpu
import numpy as np

# Set to jnp.bfloat16 for 2x MXU throughput / half the weight bytes on v6e/v7x at
# realistic sizes (elementwise gate math stays f32 either way, so it is v5e-safe).
# Kept float32 here so the small-shape test matches the f32 reference to 1e-4.
MXU_DTYPE = jnp.float32

_NEG_MASK = -1e30   # bias for padded vocab columns -> exp() underflows to exactly 0


def _round_up(x, m):
    return (x + m - 1) // m * m


def lstm_kernel(embeds_ref, wih_ref, whh_ref, b_ref, wlin_ref, blin_ref,
                out_ref, gx_scratch, h_scratch):
    Sp = embeds_ref.shape[0]         # padded seq length (multiple of 8)
    Hp = whh_ref.shape[0]            # padded hidden dim (multiple of 128)

    # ---- Hoisted input projection: one batched matmul covering all timesteps. ----
    gx_scratch[...] = (
        jnp.dot(embeds_ref[...].astype(MXU_DTYPE), wih_ref[...],
                preferred_element_type=jnp.float32)
        + b_ref[...])                                   # (Sp, 4Hp)

    h = jnp.zeros((1, Hp), jnp.float32)
    c = jnp.zeros((1, Hp), jnp.float32)

    # ---- Serial recurrence, fully unrolled with static step indices. ----
    # Padded timesteps (if any) run on zero embeddings; their outputs are sliced off
    # in the wrapper and never feed back into valid rows (time flows forward).
    for t in range(Sp):
        gates = (jnp.dot(h.astype(MXU_DTYPE), whh_ref[...],
                         preferred_element_type=jnp.float32)
                 + gx_scratch[pl.ds(t, 1), :])          # (1, 4Hp)
        # Each gate occupies its own full 128-lane group (Hp = 128k).
        i_g = jax.nn.sigmoid(gates[:, 0:Hp])
        f_g = jax.nn.sigmoid(gates[:, Hp:2 * Hp])
        g_g = jnp.tanh(gates[:, 2 * Hp:3 * Hp])
        o_g = jax.nn.sigmoid(gates[:, 3 * Hp:4 * Hp])
        c = f_g * c + i_g * g_g
        h = o_g * jnp.tanh(c)
        h_scratch[pl.ds(t, 1), :] = h                   # lstm_out row t (unmasked store)

    # ---- Vocab projection + log_softmax (lane-dense: Vp multiple of 128). ----
    logits = (jnp.dot(h_scratch[...].astype(MXU_DTYPE), wlin_ref[...],
                      preferred_element_type=jnp.float32)
              + blin_ref[...])                          # (Sp, Vp); padded cols ~ -1e30
    m = jnp.max(logits, axis=-1, keepdims=True)
    lse = m + jnp.log(jnp.sum(jnp.exp(logits - m), axis=-1, keepdims=True))
    out_ref[...] = logits - lse


def lstm_forward(tokens, emb_table, w_ih, w_hh, b_ih, b_hh, w_lin, b_lin):
    """tokens: (seq,) int32. Returns (seq, vocab) log-probs (float32)."""
    seq = tokens.shape[0]
    E = emb_table.shape[1]
    H = w_hh.shape[1]
    V = w_lin.shape[0]
    Sp = _round_up(seq, 8)
    Ep = _round_up(E, 128)
    Hp = _round_up(H, 128)
    Vp = _round_up(V, 128)
    f32 = jnp.float32

    # Glue: embedding gather (data-dependent lookup) + weight re-layout in plain JAX.
    embeds = emb_table[tokens].astype(f32)                        # (seq, E)
    embeds_p = jnp.zeros((Sp, Ep), f32).at[:seq, :E].set(embeds)  # (Sp, Ep)

    def pad_gates(w, din, dinp):
        # (4H, din) PyTorch layout -> (dinp, 4Hp) transposed, each gate zero-padded.
        w4 = w.reshape(4, H, din).astype(f32)
        w4p = jnp.zeros((4, Hp, dinp), f32).at[:, :H, :din].set(w4)
        return w4p.reshape(4 * Hp, dinp).T                        # (dinp, 4Hp)

    wih_t = pad_gates(w_ih, E, Ep)                                # (Ep, 4Hp)
    whh_t = pad_gates(w_hh, H, Hp)                                # (Hp, 4Hp)

    b4 = (b_ih + b_hh).reshape(4, H).astype(f32)
    bias = jnp.zeros((4, Hp), f32).at[:, :H].set(b4).reshape(1, 4 * Hp)

    wlin_t = jnp.zeros((Hp, Vp), f32).at[:H, :V].set(w_lin.T.astype(f32))   # (Hp, Vp)
    blin = jnp.full((1, Vp), _NEG_MASK, f32).at[0, :V].set(b_lin.astype(f32))

    embeds_p = embeds_p.astype(MXU_DTYPE)
    wih_t = wih_t.astype(MXU_DTYPE)
    whh_t = whh_t.astype(MXU_DTYPE)
    wlin_t = wlin_t.astype(MXU_DTYPE)

    out_padded = pl.pallas_call(
        lstm_kernel,
        out_shape=jax.ShapeDtypeStruct((Sp, Vp), jnp.float32),
        grid=(1,),
        in_specs=[
            pl.BlockSpec((Sp, Ep), lambda i: (0, 0)),
            pl.BlockSpec((Ep, 4 * Hp), lambda i: (0, 0)),
            pl.BlockSpec((Hp, 4 * Hp), lambda i: (0, 0)),
            pl.BlockSpec((1, 4 * Hp), lambda i: (0, 0)),
            pl.BlockSpec((Hp, Vp), lambda i: (0, 0)),
            pl.BlockSpec((1, Vp), lambda i: (0, 0)),
        ],
        out_specs=pl.BlockSpec((Sp, Vp), lambda i: (0, 0)),
        scratch_shapes=[
            pltpu.VMEM((Sp, 4 * Hp), jnp.float32),   # hoisted input-gate projections
            pltpu.VMEM((Sp, Hp), jnp.float32),       # lstm_out (hidden states)
        ],
        compiler_params=pltpu.CompilerParams(
            dimension_semantics=("arbitrary",)),
    )(embeds_p, wih_t, whh_t, bias, wlin_t, blin)

    # TODO(synk): at LM-scale vocab / long seq, tile the vocab projection over a
    # (seq_tile, V_tile) grid marked "parallel" (2 TCs + 64 MiB VMEM on v7x), chunk the
    # recurrence over a seq grid axis, and switch the static unroll to lax.fori_loop
    # so BlockSpec pipelining hides the HBM traffic and trace size stays bounded.
    return out_padded[:seq, :V]


def lstm_forward_ref(tokens, emb_table, w_ih, w_hh, b_ih, b_hh, w_lin, b_lin):
    """Pure-JAX reference matching torch.nn.LSTM semantics (batch=1)."""
    embeds = emb_table[tokens]
    H = w_hh.shape[1]

    def step(carry, x_t):
        h, c = carry
        gates = x_t @ w_ih.T + b_ih + h @ w_hh.T + b_hh
        i = jax.nn.sigmoid(gates[0:H])
        f = jax.nn.sigmoid(gates[H:2 * H])
        g = jnp.tanh(gates[2 * H:3 * H])
        o = jax.nn.sigmoid(gates[3 * H:4 * H])
        c = f * c + i * g
        h = o * jnp.tanh(c)
        return (h, c), h

    (_, _), hs = lax.scan(step, (jnp.zeros(H), jnp.zeros(H)), embeds)
    logits = hs @ w_lin.T + b_lin
    return jax.nn.log_softmax(logits, axis=1)


if __name__ == "__main__":
    seq_len = 8
    embedding_dim = 16
    hidden_dim = 32
    vocab_size = 64

    key = jax.random.PRNGKey(0)
    ks = jax.random.split(key, 8)
    scale = 1.0 / np.sqrt(hidden_dim)

    emb_table = jax.random.normal(ks[0], (vocab_size, embedding_dim), jnp.float32) * 0.1
    w_ih = jax.random.uniform(ks[1], (4 * hidden_dim, embedding_dim), jnp.float32,
                              -scale, scale)
    w_hh = jax.random.uniform(ks[2], (4 * hidden_dim, hidden_dim), jnp.float32,
                              -scale, scale)
    b_ih = jax.random.uniform(ks[3], (4 * hidden_dim,), jnp.float32, -scale, scale)
    b_hh = jax.random.uniform(ks[4], (4 * hidden_dim,), jnp.float32, -scale, scale)
    w_lin = jax.random.uniform(ks[5], (vocab_size, hidden_dim), jnp.float32,
                               -scale, scale)
    b_lin = jax.random.uniform(ks[6], (vocab_size,), jnp.float32, -scale, scale)

    tokens = jax.random.randint(ks[7], (seq_len,), 0, vocab_size, jnp.int32)

    out = lstm_forward(tokens, emb_table, w_ih, w_hh, b_ih, b_hh, w_lin, b_lin)
    out = jax.block_until_ready(out)

    ref = lstm_forward_ref(tokens, emb_table, w_ih, w_hh, b_ih, b_hh, w_lin, b_lin)
    assert out.shape == (seq_len, vocab_size)
    assert np.allclose(np.asarray(out), np.asarray(ref), rtol=1e-4, atol=1e-4), (
        "Pallas output does not match JAX reference")

    print("KERNEL_OK")
</pallas_src>

<mosaic_0001>
module attributes {stable_mosaic.version = 11 : i64} {
  func.func @lstm_kernel(%arg0: i32, %arg1: memref<8x128xf32, #tpu.memory_space<vmem>>, %arg2: memref<128x512xf32, #tpu.memory_space<vmem>>, %arg3: memref<128x512xf32, #tpu.memory_space<vmem>>, %arg4: memref<1x512xf32, #tpu.memory_space<vmem>>, %arg5: memref<128x128xf32, #tpu.memory_space<vmem>>, %arg6: memref<1x128xf32, #tpu.memory_space<vmem>>, %arg7: memref<8x128xf32, #tpu.memory_space<vmem>>, %arg8: memref<8x512xf32, #tpu.memory_space<vmem>>, %arg9: memref<8x128xf32, #tpu.memory_space<vmem>>) attributes {dimension_semantics = [#tpu.dimension_semantics<arbitrary>], iteration_bounds = array<i64: 1>, scalar_prefetch = 0 : i64, scratch_operands = 2 : i64, tpu.core_type = #tpu.core_type<tc>, window_params = [{pipeline_mode = #tpu.pipeline_mode<synchronous>, transform_indices = @transform_0, window_bounds = array<i64: 8, 128>}, {pipeline_mode = #tpu.pipeline_mode<synchronous>, transform_indices = @transform_1, window_bounds = array<i64: 128, 512>}, {pipeline_mode = #tpu.pipeline_mode<synchronous>, transform_indices = @transform_2, window_bounds = array<i64: 128, 512>}, {pipeline_mode = #tpu.pipeline_mode<synchronous>, transform_indices = @transform_3, window_bounds = array<i64: 1, 512>}, {pipeline_mode = #tpu.pipeline_mode<synchronous>, transform_indices = @transform_4, window_bounds = array<i64: 128, 128>}, {pipeline_mode = #tpu.pipeline_mode<synchronous>, transform_indices = @transform_5, window_bounds = array<i64: 1, 128>}, {pipeline_mode = #tpu.pipeline_mode<synchronous>, transform_indices = @transform_6, window_bounds = array<i64: 8, 128>}]} {
    %c0 = arith.constant 0 : index
    %c0_0 = arith.constant 0 : index
    %0 = vector.load %arg1[%c0, %c0_0] : memref<8x128xf32, #tpu.memory_space<vmem>>, vector<8x128xf32>
    %c0_1 = arith.constant 0 : index
    %c0_2 = arith.constant 0 : index
    %1 = vector.load %arg2[%c0_1, %c0_2] : memref<128x512xf32, #tpu.memory_space<vmem>>, vector<128x512xf32>
    %cst = arith.constant dense<0.000000e+00> : vector<8x512xf32>
    %2 = tpu.matmul %0, %1, %cst {dimension_numbers = #tpu.dot_dimension_numbers<[1], [0], [0], [1], [0, 0, 1, 1], [], []>} : vector<8x128xf32>, vector<128x512xf32>, vector<8x512xf32> -> vector<8x512xf32>
    %c0_3 = arith.constant 0 : index
    %c0_4 = arith.constant 0 : index
    %3 = vector.load %arg4[%c0_3, %c0_4] : memref<1x512xf32, #tpu.memory_space<vmem>>, vector<1x512xf32>
    %4 = vector.broadcast %3 : vector<1x512xf32> to vector<8x512xf32>
    %5 = arith.addf %2, %4 : vector<8x512xf32>
    %c0_5 = arith.constant 0 : index
    %c0_6 = arith.constant 0 : index
    %6 = vector.load %arg8[%c0_5, %c0_6] : memref<8x512xf32, #tpu.memory_space<vmem>>, vector<8x512xf32>
    tpu.vector_store %arg8[%c0_5, %c0_6], %5 {strides = array<i32>} : memref<8x512xf32, #tpu.memory_space<vmem>>, vector<8x512xf32>,
    %cst_7 = arith.constant 0.000000e+00 : f32
    %7 = vector.broadcast %cst_7 : f32 to vector<1x128xf32>
    %cst_8 = arith.constant 0.000000e+00 : f32
    %8 = vector.broadcast %cst_8 : f32 to vector<1x128xf32>
    %c0_9 = arith.constant 0 : index
    %c0_10 = arith.constant 0 : index
    %9 = vector.load %arg3[%c0_9, %c0_10] : memref<128x512xf32, #tpu.memory_space<vmem>>, vector<128x512xf32>
    %cst_11 = arith.constant dense<0.000000e+00> : vector<1x512xf32>
    %10 = tpu.matmul %7, %9, %cst_11 {dimension_numbers = #tpu.dot_dimension_numbers<[1], [0], [0], [1], [0, 0, 1, 1], [], []>} : vector<1x128xf32>, vector<128x512xf32>, vector<1x512xf32> -> vector<1x512xf32>
    %c0_12 = arith.constant 0 : index
    %c0_13 = arith.constant 0 : index
    %11 = vector.load %arg8[%c0_12, %c0_13] : memref<8x512xf32, #tpu.memory_space<vmem>>, vector<1x512xf32>
    %12 = arith.addf %10, %11 : vector<1x512xf32>
    %13 = vector.extract_strided_slice %12 {offsets = [0, 0], sizes = [1, 128], strides = [1, 1]} : vector<1x512xf32> to vector<1x128xf32>
    %14 = arith.negf %13 : vector<1x128xf32>
    %15 = math.exp %14 : vector<1x128xf32>
    %cst_14 = arith.constant 1.000000e+00 : f32
    %16 = vector.broadcast %cst_14 : f32 to vector<1x128xf32>
    %17 = arith.addf %16, %15 : vector<1x128xf32>
    %18 = arith.divf %16, %17 : vector<1x128xf32>
    %19 = vector.extract_strided_slice %12 {offsets = [0, 128], sizes = [1, 128], strides = [1, 1]} : vector<1x512xf32> to vector<1x128xf32>
    %20 = arith.negf %19 : vector<1x128xf32>
    %21 = math.exp %20 : vector<1x128xf32>
    %cst_15 = arith.constant 1.000000e+00 : f32
    %22 = vector.broadcast %cst_15 : f32 to vector<1x128xf32>
    %23 = arith.addf %22, %21 : vector<1x128xf32>
    %24 = arith.divf %22, %23 : vector<1x128xf32>
    %25 = vector.extract_strided_slice %12 {offsets = [0, 256], sizes = [1, 128], strides = [1, 1]} : vector<1x512xf32> to vector<1x128xf32>
    %26 = math.tanh %25 : vector<1x128xf32>
    %27 = vector.extract_strided_slice %12 {offsets = [0, 384], sizes = [1, 128], strides = [1, 1]} : vector<1x512xf32> to vector<1x128xf32>
    %28 = arith.negf %27 : vector<1x128xf32>
    %29 = math.exp %28 : vector<1x128xf32>
    %cst_16 = arith.constant 1.000000e+00 : f32
    %30 = vector.broadcast %cst_16 : f32 to vector<1x128xf32>
    %31 = arith.addf %30, %29 : vector<1x128xf32>
    %32 = arith.divf %30, %31 : vector<1x128xf32>
    %33 = arith.mulf %24, %8 : vector<1x128xf32>
    %34 = arith.mulf %18, %26 : vector<1x128xf32>
    %35 = arith.addf %33, %34 : vector<1x128xf32>
    %36 = math.tanh %35 : vector<1x128xf32>
    %37 = arith.mulf %32, %36 : vector<1x128xf32>
    %c0_17 = arith.constant 0 : index
    %c0_18 = arith.constant 0 : index
    %38 = vector.load %arg9[%c0_17, %c0_18] : memref<8x128xf32, #tpu.memory_space<vmem>>, vector<1x128xf32>
    tpu.vector_store %arg9[%c0_17, %c0_18], %37 {strides = array<i32>} : memref<8x128xf32, #tpu.memory_space<vmem>>, vector<1x128xf32>,
    %c0_19 = arith.constant 0 : index
    %c0_20 = arith.constant 0 : index
    %39 = vector.load %arg3[%c0_19, %c0_20] : memref<128x512xf32, #tpu.memory_space<vmem>>, vector<128x512xf32>
    %cst_21 = arith.constant dense<0.000000e+00> : vector<1x512xf32>
    %40 = tpu.matmul %37, %39, %cst_21 {dimension_numbers = #tpu.dot_dimension_numbers<[1], [0], [0], [1], [0, 0, 1, 1], [], []>} : vector<1x128xf32>, vector<128x512xf32>, vector<1x512xf32> -> vector<1x512xf32>
    %c1 = arith.constant 1 : index
    %c0_22 = arith.constant 0 : index
    %41 = vector.load %arg8[%c1, %c0_22] : memref<8x512xf32, #tpu.memory_space<vmem>>, vector<1x512xf32>
    %42 = arith.addf %40, %41 : vector<1x512xf32>
    %43 = vector.extract_strided_slice %42 {offsets = [0, 0], sizes = [1, 128], strides = [1, 1]} : vector<1x512xf32> to vector<1x128xf32>
    %44 = arith.negf %43 : vector<1x128xf32>
    %45 = math.exp %44 : vector<1x128xf32>
    %cst_23 = arith.constant 1.000000e+00 : f32
    %46 = vector.broadcast %cst_23 : f32 to vector<1x128xf32>
    %47 = arith.addf %46, %45 : vector<1x128xf32>
    %48 = arith.divf %46, %47 : vector<1x128xf32>
    %49 = vector.extract_strided_slice %42 {offsets = [0, 128], sizes = [1, 128], strides = [1, 1]} : vector<1x512xf32> to vector<1x128xf32>
    %50 = arith.negf %49 : vector<1x128xf32>
    %51 = math.exp %50 : vector<1x128xf32>
    %cst_24 = arith.constant 1.000000e+00 : f32
    %52 = vector.broadcast %cst_24 : f32 to vector<1x128xf32>
    %53 = arith.addf %52, %51 : vector<1x128xf32>
    %54 = arith.divf %52, %53 : vector<1x128xf32>
    %55 = vector.extract_strided_slice %42 {offsets = [0, 256], sizes = [1, 128], strides = [1, 1]} : vector<1x512xf32> to vector<1x128xf32>
    %56 = math.tanh %55 : vector<1x128xf32>
    %57 = vector.extract_strided_slice %42 {offsets = [0, 384], sizes = [1, 128], strides = [1, 1]} : vector<1x512xf32> to vector<1x128xf32>
    %58 = arith.negf %57 : vector<1x128xf32>
    %59 = math.exp %58 : vector<1x128xf32>
    %cst_25 = arith.constant 1.000000e+00 : f32
    %60 = vector.broadcast %cst_25 : f32 to vector<1x128xf32>
    %61 = arith.addf %60, %59 : vector<1x128xf32>
    %62 = arith.divf %60, %61 : vector<1x128xf32>
    %63 = arith.mulf %54, %35 : vector<1x128xf32>
    %64 = arith.mulf %48, %56 : vector<1x128xf32>
    %65 = arith.addf %63, %64 : vector<1x128xf32>
    %66 = math.tanh %65 : vector<1x128xf32>
    %67 = arith.mulf %62, %66 : vector<1x128xf32>
    %c1_26 = arith.constant 1 : index
    %c0_27 = arith.constant 0 : index
    %68 = vector.load %arg9[%c1_26, %c0_27] : memref<8x128xf32, #tpu.memory_space<vmem>>, vector<1x128xf32>
    tpu.vector_store %arg9[%c1_26, %c0_27], %67 {strides = array<i32>} : memref<8x128xf32, #tpu.memory_space<vmem>>, vector<1x128xf32>,
    %c0_28 = arith.constant 0 : index
    %c0_29 = arith.constant 0 : index
    %69 = vector.load %arg3[%c0_28, %c0_29] : memref<128x512xf32, #tpu.memory_space<vmem>>, vector<128x512xf32>
    %cst_30 = arith.constant dense<0.000000e+00> : vector<1x512xf32>
    %70 = tpu.matmul %67, %69, %cst_30 {dimension_numbers = #tpu.dot_dimension_numbers<[1], [0], [0], [1], [0, 0, 1, 1], [], []>} : vector<1x128xf32>, vector<128x512xf32>, vector<1x512xf32> -> vector<1x512xf32>
    %c2 = arith.constant 2 : index
    %c0_31 = arith.constant 0 : index
    %71 = vector.load %arg8[%c2, %c0_31] : memref<8x512xf32, #tpu.memory_space<vmem>>, vector<1x512xf32>
    %72 = arith.addf %70, %71 : vector<1x512xf32>
    %73 = vector.extract_strided_slice %72 {offsets = [0, 0], sizes = [1, 128], strides = [1, 1]} : vector<1x512xf32> to vector<1x128xf32>
    %74 = arith.negf %73 : vector<1x128xf32>
    %75 = math.exp %74 : vector<1x128xf32>
    %cst_32 = arith.constant 1.000000e+00 : f32
    %76 = vector.broadcast %cst_32 : f32 to vector<1x128xf32>
    %77 = arith.addf %76, %75 : vector<1x128xf32>
    %78 = arith.divf %76, %77 : vector<1x128xf32>
    %79 = vector.extract_strided_slice %72 {offsets = [0, 128], sizes = [1, 128], strides = [1, 1]} : vector<1x512xf32> to vector<1x128xf32>
    %80 = arith.negf %79 : vector<1x128xf32>
    %81 = math.exp %80 : vector<1x128xf32>
    %cst_33 = arith.constant 1.000000e+00 : f32
    %82 = vector.broadcast %cst_33 : f32 to vector<1x128xf32>
    %83 = arith.addf %82, %81 : vector<1x128xf32>
    %84 = arith.divf %82, %83 : vector<1x128xf32>
    %85 = vector.extract_strided_slice %72 {offsets = [0, 256], sizes = [1, 128], strides = [1, 1]} : vector<1x512xf32> to vector<1x128xf32>
    %86 = math.tanh %85 : vector<1x128xf32>
    %87 = vector.extract_strided_slice %72 {offsets = [0, 384], sizes = [1, 128], strides = [1, 1]} : vector<1x512xf32> to vector<1x128xf32>
    %88 = arith.negf %87 : vector<1x128xf32>
    %89 = math.exp %88 : vector<1x128xf32>
    %cst_34 = arith.constant 1.000000e+00 : f32
    %90 = vector.broadcast %cst_34 : f32 to vector<1x128xf32>
    %91 = arith.addf %90, %89 : vector<1x128xf32>
    %92 = arith.divf %90, %91 : vector<1x128xf32>
    %93 = arith.mulf %84, %65 : vector<1x128xf32>
    %94 = arith.mulf %78, %86 : vector<1x128xf32>
    %95 = arith.addf %93, %94 : vector<1x128xf32>
    %96 = math.tanh %95 : vector<1x128xf32>
    %97 = arith.mulf %92, %96 : vector<1x128xf32>
    %c2_35 = arith.constant 2 : index
    %c0_36 = arith.constant 0 : index
    %98 = vector.load %arg9[%c2_35, %c0_36] : memref<8x128xf32, #tpu.memory_space<vmem>>, vector<1x128xf32>
    tpu.vector_store %arg9[%c2_35, %c0_36], %97 {strides = array<i32>} : memref<8x128xf32, #tpu.memory_space<vmem>>, vector<1x128xf32>,
    %c0_37 = arith.constant 0 : index
    %c0_38 = arith.constant 0 : index
    %99 = vector.load %arg3[%c0_37, %c0_38] : memref<128x512xf32, #tpu.memory_space<vmem>>, vector<128x512xf32>
    %cst_39 = arith.constant dense<0.000000e+00> : vector<1x512xf32>
    %100 = tpu.matmul %97, %99, %cst_39 {dimension_numbers = #tpu.dot_dimension_numbers<[1], [0], [0], [1], [0, 0, 1, 1], [], []>} : vector<1x128xf32>, vector<128x512xf32>, vector<1x512xf32> -> vector<1x512xf32>
    %c3 = arith.constant 3 : index
    %c0_40 = arith.constant 0 : index
    %101 = vector.load %arg8[%c3, %c0_40] : memref<8x512xf32, #tpu.memory_space<vmem>>, vector<1x512xf32>
    %102 = arith.addf %100, %101 : vector<1x512xf32>
    %103 = vector.extract_strided_slice %102 {offsets = [0, 0], sizes = [1, 128], strides = [1, 1]} : vector<1x512xf32> to vector<1x128xf32>
    %104 = arith.negf %103 : vector<1x128xf32>
    %105 = math.exp %104 : vector<1x128xf32>
    %cst_41 = arith.constant 1.000000e+00 : f32
    %106 = vector.broadcast %cst_41 : f32 to vector<1x128xf32>
    %107 = arith.addf %106, %105 : vector<1x128xf32>
    %108 = arith.divf %106, %107 : vector<1x128xf32>
    %109 = vector.extract_strided_slice %102 {offsets = [0, 128], sizes = [1, 128], strides = [1, 1]} : vector<1x512xf32> to vector<1x128xf32>
    %110 = arith.negf %109 : vector<1x128xf32>
    %111 = math.exp %110 : vector<1x128xf32>
    %cst_42 = arith.constant 1.000000e+00 : f32
    %112 = vector.broadcast %cst_42 : f32 to vector<1x128xf32>
    %113 = arith.addf %112, %111 : vector<1x128xf32>
    %114 = arith.divf %112, %113 : vector<1x128xf32>
    %115 = vector.extract_strided_slice %102 {offsets = [0, 256], sizes = [1, 128], strides = [1, 1]} : vector<1x512xf32> to vector<1x128xf32>
    %116 = math.tanh %115 : vector<1x128xf32>
    %117 = vector.extract_strided_slice %102 {offsets = [0, 384], sizes = [1, 128], strides = [1, 1]} : vector<1x512xf32> to vector<1x128xf32>
    %118 = arith.negf %117 : vector<1x128xf32>
    %119 = math.exp %118 : vector<1x128xf32>
    %cst_43 = arith.constant 1.000000e+00 : f32
    %120 = vector.broadcast %cst_43 : f32 to vector<1x128xf32>
    %121 = arith.addf %120, %119 : vector<1x128xf32>
    %122 = arith.divf %120, %121 : vector<1x128xf32>
    %123 = arith.mulf %114, %95 : vector<1x128xf32>
    %124 = arith.mulf %108, %116 : vector<1x128xf32>
    %125 = arith.addf %123, %124 : vector<1x128xf32>
    %126 = math.tanh %125 : vector<1x128xf32>
    %127 = arith.mulf %122, %126 : vector<1x128xf32>
    %c3_44 = arith.constant 3 : index
    %c0_45 = arith.constant 0 : index
    %128 = vector.load %arg9[%c3_44, %c0_45] : memref<8x128xf32, #tpu.memory_space<vmem>>, vector<1x128xf32>
    tpu.vector_store %arg9[%c3_44, %c0_45], %127 {strides = array<i32>} : memref<8x128xf32, #tpu.memory_space<vmem>>, vector<1x128xf32>,
    %c0_46 = arith.constant 0 : index
    %c0_47 = arith.constant 0 : index
    %129 = vector.load %arg3[%c0_46, %c0_47] : memref<128x512xf32, #tpu.memory_space<vmem>>, vector<128x512xf32>
    %cst_48 = arith.constant dense<0.000000e+00> : vector<1x512xf32>
    %130 = tpu.matmul %127, %129, %cst_48 {dimension_numbers = #tpu.dot_dimension_numbers<[1], [0], [0], [1], [0, 0, 1, 1], [], []>} : vector<1x128xf32>, vector<128x512xf32>, vector<1x512xf32> -> vector<1x512xf32>
    %c4 = arith.constant 4 : index
    %c0_49 = arith.constant 0 : index
    %131 = vector.load %arg8[%c4, %c0_49] : memref<8x512xf32, #tpu.memory_space<vmem>>, vector<1x512xf32>
    %132 = arith.addf %130, %131 : vector<1x512xf32>
    %133 = vector.extract_strided_slice %132 {offsets = [0, 0], sizes = [1, 128], strides = [1, 1]} : vector<1x512xf32> to vector<1x128xf32>
    %134 = arith.negf %133 : vector<1x128xf32>
    %135 = math.exp %134 : vector<1x128xf32>
    %cst_50 = arith.constant 1.000000e+00 : f32
    %136 = vector.broadcast %cst_50 : f32 to vector<1x128xf32>
    %137 = arith.addf %136, %135 : vector<1x128xf32>
    %138 = arith.divf %136, %137 : vector<1x128xf32>
    %139 = vector.extract_strided_slice %132 {offsets = [0, 128], sizes = [1, 128], strides = [1, 1]} : vector<1x512xf32> to vector<1x128xf32>
    %140 = arith.negf %139 : vector<1x128xf32>
    %141 = math.exp %140 : vector<1x128xf32>
    %cst_51 = arith.constant 1.000000e+00 : f32
    %142 = vector.broadcast %cst_51 : f32 to vector<1x128xf32>
    %143 = arith.addf %142, %141 : vector<1x128xf32>
    %144 = arith.divf %142, %143 : vector<1x128xf32>
    %145 = vector.extract_strided_slice %132 {offsets = [0, 256], sizes = [1, 128], strides = [1, 1]} : vector<1x512xf32> to vector<1x128xf32>
    %146 = math.tanh %145 : vector<1x128xf32>
    %147 = vector.extract_strided_slice %132 {offsets = [0, 384], sizes = [1, 128], strides = [1, 1]} : vector<1x512xf32> to vector<1x128xf32>
    %148 = arith.negf %147 : vector<1x128xf32>
    %149 = math.exp %148 : vector<1x128xf32>
    %cst_52 = arith.constant 1.000000e+00 : f32
    %150 = vector.broadcast %cst_52 : f32 to vector<1x128xf32>
    %151 = arith.addf %150, %149 : vector<1x128xf32>
    %152 = arith.divf %150, %151 : vector<1x128xf32>
    %153 = arith.mulf %144, %125 : vector<1x128xf32>
    %154 = arith.mulf %138, %146 : vector<1x128xf32>
    %155 = arith.addf %153, %154 : vector<1x128xf32>
    %156 = math.tanh %155 : vector<1x128xf32>
    %157 = arith.mulf %152, %156 : vector<1x128xf32>
    %c4_53 = arith.constant 4 : index
    %c0_54 = arith.constant 0 : index
    %158 = vector.load %arg9[%c4_53, %c0_54] : memref<8x128xf32, #tpu.memory_space<vmem>>, vector<1x128xf32>
    tpu.vector_store %arg9[%c4_53, %c0_54], %157 {strides = array<i32>} : memref<8x128xf32, #tpu.memory_space<vmem>>, vector<1x128xf32>,
    %c0_55 = arith.constant 0 : index
    %c0_56 = arith.constant 0 : index
    %159 = vector.load %arg3[%c0_55, %c0_56] : memref<128x512xf32, #tpu.memory_space<vmem>>, vector<128x512xf32>
    %cst_57 = arith.constant dense<0.000000e+00> : vector<1x512xf32>
    %160 = tpu.matmul %157, %159, %cst_57 {dimension_numbers = #tpu.dot_dimension_numbers<[1], [0], [0], [1], [0, 0, 1, 1], [], []>} : vector<1x128xf32>, vector<128x512xf32>, vector<1x512xf32> -> vector<1x512xf32>
    %c5 = arith.constant 5 : index
    %c0_58 = arith.constant 0 : index
    %161 = vector.load %arg8[%c5, %c0_58] : memref<8x512xf32, #tpu.memory_space<vmem>>, vector<1x512xf32>
    %162 = arith.addf %160, %161 : vector<1x512xf32>
    %163 = vector.extract_strided_slice %162 {offsets = [0, 0], sizes = [1, 128], strides = [1, 1]} : vector<1x512xf32> to vector<1x128xf32>
    %164 = arith.negf %163 : vector<1x128xf32>
    %165 = math.exp %164 : vector<1x128xf32>
    %cst_59 = arith.constant 1.000000e+00 : f32
    %166 = vector.broadcast %cst_59 : f32 to vector<1x128xf32>
    %167 = arith.addf %166, %165 : vector<1x128xf32>
    %168 = arith.divf %166, %167 : vector<1x128xf32>
    %169 = vector.extract_strided_slice %162 {offsets = [0, 128], sizes = [1, 128], strides = [1, 1]} : vector<1x512xf32> to vector<1x128xf32>
    %170 = arith.negf %169 : vector<1x128xf32>
    %171 = math.exp %170 : vector<1x128xf32>
    %cst_60 = arith.constant 1.000000e+00 : f32
    %172 = vector.broadcast %cst_60 : f32 to vector<1x128xf32>
    %173 = arith.addf %172, %171 : vector<1x128xf32>
    %174 = arith.divf %172, %173 : vector<1x128xf32>
    %175 = vector.extract_strided_slice %162 {offsets = [0, 256], sizes = [1, 128], strides = [1, 1]} : vector<1x512xf32> to vector<1x128xf32>
    %176 = math.tanh %175 : vector<1x128xf32>
    %177 = vector.extract_strided_slice %162 {offsets = [0, 384], sizes = [1, 128], strides = [1, 1]} : vector<1x512xf32> to vector<1x128xf32>
    %178 = arith.negf %177 : vector<1x128xf32>
    %179 = math.exp %178 : vector<1x128xf32>
    %cst_61 = arith.constant 1.000000e+00 : f32
    %180 = vector.broadcast %cst_61 : f32 to vector<1x128xf32>
    %181 = arith.addf %180, %179 : vector<1x128xf32>
    %182 = arith.divf %180, %181 : vector<1x128xf32>
    %183 = arith.mulf %174, %155 : vector<1x128xf32>
    %184 = arith.mulf %168, %176 : vector<1x128xf32>
    %185 = arith.addf %183, %184 : vector<1x128xf32>
    %186 = math.tanh %185 : vector<1x128xf32>
    %187 = arith.mulf %182, %186 : vector<1x128xf32>
    %c5_62 = arith.constant 5 : index
    %c0_63 = arith.constant 0 : index
    %188 = vector.load %arg9[%c5_62, %c0_63] : memref<8x128xf32, #tpu.memory_space<vmem>>, vector<1x128xf32>
    tpu.vector_store %arg9[%c5_62, %c0_63], %187 {strides = array<i32>} : memref<8x128xf32, #tpu.memory_space<vmem>>, vector<1x128xf32>,
    %c0_64 = arith.constant 0 : index
    %c0_65 = arith.constant 0 : index
    %189 = vector.load %arg3[%c0_64, %c0_65] : memref<128x512xf32, #tpu.memory_space<vmem>>, vector<128x512xf32>
    %cst_66 = arith.constant dense<0.000000e+00> : vector<1x512xf32>
    %190 = tpu.matmul %187, %189, %cst_66 {dimension_numbers = #tpu.dot_dimension_numbers<[1], [0], [0], [1], [0, 0, 1, 1], [], []>} : vector<1x128xf32>, vector<128x512xf32>, vector<1x512xf32> -> vector<1x512xf32>
    %c6 = arith.constant 6 : index
    %c0_67 = arith.constant 0 : index
    %191 = vector.load %arg8[%c6, %c0_67] : memref<8x512xf32, #tpu.memory_space<vmem>>, vector<1x512xf32>
    %192 = arith.addf %190, %191 : vector<1x512xf32>
    %193 = vector.extract_strided_slice %192 {offsets = [0, 0], sizes = [1, 128], strides = [1, 1]} : vector<1x512xf32> to vector<1x128xf32>
    %194 = arith.negf %193 : vector<1x128xf32>
    %195 = math.exp %194 : vector<1x128xf32>
    %cst_68 = arith.constant 1.000000e+00 : f32
    %196 = vector.broadcast %cst_68 : f32 to vector<1x128xf32>
    %197 = arith.addf %196, %195 : vector<1x128xf32>
    %198 = arith.divf %196, %197 : vector<1x128xf32>
    %199 = vector.extract_strided_slice %192 {offsets = [0, 128], sizes = [1, 128], strides = [1, 1]} : vector<1x512xf32> to vector<1x128xf32>
    %200 = arith.negf %199 : vector<1x128xf32>
    %201 = math.exp %200 : vector<1x128xf32>
    %cst_69 = arith.constant 1.000000e+00 : f32
    %202 = vector.broadcast %cst_69 : f32 to vector<1x128xf32>
    %203 = arith.addf %202, %201 : vector<1x128xf32>
    %204 = arith.divf %202, %203 : vector<1x128xf32>
    %205 = vector.extract_strided_slice %192 {offsets = [0, 256], sizes = [1, 128], strides = [1, 1]} : vector<1x512xf32> to vector<1x128xf32>
    %206 = math.tanh %205 : vector<1x128xf32>
    %207 = vector.extract_strided_slice %192 {offsets = [0, 384], sizes = [1, 128], strides = [1, 1]} : vector<1x512xf32> to vector<1x128xf32>
    %208 = arith.negf %207 : vector<1x128xf32>
    %209 = math.exp %208 : vector<1x128xf32>
    %cst_70 = arith.constant 1.000000e+00 : f32
    %210 = vector.broadcast %cst_70 : f32 to vector<1x128xf32>
    %211 = arith.addf %210, %209 : vector<1x128xf32>
    %212 = arith.divf %210, %211 : vector<1x128xf32>
    %213 = arith.mulf %204, %185 : vector<1x128xf32>
    %214 = arith.mulf %198, %206 : vector<1x128xf32>
    %215 = arith.addf %213, %214 : vector<1x128xf32>
    %216 = math.tanh %215 : vector<1x128xf32>
    %217 = arith.mulf %212, %216 : vector<1x128xf32>
    %c6_71 = arith.constant 6 : index
    %c0_72 = arith.constant 0 : index
    %218 = vector.load %arg9[%c6_71, %c0_72] : memref<8x128xf32, #tpu.memory_space<vmem>>, vector<1x128xf32>
    tpu.vector_store %arg9[%c6_71, %c0_72], %217 {strides = array<i32>} : memref<8x128xf32, #tpu.memory_space<vmem>>, vector<1x128xf32>,
    %c0_73 = arith.constant 0 : index
    %c0_74 = arith.constant 0 : index
    %219 = vector.load %arg3[%c0_73, %c0_74] : memref<128x512xf32, #tpu.memory_space<vmem>>, vector<128x512xf32>
    %cst_75 = arith.constant dense<0.000000e+00> : vector<1x512xf32>
    %220 = tpu.matmul %217, %219, %cst_75 {dimension_numbers = #tpu.dot_dimension_numbers<[1], [0], [0], [1], [0, 0, 1, 1], [], []>} : vector<1x128xf32>, vector<128x512xf32>, vector<1x512xf32> -> vector<1x512xf32>
    %c7 = arith.constant 7 : index
    %c0_76 = arith.constant 0 : index
    %221 = vector.load %arg8[%c7, %c0_76] : memref<8x512xf32, #tpu.memory_space<vmem>>, vector<1x512xf32>
    %222 = arith.addf %220, %221 : vector<1x512xf32>
    %223 = vector.extract_strided_slice %222 {offsets = [0, 0], sizes = [1, 128], strides = [1, 1]} : vector<1x512xf32> to vector<1x128xf32>
    %224 = arith.negf %223 : vector<1x128xf32>
    %225 = math.exp %224 : vector<1x128xf32>
    %cst_77 = arith.constant 1.000000e+00 : f32
    %226 = vector.broadcast %cst_77 : f32 to vector<1x128xf32>
    %227 = arith.addf %226, %225 : vector<1x128xf32>
    %228 = arith.divf %226, %227 : vector<1x128xf32>
    %229 = vector.extract_strided_slice %222 {offsets = [0, 128], sizes = [1, 128], strides = [1, 1]} : vector<1x512xf32> to vector<1x128xf32>
    %230 = arith.negf %229 : vector<1x128xf32>
    %231 = math.exp %230 : vector<1x128xf32>
    %cst_78 = arith.constant 1.000000e+00 : f32
    %232 = vector.broadcast %cst_78 : f32 to vector<1x128xf32>
    %233 = arith.addf %232, %231 : vector<1x128xf32>
    %234 = arith.divf %232, %233 : vector<1x128xf32>
    %235 = vector.extract_strided_slice %222 {offsets = [0, 256], sizes = [1, 128], strides = [1, 1]} : vector<1x512xf32> to vector<1x128xf32>
    %236 = math.tanh %235 : vector<1x128xf32>
    %237 = vector.extract_strided_slice %222 {offsets = [0, 384], sizes = [1, 128], strides = [1, 1]} : vector<1x512xf32> to vector<1x128xf32>
    %238 = arith.negf %237 : vector<1x128xf32>
    %239 = math.exp %238 : vector<1x128xf32>
    %cst_79 = arith.constant 1.000000e+00 : f32
    %240 = vector.broadcast %cst_79 : f32 to vector<1x128xf32>
    %241 = arith.addf %240, %239 : vector<1x128xf32>
    %242 = arith.divf %240, %241 : vector<1x128xf32>
    %243 = arith.mulf %234, %215 : vector<1x128xf32>
    %244 = arith.mulf %228, %236 : vector<1x128xf32>
    %245 = arith.addf %243, %244 : vector<1x128xf32>
    %246 = math.tanh %245 : vector<1x128xf32>
    %247 = arith.mulf %242, %246 : vector<1x128xf32>
    %c7_80 = arith.constant 7 : index
    %c0_81 = arith.constant 0 : index
    %248 = vector.load %arg9[%c7_80, %c0_81] : memref<8x128xf32, #tpu.memory_space<vmem>>, vector<1x128xf32>
    tpu.vector_store %arg9[%c7_80, %c0_81], %247 {strides = array<i32>} : memref<8x128xf32, #tpu.memory_space<vmem>>, vector<1x128xf32>,
    %c0_82 = arith.constant 0 : index
    %c0_83 = arith.constant 0 : index
    %249 = vector.load %arg9[%c0_82, %c0_83] : memref<8x128xf32, #tpu.memory_space<vmem>>, vector<8x128xf32>
    %c0_84 = arith.constant 0 : index
    %c0_85 = arith.constant 0 : index
    %250 = vector.load %arg5[%c0_84, %c0_85] : memref<128x128xf32, #tpu.memory_space<vmem>>, vector<128x128xf32>
    %cst_86 = arith.constant dense<0.000000e+00> : vector<8x128xf32>
    %251 = tpu.matmul %249, %250, %cst_86 {dimension_numbers = #tpu.dot_dimension_numbers<[1], [0], [0], [1], [0, 0, 1, 1], [], []>} : vector<8x128xf32>, vector<128x128xf32>, vector<8x128xf32> -> vector<8x128xf32>
    %c0_87 = arith.constant 0 : index
    %c0_88 = arith.constant 0 : index
    %252 = vector.load %arg6[%c0_87, %c0_88] : memref<1x128xf32, #tpu.memory_space<vmem>>, vector<1x128xf32>
    %253 = vector.broadcast %252 : vector<1x128xf32> to vector<8x128xf32>
    %254 = arith.addf %251, %253 : vector<8x128xf32>
    %cst_89 = arith.constant dense<0xFF800000> : vector<8xf32>
    %255 = vector.multi_reduction <maximumf>, %254, %cst_89 [1] : vector<8x128xf32> to vector<8xf32>
    %256 = vector.shape_cast %255 : vector<8xf32> to vector<8x1xf32>
    %257 = vector.broadcast %256 : vector<8x1xf32> to vector<8x128xf32>
    %258 = arith.subf %254, %257 : vector<8x128xf32>
    %259 = math.exp %258 : vector<8x128xf32>
    %cst_90 = arith.constant dense<0.000000e+00> : vector<8xf32>
    %260 = vector.multi_reduction <add>, %259, %cst_90 [1] : vector<8x128xf32> to vector<8xf32>
    %261 = vector.shape_cast %260 : vector<8xf32> to vector<8x1xf32>
    %262 = math.log %261 : vector<8x1xf32>
    %263 = arith.addf %256, %262 : vector<8x1xf32>
    %264 = vector.broadcast %263 : vector<8x1xf32> to vector<8x128xf32>
    %265 = arith.subf %254, %264 : vector<8x128xf32>
    %c0_91 = arith.constant 0 : index
    %c0_92 = arith.constant 0 : index
    %266 = vector.load %arg7[%c0_91, %c0_92] : memref<8x128xf32, #tpu.memory_space<vmem>>, vector<8x128xf32>
    tpu.vector_store %arg7[%c0_91, %c0_92], %265 {strides = array<i32>} : memref<8x128xf32, #tpu.memory_space<vmem>>, vector<8x128xf32>,
    return
  }
  func.func @transform_0(%arg0: i32) -> (i32, i32) {
    %c0_i32 = arith.constant 0 : i32
    %c0_i32_0 = arith.constant 0 : i32
    %c0_i32_1 = arith.constant 0 : i32
    return %c0_i32, %c0_i32_0 : i32, i32
  }
  func.func @transform_1(%arg0: i32) -> (i32, i32) {
    %c0_i32 = arith.constant 0 : i32
    %c0_i32_0 = arith.constant 0 : i32
    %c0_i32_1 = arith.constant 0 : i32
    return %c0_i32, %c0_i32_0 : i32, i32
  }
  func.func @transform_2(%arg0: i32) -> (i32, i32) {
    %c0_i32 = arith.constant 0 : i32
    %c0_i32_0 = arith.constant 0 : i32
    %c0_i32_1 = arith.constant 0 : i32
    return %c0_i32, %c0_i32_0 : i32, i32
  }
  func.func @transform_3(%arg0: i32) -> (i32, i32) {
    %c0_i32 = arith.constant 0 : i32
    %c0_i32_0 = arith.constant 0 : i32
    %c0_i32_1 = arith.constant 0 : i32
    return %c0_i32, %c0_i32_0 : i32, i32
  }
  func.func @transform_4(%arg0: i32) -> (i32, i32) {
    %c0_i32 = arith.constant 0 : i32
    %c0_i32_0 = arith.constant 0 : i32
    %c0_i32_1 = arith.constant 0 : i32
    return %c0_i32, %c0_i32_0 : i32, i32
  }
  func.func @transform_5(%arg0: i32) -> (i32, i32) {
    %c0_i32 = arith.constant 0 : i32
    %c0_i32_0 = arith.constant 0 : i32
    %c0_i32_1 = arith.constant 0 : i32
    return %c0_i32, %c0_i32_0 : i32, i32
  }
  func.func @transform_6(%arg0: i32) -> (i32, i32) {
    %c0_i32 = arith.constant 0 : i32
    %c0_i32_0 = arith.constant 0 : i32
    %c0_i32_1 = arith.constant 0 : i32
    return %c0_i32, %c0_i32_0 : i32, i32
  }
}

</mosaic_0001>

<llo_original>
// kernel: tpu_custom_call.1
$region0: #{tpu_custom_call.1}
  #allocation0 [shape = 'u32[]', space=smem, size = 0x4, offset = 0x4, fixed_abs, tag = 'smem constant byte address 0x4 - core index']
  #allocation1 [shape = 'u32[144,128]{1,0:T(1,128)}', space=vmem, size = 0x12000, scoped, tag = 'internal scratch']
  #allocation2 [shape = 'f32[8,512]{1,0:T(8,128)}', space=vmem, size = 0x4000, scoped, tag = 'scratch operand']
  #allocation3 [shape = 'f32[8,128]{1,0:T(8,128)}', space=vmem, size = 0x1000, scoped, tag = 'scratch operand']
  %s0 = inlined_call_operand.hbm [shape: f32[8,128], index: 0, kind: input, shape index: {}]
  %s1 = inlined_call_operand.hbm [shape: f32[128,512], index: 1, kind: input, shape index: {}]
  %s2 = inlined_call_operand.hbm [shape: f32[128,512], index: 2, kind: input, shape index: {}]
  %s3 = inlined_call_operand.vmem [shape: f32[1,512], index: 3, kind: input, shape index: {}]
  %s4 = inlined_call_operand.hbm [shape: f32[128,128], index: 4, kind: input, shape index: {}]
  %s5 = inlined_call_operand.vmem [shape: f32[1,128], index: 5, kind: input, shape index: {}]
  %s6 = inlined_call_operand.hbm [shape: f32[8,128], index: 6, kind: output, shape index: {}]
  %s7 = sld [smem:[#allocation0]]
  $region50: #{tpu_custom_call.1} parent=0
    _
  %s9 = ssub.s32 1, %s7
  %s10 = scalar_select 0, %s9, %s7
  $region1: #{tpu_custom_call.1} parent=0
    #allocation4 [shape = 'u8[4096]{0}', space=vmem, size = 0x1000, scoped, tag = 'input window, operand 0, single buffered']
    #allocation5 [shape = 's32[1]{0}', space=sflag, size = 0x4, scoped, tag = 'scoped memory for tpu_custom_call.1']
    #allocation6 [shape = 's32[1]{0}', space=sflag, size = 0x4, scoped, tag = 'scoped memory for tpu_custom_call.1']
    #allocation7 [shape = 'u8[262144]{0}', space=vmem, size = 0x40000, scoped, tag = 'input window, operand 1, single buffered']
    #allocation8 [shape = 's32[1]{0}', space=sflag, size = 0x4, scoped, tag = 'scoped memory for tpu_custom_call.1']
    #allocation9 [shape = 'u8[262144]{0}', space=vmem, size = 0x40000, scoped, tag = 'input window, operand 2, single buffered']
    #allocation10 [shape = 'u8[65536]{0}', space=vmem, size = 0x10000, scoped, tag = 'input window, operand 4, single buffered']
    #allocation11 [shape = 's32[1]{0}', space=sflag, size = 0x4, scoped, tag = 'scoped memory for tpu_custom_call.1']
    #allocation12 [shape = 'u8[4096]{0}', space=vmem, size = 0x1000, scoped, tag = 'output window, operand 0, single buffered']
    %11 = vsyncpa [#allocation5], 0
    %12 = vsyncpa [#allocation8], 0
    %13 = vsyncpa [#allocation11], 0
    %14 = vsyncpa [#allocation6], 0
    // Predicated region
    $region2: #{tpu_custom_call.1} parent=1 // pred_check
      _
    $region3: #{tpu_custom_call.1} parent=1 // pred_check_branch
      %16 = sbr.rel (0) target = $region5
    $region4: #{tpu_custom_call.1} parent=1 // pred_region
      %s18 = ssub.s32 128, 128
      %19 = vsyncadd [#allocation5], %s18
      %s21 = sshll.u32 [#allocation4], 4
      %s22 = int_to_ptr.vmem [resolvable:$true] %s21
      %24 = dma.hbm_to_vmem [thread:$0]  %s0, 128, %s22, [#allocation5]
    $region5: #{tpu_custom_call.1} parent=1 // pred_fallthru
      _
    // Predicated region
    $region6: #{tpu_custom_call.1} parent=1 // pred_check
      _
    $region7: #{tpu_custom_call.1} parent=1 // pred_check_branch
      %26 = sbr.rel (0) target = $region9
    $region8: #{tpu_custom_call.1} parent=1 // pred_region
      %s28 = ssub.s32 8192, 8192
      %29 = vsyncadd [#allocation8], %s28
      %s30 = sshll.u32 [#allocation7], 4
      %s31 = int_to_ptr.vmem [resolvable:$true] %s30
      %36 = dma.hbm_to_vmem [thread:$0]  %s1, 8192, %s31, [#allocation8], 512, 512, 32
    $region9: #{tpu_custom_call.1} parent=1 // pred_fallthru
      _
    // Predicated region
    $region10: #{tpu_custom_call.1} parent=1 // pred_check
      _
    $region11: #{tpu_custom_call.1} parent=1 // pred_check_branch
      %38 = sbr.rel (0) target = $region13
    $region12: #{tpu_custom_call.1} parent=1 // pred_region
      %s40 = ssub.s32 8192, 8192
      %41 = vsyncadd [#allocation8], %s40
      %s42 = sshll.u32 [#allocation9], 4
      %s43 = int_to_ptr.vmem [resolvable:$true] %s42
      %48 = dma.hbm_to_vmem [thread:$0]  %s2, 8192, %s43, [#allocation8], 512, 512, 32
    $region13: #{tpu_custom_call.1} parent=1 // pred_fallthru
      _
    // Predicated region
    $region14: #{tpu_custom_call.1} parent=1 // pred_check
      _
    $region15: #{tpu_custom_call.1} parent=1 // pred_check_branch
      %50 = sbr.rel (0) target = $region17
    $region16: #{tpu_custom_call.1} parent=1 // pred_region
      _
    $region17: #{tpu_custom_call.1} parent=1 // pred_fallthru
      _
    // Predicated region
    $region18: #{tpu_custom_call.1} parent=1 // pred_check
      _
    $region19: #{tpu_custom_call.1} parent=1 // pred_check_branch
      %52 = sbr.rel (0) target = $region21
    $region20: #{tpu_custom_call.1} parent=1 // pred_region
      %s54 = ssub.s32 2048, 2048
      %55 = vsyncadd [#allocation11], %s54
      %s56 = sshll.u32 [#allocation10], 4
      %s57 = int_to_ptr.vmem [resolvable:$true] %s56
      %62 = dma.hbm_to_vmem [thread:$0]  %s4, 2048, %s57, [#allocation11], 128, 128, 8
    $region21: #{tpu_custom_call.1} parent=1 // pred_fallthru
      _
    // Predicated region
    $region22: #{tpu_custom_call.1} parent=1 // pred_check
      _
    $region23: #{tpu_custom_call.1} parent=1 // pred_check_branch
      %64 = sbr.rel (0) target = $region25
    $region24: #{tpu_custom_call.1} parent=1 // pred_region
      _
    $region25: #{tpu_custom_call.1} parent=1 // pred_fallthru
      _
    // Predicated region
    $region26: #{tpu_custom_call.1} parent=1 // pred_check
      _
    $region27: #{tpu_custom_call.1} parent=1 // pred_check_branch
      %66 = sbr.rel (0) target = $region29
    $region28: #{tpu_custom_call.1} parent=1 // pred_region
      %67 = dma.done [#allocation5], 128
    $region29: #{tpu_custom_call.1} parent=1 // pred_fallthru
      _
    // Predicated region
    $region30: #{tpu_custom_call.1} parent=1 // pred_check
      _
    $region31: #{tpu_custom_call.1} parent=1 // pred_check_branch
      %69 = sbr.rel (0) target = $region33
    $region32: #{tpu_custom_call.1} parent=1 // pred_region
      %70 = dma.done [#allocation8], 8192
    $region33: #{tpu_custom_call.1} parent=1 // pred_fallthru
      _
    // Predicated region
    $region34: #{tpu_custom_call.1} parent=1 // pred_check
      _
    $region35: #{tpu_custom_call.1} parent=1 // pred_check_branch
      %72 = sbr.rel (0) target = $region37
    $region36: #{tpu_custom_call.1} parent=1 // pred_region
      %73 = dma.done [#allocation8], 8192
    $region37: #{tpu_custom_call.1} parent=1 // pred_fallthru
      _
    // Predicated region
    $region38: #{tpu_custom_call.1} parent=1 // pred_check
      _
    $region39: #{tpu_custom_call.1} parent=1 // pred_check_branch
      %75 = sbr.rel (0) target = $region41
    $region40: #{tpu_custom_call.1} parent=1 // pred_region
      %76 = dma.done [#allocation11], 2048
    $region41: #{tpu_custom_call.1} parent=1 // pred_fallthru
      _
    %v77 = vld [vmem:[#allocation4] sm:$0xff]
    %v78 = vld [vmem:[#allocation7] sm:$0xff]
    %v79 = vld [vmem:[#allocation7 + $0x8] sm:$0xff]
    %v80 = vld [vmem:[#allocation7 + $0x10] sm:$0xff]
    %v81 = vld [vmem:[#allocation7 + $0x18] sm:$0xff]
    %v82 = vld [vmem:[#allocation7 + $0x20] sm:$0xff]
    %v83 = vld [vmem:[#allocation7 + $0x28] sm:$0xff]
    %v84 = vld [vmem:[#allocation7 + $0x30] sm:$0xff]
    %v85 = vld [vmem:[#allocation7 + $0x38] sm:$0xff]
    %v86 = vld [vmem:[#allocation7 + $0x40] sm:$0xff]
    %v87 = vld [vmem:[#allocation7 + $0x48] sm:$0xff]
    %v88 = vld [vmem:[#allocation7 + $0x50] sm:$0xff]
    %v89 = vld [vmem:[#allocation7 + $0x58] sm:$0xff]
    %v90 = vld [vmem:[#allocation7 + $0x60] sm:$0xff]
    %v91 = vld [vmem:[#allocation7 + $0x68] sm:$0xff]
    %v92 = vld [vmem:[#allocation7 + $0x70] sm:$0xff]
    %v93 = vld [vmem:[#allocation7 + $0x78] sm:$0xff]
    %v94 = vld [vmem:[#allocation7 + $0x80] sm:$0xff]
    %v95 = vld [vmem:[#allocation7 + $0x88] sm:$0xff]
    %v96 = vld [vmem:[#allocation7 + $0x90] sm:$0xff]
    %v97 = vld [vmem:[#allocation7 + $0x98] sm:$0xff]
    %v98 = vld [vmem:[#allocation7 + $0xa0] sm:$0xff]
    %v99 = vld [vmem:[#allocation7 + $0xa8] sm:$0xff]
    %v100 = vld [vmem:[#allocation7 + $0xb0] sm:$0xff]
    %v101 = vld [vmem:[#allocation7 + $0xb8] sm:$0xff]
    %v102 = vld [vmem:[#allocation7 + $0xc0] sm:$0xff]
    %v103 = vld [vmem:[#allocation7 + $0xc8] sm:$0xff]
    %v104 = vld [vmem:[#allocation7 + $0xd0] sm:$0xff]
    %v105 = vld [vmem:[#allocation7 + $0xd8] sm:$0xff]
    %v106 = vld [vmem:[#allocation7 + $0xe0] sm:$0xff]
    %v107 = vld [vmem:[#allocation7 + $0xe8] sm:$0xff]
    %v108 = vld [vmem:[#allocation7 + $0xf0] sm:$0xff]
    %v109 = vld [vmem:[#allocation7 + $0xf8] sm:$0xff]
    %v110 = vld [vmem:[#allocation7 + $0x100] sm:$0xff]
    %v111 = vld [vmem:[#allocation7 + $0x108] sm:$0xff]
    %v112 = vld [vmem:[#allocation7 + $0x110] sm:$0xff]
    %v113 = vld [vmem:[#allocation7 + $0x118] sm:$0xff]
    %v114 = vld [vmem:[#allocation7 + $0x120] sm:$0xff]
    %v115 = vld [vmem:[#allocation7 + $0x128] sm:$0xff]
    %v116 = vld [vmem:[#allocation7 + $0x130] sm:$0xff]
    %v117 = vld [vmem:[#allocation7 + $0x138] sm:$0xff]
    %v118 = vld [vmem:[#allocation7 + $0x140] sm:$0xff]
    %v119 = vld [vmem:[#allocation7 + $0x148] sm:$0xff]
    %v120 = vld [vmem:[#allocation7 + $0x150] sm:$0xff]
    %v121 = vld [vmem:[#allocation7 + $0x158] sm:$0xff]
    %v122 = vld [vmem:[#allocation7 + $0x160] sm:$0xff]
    %v123 = vld [vmem:[#allocation7 + $0x168] sm:$0xff]
    %v124 = vld [vmem:[#allocation7 + $0x170] sm:$0xff]
    %v125 = vld [vmem:[#allocation7 + $0x178] sm:$0xff]
    %v126 = vld [vmem:[#allocation7 + $0x180] sm:$0xff]
    %v127 = vld [vmem:[#allocation7 + $0x188] sm:$0xff]
    %v128 = vld [vmem:[#allocation7 + $0x190] sm:$0xff]
    %v129 = vld [vmem:[#allocation7 + $0x198] sm:$0xff]
    %v130 = vld [vmem:[#allocation7 + $0x1a0] sm:$0xff]
    %v131 = vld [vmem:[#allocation7 + $0x1a8] sm:$0xff]
    %v132 = vld [vmem:[#allocation7 + $0x1b0] sm:$0xff]
    %v133 = vld [vmem:[#allocation7 + $0x1b8] sm:$0xff]
    %v134 = vld [vmem:[#allocation7 + $0x1c0] sm:$0xff]
    %v135 = vld [vmem:[#allocation7 + $0x1c8] sm:$0xff]
    %v136 = vld [vmem:[#allocation7 + $0x1d0] sm:$0xff]
    %v137 = vld [vmem:[#allocation7 + $0x1d8] sm:$0xff]
    %v138 = vld [vmem:[#allocation7 + $0x1e0] sm:$0xff]
    %v139 = vld [vmem:[#allocation7 + $0x1e8] sm:$0xff]
    %v140 = vld [vmem:[#allocation7 + $0x1f0] sm:$0xff]
    %v141 = vld [vmem:[#allocation7 + $0x1f8] sm:$0xff]
    %v142 = vld [vmem:[%s3] sm:$0xf]
    %v144 = vlaneseq
    %v145 = vshrl.u32 %v144, 7
    %v146 = vsub.s32 0, %v145
    %v147 = vrot.slane %v142, %v146
    %v148 = vlaneseq
    %v149 = vshrl.u32 %v148, 7
    %v150 = vsub.s32 1, %v149
    %v151 = vrot.slane %v142, %v150
    %v152 = vlaneseq
    %v153 = vshrl.u32 %v152, 7
    %v154 = vsub.s32 2, %v153
    %v155 = vrot.slane %v142, %v154
    %v156 = vlaneseq
    %v157 = vshrl.u32 %v156, 7
    %v158 = vsub.s32 3, %v157
    %v159 = vrot.slane %v142, %v158
    %164 = vmatprep.subr.mxu0 %v79
    %165 = vmatpush1.msra.mxu0 %v78
    %166 = vmatprep.subr.mxu0 %v83
    %167 = vmatpush1.msra.mxu0 %v82
    %168 = vmatprep.subr.mxu0 %v87
    %169 = vmatpush1.msra.mxu0 %v86
    %170 = vmatprep.subr.mxu0 %v91
    %171 = vmatpush1.msra.mxu0 %v90
    %172 = vmatprep.subr.mxu0 %v95
    %173 = vmatpush1.msra.mxu0 %v94
    %174 = vmatprep.subr.mxu0 %v99
    %175 = vmatpush1.msra.mxu0 %v98
    %176 = vmatprep.subr.mxu0 %v103
    %177 = vmatpush1.msra.mxu0 %v102
    %178 = vmatprep.subr.mxu0 %v107
    %179 = vmatpush1.msra.mxu0 %v106
    %180 = vmatprep.subr.mxu0 %v111
    %181 = vmatpush1.msra.mxu0 %v110
    %182 = vmatprep.subr.mxu0 %v115
    %183 = vmatpush1.msra.mxu0 %v114
    %184 = vmatprep.subr.mxu0 %v119
    %185 = vmatpush1.msra.mxu0 %v118
    %186 = vmatprep.subr.mxu0 %v123
    %187 = vmatpush1.msra.mxu0 %v122
    %188 = vmatprep.subr.mxu0 %v127
    %189 = vmatpush1.msra.mxu0 %v126
    %190 = vmatprep.subr.mxu0 %v131
    %191 = vmatpush1.msra.mxu0 %v130
    %192 = vmatprep.subr.mxu0 %v135
    %193 = vmatpush1.msra.mxu0 %v134
    %194 = vmatprep.subr.mxu0 %v139
    %195 = vmatpush1.msra.mxu0 %v138
    %196 = vmatprep.subr.mxu0 0.0
    %197 = vmatpush1.msra.mxu0 0.0
    %198 = vmatprep.subr.mxu0 0.0
    %199 = vmatpush1.msra.mxu0 0.0
    %200 = vmatprep.subr.mxu0 0.0
    %201 = vmatpush1.msra.mxu0 0.0
    %202 = vmatprep.subr.mxu0 0.0
    %203 = vmatpush1.msra.mxu0 0.0
    %204 = vmatprep.subr.mxu0 0.0
    %205 = vmatpush1.msra.mxu0 0.0
    %206 = vmatprep.subr.mxu0 0.0
    %207 = vmatpush1.msra.mxu0 0.0
    %208 = vmatprep.subr.mxu0 0.0
    %209 = vmatpush1.msra.mxu0 0.0
    %210 = vmatprep.subr.mxu0 0.0
    %211 = vmatpush1.msra.mxu0 0.0
    %212 = vmatprep.subr.mxu0 0.0
    %213 = vmatpush1.msra.mxu0 0.0
    %214 = vmatprep.subr.mxu0 0.0
    %215 = vmatpush1.msra.mxu0 0.0
    %216 = vmatprep.subr.mxu0 0.0
    %217 = vmatpush1.msra.mxu0 0.0
    %218 = vmatprep.subr.mxu0 0.0
    %219 = vmatpush1.msra.mxu0 0.0
    %220 = vmatprep.subr.mxu0 0.0
    %221 = vmatpush1.msra.mxu0 0.0
    %222 = vmatprep.subr.mxu0 0.0
    %223 = vmatpush1.msra.mxu0 0.0
    %224 = vmatprep.subr.mxu0 0.0
    %225 = vmatpush1.msra.mxu0 0.0
    %226 = vmatprep.subr.mxu0 0.0
    %227 = vmatpush1.msra.mxu0 0.0
    %228 = vmatprep.mubr.f32.mxu0 0.0
    %229 = vmatmul.mubr.f32.gmra.mrb[0].mxu0 %v77
    %v230 = vpop.f32.mrb[0].mxu0
    %v231 = vadd.f32 %v147, %v230
    %v232 = vpop.f32.mrb[0].mxu0
    %v233 = vadd.f32 %v151, %v232
    %234 = vdwg.mxu0
    %235 = vmatprep.subr.mxu0 %v81
    %236 = vmatpush1.msra.mxu0 %v80
    %237 = vmatprep.subr.mxu0 %v85
    %238 = vmatpush1.msra.mxu0 %v84
    %239 = vmatprep.subr.mxu0 %v89
    %240 = vmatpush1.msra.mxu0 %v88
    %241 = vmatprep.subr.mxu0 %v93
    %242 = vmatpush1.msra.mxu0 %v92
    %243 = vmatprep.subr.mxu0 %v97
    %244 = vmatpush1.msra.mxu0 %v96
    %245 = vmatprep.subr.mxu0 %v101
    %246 = vmatpush1.msra.mxu0 %v100
    %247 = vmatprep.subr.mxu0 %v105
    %248 = vmatpush1.msra.mxu0 %v104
    %249 = vmatprep.subr.mxu0 %v109
    %250 = vmatpush1.msra.mxu0 %v108
    %251 = vmatprep.subr.mxu0 %v113
    %252 = vmatpush1.msra.mxu0 %v112
    %253 = vmatprep.subr.mxu0 %v117
    %254 = vmatpush1.msra.mxu0 %v116
    %255 = vmatprep.subr.mxu0 %v121
    %256 = vmatpush1.msra.mxu0 %v120
    %257 = vmatprep.subr.mxu0 %v125
    %258 = vmatpush1.msra.mxu0 %v124
    %259 = vmatprep.subr.mxu0 %v129
    %260 = vmatpush1.msra.mxu0 %v128
    %261 = vmatprep.subr.mxu0 %v133
    %262 = vmatpush1.msra.mxu0 %v132
    %263 = vmatprep.subr.mxu0 %v137
    %264 = vmatpush1.msra.mxu0 %v136
    %265 = vmatprep.subr.mxu0 %v141
    %266 = vmatpush1.msra.mxu0 %v140
    %267 = vmatprep.subr.mxu0 0.0
    %268 = vmatpush1.msra.mxu0 0.0
    %269 = vmatprep.subr.mxu0 0.0
    %270 = vmatpush1.msra.mxu0 0.0
    %271 = vmatprep.subr.mxu0 0.0
    %272 = vmatpush1.msra.mxu0 0.0
    %273 = vmatprep.subr.mxu0 0.0
    %274 = vmatpush1.msra.mxu0 0.0
    %275 = vmatprep.subr.mxu0 0.0
    %276 = vmatpush1.msra.mxu0 0.0
    %277 = vmatprep.subr.mxu0 0.0
    %278 = vmatpush1.msra.mxu0 0.0
    %279 = vmatprep.subr.mxu0 0.0
    %280 = vmatpush1.msra.mxu0 0.0
    %281 = vmatprep.subr.mxu0 0.0
    %282 = vmatpush1.msra.mxu0 0.0
    %283 = vmatprep.subr.mxu0 0.0
    %284 = vmatpush1.msra.mxu0 0.0
    %285 = vmatprep.subr.mxu0 0.0
    %286 = vmatpush1.msra.mxu0 0.0
    %287 = vmatprep.subr.mxu0 0.0
    %288 = vmatpush1.msra.mxu0 0.0
    %289 = vmatprep.subr.mxu0 0.0
    %290 = vmatpush1.msra.mxu0 0.0
    %291 = vmatprep.subr.mxu0 0.0
    %292 = vmatpush1.msra.mxu0 0.0
    %293 = vmatprep.subr.mxu0 0.0
    %294 = vmatpush1.msra.mxu0 0.0
    %295 = vmatprep.subr.mxu0 0.0
    %296 = vmatpush1.msra.mxu0 0.0
    %297 = vmatprep.subr.mxu0 0.0
    %298 = vmatpush1.msra.mxu0 0.0
    %299 = vmatprep.mubr.f32.mxu0 0.0
    %300 = vmatmul.mubr.f32.gmra.mrb[0].mxu0 %v77
    %v301 = vpop.f32.mrb[0].mxu0
    %v302 = vadd.f32 %v155, %v301
    %v303 = vpop.f32.mrb[0].mxu0
    %v304 = vadd.f32 %v159, %v303
    %305 = vdwg.mxu0
    %306 = vst [vmem:[#allocation2] sm:$0xff] %v231
    %307 = vst [vmem:[#allocation2 + $0x8] sm:$0xff] %v233
    %308 = vst [vmem:[#allocation2 + $0x10] sm:$0xff] %v302
    %309 = vst [vmem:[#allocation2 + $0x18] sm:$0xff] %v304
    %v310 = vld [vmem:[#allocation9] sm:$0xff]
    %v311 = vld [vmem:[#allocation9 + $0x8] sm:$0xff]
    %v312 = vld [vmem:[#allocation9 + $0x10] sm:$0xff]
    %v313 = vld [vmem:[#allocation9 + $0x18] sm:$0xff]
    %v314 = vld [vmem:[#allocation9 + $0x20] sm:$0xff]
    %v315 = vld [vmem:[#allocation9 + $0x28] sm:$0xff]
    %v316 = vld [vmem:[#allocation9 + $0x30] sm:$0xff]
    %v317 = vld [vmem:[#allocation9 + $0x38] sm:$0xff]
    %v318 = vld [vmem:[#allocation9 + $0x40] sm:$0xff]
    %v319 = vld [vmem:[#allocation9 + $0x48] sm:$0xff]
    %v320 = vld [vmem:[#allocation9 + $0x50] sm:$0xff]
    %v321 = vld [vmem:[#allocation9 + $0x58] sm:$0xff]
    %v322 = vld [vmem:[#allocation9 + $0x60] sm:$0xff]
    %v323 = vld [vmem:[#allocation9 + $0x68] sm:$0xff]
    %v324 = vld [vmem:[#allocation9 + $0x70] sm:$0xff]
    %v325 = vld [vmem:[#allocation9 + $0x78] sm:$0xff]
    %v326 = vld [vmem:[#allocation9 + $0x80] sm:$0xff]
    %v327 = vld [vmem:[#allocation9 + $0x88] sm:$0xff]
    %v328 = vld [vmem:[#allocation9 + $0x90] sm:$0xff]
    %v329 = vld [vmem:[#allocation9 + $0x98] sm:$0xff]
    %v330 = vld [vmem:[#allocation9 + $0xa0] sm:$0xff]
    %v331 = vld [vmem:[#allocation9 + $0xa8] sm:$0xff]
    %v332 = vld [vmem:[#allocation9 + $0xb0] sm:$0xff]
    %v333 = vld [vmem:[#allocation9 + $0xb8] sm:$0xff]
    %v334 = vld [vmem:[#allocation9 + $0xc0] sm:$0xff]
    %v335 = vld [vmem:[#allocation9 + $0xc8] sm:$0xff]
    %v336 = vld [vmem:[#allocation9 + $0xd0] sm:$0xff]
    %v337 = vld [vmem:[#allocation9 + $0xd8] sm:$0xff]
    %v338 = vld [vmem:[#allocation9 + $0xe0] sm:$0xff]
    %v339 = vld [vmem:[#allocation9 + $0xe8] sm:$0xff]
    %v340 = vld [vmem:[#allocation9 + $0xf0] sm:$0xff]
    %v341 = vld [vmem:[#allocation9 + $0xf8] sm:$0xff]
    %v342 = vld [vmem:[#allocation9 + $0x100] sm:$0xff]
    %v343 = vld [vmem:[#allocation9 + $0x108] sm:$0xff]
    %v344 = vld [vmem:[#allocation9 + $0x110] sm:$0xff]
    %v345 = vld [vmem:[#allocation9 + $0x118] sm:$0xff]
    %v346 = vld [vmem:[#allocation9 + $0x120] sm:$0xff]
    %v347 = vld [vmem:[#allocation9 + $0x128] sm:$0xff]
    %v348 = vld [vmem:[#allocation9 + $0x130] sm:$0xff]
    %v349 = vld [vmem:[#allocation9 + $0x138] sm:$0xff]
    %v350 = vld [vmem:[#allocation9 + $0x140] sm:$0xff]
    %v351 = vld [vmem:[#allocation9 + $0x148] sm:$0xff]
    %v352 = vld [vmem:[#allocation9 + $0x150] sm:$0xff]
    %v353 = vld [vmem:[#allocation9 + $0x158] sm:$0xff]
    %v354 = vld [vmem:[#allocation9 + $0x160] sm:$0xff]
    %v355 = vld [vmem:[#allocation9 + $0x168] sm:$0xff]
    %v356 = vld [vmem:[#allocation9 + $0x170] sm:$0xff]
    %v357 = vld [vmem:[#allocation9 + $0x178] sm:$0xff]
    %v358 = vld [vmem:[#allocation9 + $0x180] sm:$0xff]
    %v359 = vld [vmem:[#allocation9 + $0x188] sm:$0xff]
    %v360 = vld [vmem:[#allocation9 + $0x190] sm:$0xff]
    %v361 = vld [vmem:[#allocation9 + $0x198] sm:$0xff]
    %v362 = vld [vmem:[#allocation9 + $0x1a0] sm:$0xff]
    %v363 = vld [vmem:[#allocation9 + $0x1a8] sm:$0xff]
    %v364 = vld [vmem:[#allocation9 + $0x1b0] sm:$0xff]
    %v365 = vld [vmem:[#allocation9 + $0x1b8] sm:$0xff]
    %v366 = vld [vmem:[#allocation9 + $0x1c0] sm:$0xff]
    %v367 = vld [vmem:[#allocation9 + $0x1c8] sm:$0xff]
    %v368 = vld [vmem:[#allocation9 + $0x1d0] sm:$0xff]
    %v369 = vld [vmem:[#allocation9 + $0x1d8] sm:$0xff]
    %v370 = vld [vmem:[#allocation9 + $0x1e0] sm:$0xff]
    %v371 = vld [vmem:[#allocation9 + $0x1e8] sm:$0xff]
    %v372 = vld [vmem:[#allocation9 + $0x1f0] sm:$0xff]
    %v373 = vld [vmem:[#allocation9 + $0x1f8] sm:$0xff]
    %v374 = vld [vmem:[#allocation2] ss:$8 sm:$0xf]
    %v376 = vlaneseq
    %v377 = vshrl.u32 %v376, 7
    %v378 = vsub.s32 0, %v377
    %v379 = vrot.slane %v374, %v378
    %v380 = vlaneseq
    %v381 = vshrl.u32 %v380, 7
    %v382 = vsub.s32 1, %v381
    %v383 = vrot.slane %v374, %v382
    %v384 = vlaneseq
    %v385 = vshrl.u32 %v384, 7
    %v386 = vsub.s32 2, %v385
    %v387 = vrot.slane %v374, %v386
    %v388 = vlaneseq
    %v389 = vshrl.u32 %v388, 7
    %v390 = vsub.s32 3, %v389
    %v391 = vrot.slane %v374, %v390
    %396 = vmatprep.subr.mxu0 %v311
    %397 = vmatpush1.msra.mxu0 %v310
    %398 = vmatprep.subr.mxu0 %v315
    %399 = vmatpush1.msra.mxu0 %v314
    %400 = vmatprep.subr.mxu0 %v319
    %401 = vmatpush1.msra.mxu0 %v318
    %402 = vmatprep.subr.mxu0 %v323
    %403 = vmatpush1.msra.mxu0 %v322
    %404 = vmatprep.subr.mxu0 %v327
    %405 = vmatpush1.msra.mxu0 %v326
    %406 = vmatprep.subr.mxu0 %v331
    %407 = vmatpush1.msra.mxu0 %v330
    %408 = vmatprep.subr.mxu0 %v335
    %409 = vmatpush1.msra.mxu0 %v334
    %410 = vmatprep.subr.mxu0 %v339
    %411 = vmatpush1.msra.mxu0 %v338
    %412 = vmatprep.subr.mxu0 %v343
    %413 = vmatpush1.msra.mxu0 %v342
    %414 = vmatprep.subr.mxu0 %v347
    %415 = vmatpush1.msra.mxu0 %v346
    %416 = vmatprep.subr.mxu0 %v351
    %417 = vmatpush1.msra.mxu0 %v350
    %418 = vmatprep.subr.mxu0 %v355
    %419 = vmatpush1.msra.mxu0 %v354
    %420 = vmatprep.subr.mxu0 %v359
    %421 = vmatpush1.msra.mxu0 %v358
    %422 = vmatprep.subr.mxu0 %v363
    %423 = vmatpush1.msra.mxu0 %v362
    %424 = vmatprep.subr.mxu0 %v367
    %425 = vmatpush1.msra.mxu0 %v366
    %426 = vmatprep.subr.mxu0 %v371
    %427 = vmatpush1.msra.mxu0 %v370
    %428 = vmatprep.subr.mxu0 0.0
    %429 = vmatpush1.msra.mxu0 0.0
    %430 = vmatprep.subr.mxu0 0.0
    %431 = vmatpush1.msra.mxu0 0.0
    %432 = vmatprep.subr.mxu0 0.0
    %433 = vmatpush1.msra.mxu0 0.0
    %434 = vmatprep.subr.mxu0 0.0
    %435 = vmatpush1.msra.mxu0 0.0
    %436 = vmatprep.subr.mxu0 0.0
    %437 = vmatpush1.msra.mxu0 0.0
    %438 = vmatprep.subr.mxu0 0.0
    %439 = vmatpush1.msra.mxu0 0.0
    %440 = vmatprep.subr.mxu0 0.0
    %441 = vmatpush1.msra.mxu0 0.0
    %442 = vmatprep.subr.mxu0 0.0
    %443 = vmatpush1.msra.mxu0 0.0
    %444 = vmatprep.subr.mxu0 0.0
    %445 = vmatpush1.msra.mxu0 0.0
    %446 = vmatprep.subr.mxu0 0.0
    %447 = vmatpush1.msra.mxu0 0.0
    %448 = vmatprep.subr.mxu0 0.0
    %449 = vmatpush1.msra.mxu0 0.0
    %450 = vmatprep.subr.mxu0 0.0
    %451 = vmatpush1.msra.mxu0 0.0
    %452 = vmatprep.subr.mxu0 0.0
    %453 = vmatpush1.msra.mxu0 0.0
    %454 = vmatprep.subr.mxu0 0.0
    %455 = vmatpush1.msra.mxu0 0.0
    %456 = vmatprep.subr.mxu0 0.0
    %457 = vmatpush1.msra.mxu0 0.0
    %458 = vmatprep.subr.mxu0 0.0
    %459 = vmatpush1.msra.mxu0 0.0
    %460 = vmatprep.mubr.f32.mxu0 0.0
    %461 = vmatmul.mubr.f32.gmra.mrb[0].mxu0 0.0
    %v462 = vpop.f32.mrb[0].mxu0
    %v463 = vadd.f32 %v379, %v462
    %v464 = vpop.f32.mrb[0].mxu0
    %v465 = vadd.f32 %v383, %v464
    %466 = vdwg.mxu0
    %467 = vmatprep.subr.mxu0 %v313
    %468 = vmatpush1.msra.mxu0 %v312
    %469 = vmatprep.subr.mxu0 %v317
    %470 = vmatpush1.msra.mxu0 %v316
    %471 = vmatprep.subr.mxu0 %v321
    %472 = vmatpush1.msra.mxu0 %v320
    %473 = vmatprep.subr.mxu0 %v325
    %474 = vmatpush1.msra.mxu0 %v324
    %475 = vmatprep.subr.mxu0 %v329
    %476 = vmatpush1.msra.mxu0 %v328
    %477 = vmatprep.subr.mxu0 %v333
    %478 = vmatpush1.msra.mxu0 %v332
    %479 = vmatprep.subr.mxu0 %v337
    %480 = vmatpush1.msra.mxu0 %v336
    %481 = vmatprep.subr.mxu0 %v341
    %482 = vmatpush1.msra.mxu0 %v340
    %483 = vmatprep.subr.mxu0 %v345
    %484 = vmatpush1.msra.mxu0 %v344
    %485 = vmatprep.subr.mxu0 %v349
    %486 = vmatpush1.msra.mxu0 %v348
    %487 = vmatprep.subr.mxu0 %v353
    %488 = vmatpush1.msra.mxu0 %v352
    %489 = vmatprep.subr.mxu0 %v357
    %490 = vmatpush1.msra.mxu0 %v356
    %491 = vmatprep.subr.mxu0 %v361
    %492 = vmatpush1.msra.mxu0 %v360
    %493 = vmatprep.subr.mxu0 %v365
    %494 = vmatpush1.msra.mxu0 %v364
    %495 = vmatprep.subr.mxu0 %v369
    %496 = vmatpush1.msra.mxu0 %v368
    %497 = vmatprep.subr.mxu0 %v373
    %498 = vmatpush1.msra.mxu0 %v372
    %499 = vmatprep.subr.mxu0 0.0
    %500 = vmatpush1.msra.mxu0 0.0
    %501 = vmatprep.subr.mxu0 0.0
    %502 = vmatpush1.msra.mxu0 0.0
    %503 = vmatprep.subr.mxu0 0.0
    %504 = vmatpush1.msra.mxu0 0.0
    %505 = vmatprep.subr.mxu0 0.0
    %506 = vmatpush1.msra.mxu0 0.0
    %507 = vmatprep.subr.mxu0 0.0
    %508 = vmatpush1.msra.mxu0 0.0
    %509 = vmatprep.subr.mxu0 0.0
    %510 = vmatpush1.msra.mxu0 0.0
    %511 = vmatprep.subr.mxu0 0.0
    %512 = vmatpush1.msra.mxu0 0.0
    %513 = vmatprep.subr.mxu0 0.0
    %514 = vmatpush1.msra.mxu0 0.0
    %515 = vmatprep.subr.mxu0 0.0
    %516 = vmatpush1.msra.mxu0 0.0
    %517 = vmatprep.subr.mxu0 0.0
    %518 = vmatpush1.msra.mxu0 0.0
    %519 = vmatprep.subr.mxu0 0.0
    %520 = vmatpush1.msra.mxu0 0.0
    %521 = vmatprep.subr.mxu0 0.0
    %522 = vmatpush1.msra.mxu0 0.0
    %523 = vmatprep.subr.mxu0 0.0
    %524 = vmatpush1.msra.mxu0 0.0
    %525 = vmatprep.subr.mxu0 0.0
    %526 = vmatpush1.msra.mxu0 0.0
    %527 = vmatprep.subr.mxu0 0.0
    %528 = vmatpush1.msra.mxu0 0.0
    %529 = vmatprep.subr.mxu0 0.0
    %530 = vmatpush1.msra.mxu0 0.0
    %531 = vmatprep.mubr.f32.mxu0 0.0
    %532 = vmatmul.mubr.f32.gmra.mrb[0].mxu0 0.0
    %v533 = vpop.f32.mrb[0].mxu0
    %v534 = vadd.f32 %v387, %v533
    %v535 = vpop.f32.mrb[0].mxu0
    %v536 = vadd.f32 %v391, %v535
    %537 = vdwg.mxu0
    %v538 = vxor.u32 %v463, 2147483648
    %v539 = vmul.f32 %v538, 1.442695
    %v540 = vpow.pop %v539
    %v541 = vadd.f32 %v540, 1.0
    %v542 = vrcp.pop %v541
    %v543 = vmul.f32 1.0, %v542
    %v544 = vxor.u32 %v465, 2147483648
    %v545 = vmul.f32 %v544, 1.442695
    %v546 = vpow.pop %v545
    %v547 = vadd.f32 %v546, 1.0
    %v548 = vrcp.pop %v547
    %v549 = vmul.f32 1.0, %v548
    %v550 = vtanh.pop %v534
    %v551 = vxor.u32 %v536, 2147483648
    %v552 = vmul.f32 %v551, 1.442695
    %v553 = vpow.pop %v552
    %v554 = vadd.f32 %v553, 1.0
    %v555 = vrcp.pop %v554
    %v556 = vmul.f32 1.0, %v555
    %v557 = vmul.f32 %v549, 0.0
    %v558 = vmul.f32 %v543, %v550
    %v559 = vadd.f32 %v557, %v558
    %v560 = vtanh.pop %v559
    %v561 = vmul.f32 %v556, %v560
    %562 = vst [vmem:[#allocation3] sm:$0x1] %v561
    %v563 = vld [vmem:[#allocation9] sm:$0xff]
    %v564 = vld [vmem:[#allocation9 + $0x8] sm:$0xff]
    %v565 = vld [vmem:[#allocation9 + $0x10] sm:$0xff]
    %v566 = vld [vmem:[#allocation9 + $0x18] sm:$0xff]
    %v567 = vld [vmem:[#allocation9 + $0x20] sm:$0xff]
    %v568 = vld [vmem:[#allocation9 + $0x28] sm:$0xff]
    %v569 = vld [vmem:[#allocation9 + $0x30] sm:$0xff]
    %v570 = vld [vmem:[#allocation9 + $0x38] sm:$0xff]
    %v571 = vld [vmem:[#allocation9 + $0x40] sm:$0xff]
    %v572 = vld [vmem:[#allocation9 + $0x48] sm:$0xff]
    %v573 = vld [vmem:[#allocation9 + $0x50] sm:$0xff]
    %v574 = vld [vmem:[#allocation9 + $0x58] sm:$0xff]
    %v575 = vld [vmem:[#allocation9 + $0x60] sm:$0xff]
    %v576 = vld [vmem:[#allocation9 + $0x68] sm:$0xff]
    %v577 = vld [vmem:[#allocation9 + $0x70] sm:$0xff]
    %v578 = vld [vmem:[#allocation9 + $0x78] sm:$0xff]
    %v579 = vld [vmem:[#allocation9 + $0x80] sm:$0xff]
    %v580 = vld [vmem:[#allocation9 + $0x88] sm:$0xff]
    %v581 = vld [vmem:[#allocation9 + $0x90] sm:$0xff]
    %v582 = vld [vmem:[#allocation9 + $0x98] sm:$0xff]
    %v583 = vld [vmem:[#allocation9 + $0xa0] sm:$0xff]
    %v584 = vld [vmem:[#allocation9 + $0xa8] sm:$0xff]
    %v585 = vld [vmem:[#allocation9 + $0xb0] sm:$0xff]
    %v586 = vld [vmem:[#allocation9 + $0xb8] sm:$0xff]
    %v587 = vld [vmem:[#allocation9 + $0xc0] sm:$0xff]
    %v588 = vld [vmem:[#allocation9 + $0xc8] sm:$0xff]
    %v589 = vld [vmem:[#allocation9 + $0xd0] sm:$0xff]
    %v590 = vld [vmem:[#allocation9 + $0xd8] sm:$0xff]
    %v591 = vld [vmem:[#allocation9 + $0xe0] sm:$0xff]
    %v592 = vld [vmem:[#allocation9 + $0xe8] sm:$0xff]
    %v593 = vld [vmem:[#allocation9 + $0xf0] sm:$0xff]
    %v594 = vld [vmem:[#allocation9 + $0xf8] sm:$0xff]
    %v595 = vld [vmem:[#allocation9 + $0x100] sm:$0xff]
    %v596 = vld [vmem:[#allocation9 + $0x108] sm:$0xff]
    %v597 = vld [vmem:[#allocation9 + $0x110] sm:$0xff]
    %v598 = vld [vmem:[#allocation9 + $0x118] sm:$0xff]
    %v599 = vld [vmem:[#allocation9 + $0x120] sm:$0xff]
    %v600 = vld [vmem:[#allocation9 + $0x128] sm:$0xff]
    %v601 = vld [vmem:[#allocation9 + $0x130] sm:$0xff]
    %v602 = vld [vmem:[#allocation9 + $0x138] sm:$0xff]
    %v603 = vld [vmem:[#allocation9 + $0x140] sm:$0xff]
    %v604 = vld [vmem:[#allocation9 + $0x148] sm:$0xff]
    %v605 = vld [vmem:[#allocation9 + $0x150] sm:$0xff]
    %v606 = vld [vmem:[#allocation9 + $0x158] sm:$0xff]
    %v607 = vld [vmem:[#allocation9 + $0x160] sm:$0xff]
    %v608 = vld [vmem:[#allocation9 + $0x168] sm:$0xff]
    %v609 = vld [vmem:[#allocation9 + $0x170] sm:$0xff]
    %v610 = vld [vmem:[#allocation9 + $0x178] sm:$0xff]
    %v611 = vld [vmem:[#allocation9 + $0x180] sm:$0xff]
    %v612 = vld [vmem:[#allocation9 + $0x188] sm:$0xff]
    %v613 = vld [vmem:[#allocation9 + $0x190] sm:$0xff]
    %v614 = vld [vmem:[#allocation9 + $0x198] sm:$0xff]
    %v615 = vld [vmem:[#allocation9 + $0x1a0] sm:$0xff]
    %v616 = vld [vmem:[#allocation9 + $0x1a8] sm:$0xff]
    %v617 = vld [vmem:[#allocation9 + $0x1b0] sm:$0xff]
    %v618 = vld [vmem:[#allocation9 + $0x1b8] sm:$0xff]
    %v619 = vld [vmem:[#allocation9 + $0x1c0] sm:$0xff]
    %v620 = vld [vmem:[#allocation9 + $0x1c8] sm:$0xff]
    %v621 = vld [vmem:[#allocation9 + $0x1d0] sm:$0xff]
    %v622 = vld [vmem:[#allocation9 + $0x1d8] sm:$0xff]
    %v623 = vld [vmem:[#allocation9 + $0x1e0] sm:$0xff]
    %v624 = vld [vmem:[#allocation9 + $0x1e8] sm:$0xff]
    %v625 = vld [vmem:[#allocation9 + $0x1f0] sm:$0xff]
    %v626 = vld [vmem:[#allocation9 + $0x1f8] sm:$0xff]
    %s627 = scalar_lea.vmem [#allocation2], 1
    %v628 = vld [vmem:[%s627] ss:$8 sm:$0xf]
    %v630 = vlaneseq
    %v631 = vshrl.u32 %v630, 7
    %v632 = vsub.s32 0, %v631
    %v633 = vrot.slane %v628, %v632
    %v634 = vlaneseq
    %v635 = vshrl.u32 %v634, 7
    %v636 = vsub.s32 1, %v635
    %v637 = vrot.slane %v628, %v636
    %v638 = vlaneseq
    %v639 = vshrl.u32 %v638, 7
    %v640 = vsub.s32 2, %v639
    %v641 = vrot.slane %v628, %v640
    %v642 = vlaneseq
    %v643 = vshrl.u32 %v642, 7
    %v644 = vsub.s32 3, %v643
    %v645 = vrot.slane %v628, %v644
    %650 = vmatprep.subr.mxu0 %v564
    %651 = vmatpush1.msra.mxu0 %v563
    %652 = vmatprep.subr.mxu0 %v568
    %653 = vmatpush1.msra.mxu0 %v567
    %654 = vmatprep.subr.mxu0 %v572
    %655 = vmatpush1.msra.mxu0 %v571
    %656 = vmatprep.subr.mxu0 %v576
    %657 = vmatpush1.msra.mxu0 %v575
    %658 = vmatprep.subr.mxu0 %v580
    %659 = vmatpush1.msra.mxu0 %v579
    %660 = vmatprep.subr.mxu0 %v584
    %661 = vmatpush1.msra.mxu0 %v583
    %662 = vmatprep.subr.mxu0 %v588
    %663 = vmatpush1.msra.mxu0 %v587
    %664 = vmatprep.subr.mxu0 %v592
    %665 = vmatpush1.msra.mxu0 %v591
    %666 = vmatprep.subr.mxu0 %v596
    %667 = vmatpush1.msra.mxu0 %v595
    %668 = vmatprep.subr.mxu0 %v600
    %669 = vmatpush1.msra.mxu0 %v599
    %670 = vmatprep.subr.mxu0 %v604
    %671 = vmatpush1.msra.mxu0 %v603
    %672 = vmatprep.subr.mxu0 %v608
    %673 = vmatpush1.msra.mxu0 %v607
    %674 = vmatprep.subr.mxu0 %v612
    %675 = vmatpush1.msra.mxu0 %v611
    %676 = vmatprep.subr.mxu0 %v616
    %677 = vmatpush1.msra.mxu0 %v615
    %678 = vmatprep.subr.mxu0 %v620
    %679 = vmatpush1.msra.mxu0 %v619
    %680 = vmatprep.subr.mxu0 %v624
    %681 = vmatpush1.msra.mxu0 %v623
    %682 = vmatprep.subr.mxu0 0.0
    %683 = vmatpush1.msra.mxu0 0.0
    %684 = vmatprep.subr.mxu0 0.0
    %685 = vmatpush1.msra.mxu0 0.0
    %686 = vmatprep.subr.mxu0 0.0
    %687 = vmatpush1.msra.mxu0 0.0
    %688 = vmatprep.subr.mxu0 0.0
    %689 = vmatpush1.msra.mxu0 0.0
    %690 = vmatprep.subr.mxu0 0.0
    %691 = vmatpush1.msra.mxu0 0.0
    %692 = vmatprep.subr.mxu0 0.0
    %693 = vmatpush1.msra.mxu0 0.0
    %694 = vmatprep.subr.mxu0 0.0
    %695 = vmatpush1.msra.mxu0 0.0
    %696 = vmatprep.subr.mxu0 0.0
    %697 = vmatpush1.msra.mxu0 0.0
    %698 = vmatprep.subr.mxu0 0.0
    %699 = vmatpush1.msra.mxu0 0.0
    %700 = vmatprep.subr.mxu0 0.0
    %701 = vmatpush1.msra.mxu0 0.0
    %702 = vmatprep.subr.mxu0 0.0
    %703 = vmatpush1.msra.mxu0 0.0
    %704 = vmatprep.subr.mxu0 0.0
    %705 = vmatpush1.msra.mxu0 0.0
    %706 = vmatprep.subr.mxu0 0.0
    %707 = vmatpush1.msra.mxu0 0.0
    %708 = vmatprep.subr.mxu0 0.0
    %709 = vmatpush1.msra.mxu0 0.0
    %710 = vmatprep.subr.mxu0 0.0
    %711 = vmatpush1.msra.mxu0 0.0
    %712 = vmatprep.subr.mxu0 0.0
    %713 = vmatpush1.msra.mxu0 0.0
    %714 = vmatprep.mubr.f32.mxu0 0.0
    %715 = vmatmul.mubr.f32.gmra.mrb[0].mxu0 %v561
    %v716 = vpop.f32.mrb[0].mxu0
    %v717 = vadd.f32 %v633, %v716
    %v718 = vpop.f32.mrb[0].mxu0
    %v719 = vadd.f32 %v637, %v718
    %720 = vdwg.mxu0
    %721 = vmatprep.subr.mxu0 %v566
    %722 = vmatpush1.msra.mxu0 %v565
    %723 = vmatprep.subr.mxu0 %v570
    %724 = vmatpush1.msra.mxu0 %v569
    %725 = vmatprep.subr.mxu0 %v574
    %726 = vmatpush1.msra.mxu0 %v573
    %727 = vmatprep.subr.mxu0 %v578
    %728 = vmatpush1.msra.mxu0 %v577
    %729 = vmatprep.subr.mxu0 %v582
    %730 = vmatpush1.msra.mxu0 %v581
    %731 = vmatprep.subr.mxu0 %v586
    %732 = vmatpush1.msra.mxu0 %v585
    %733 = vmatprep.subr.mxu0 %v590
    %734 = vmatpush1.msra.mxu0 %v589
    %735 = vmatprep.subr.mxu0 %v594
    %736 = vmatpush1.msra.mxu0 %v593
    %737 = vmatprep.subr.mxu0 %v598
    %738 = vmatpush1.msra.mxu0 %v597
    %739 = vmatprep.subr.mxu0 %v602
    %740 = vmatpush1.msra.mxu0 %v601
    %741 = vmatprep.subr.mxu0 %v606
    %742 = vmatpush1.msra.mxu0 %v605
    %743 = vmatprep.subr.mxu0 %v610
    %744 = vmatpush1.msra.mxu0 %v609
    %745 = vmatprep.subr.mxu0 %v614
    %746 = vmatpush1.msra.mxu0 %v613
    %747 = vmatprep.subr.mxu0 %v618
    %748 = vmatpush1.msra.mxu0 %v617
    %749 = vmatprep.subr.mxu0 %v622
    %750 = vmatpush1.msra.mxu0 %v621
    %751 = vmatprep.subr.mxu0 %v626
    %752 = vmatpush1.msra.mxu0 %v625
    %753 = vmatprep.subr.mxu0 0.0
    %754 = vmatpush1.msra.mxu0 0.0
    %755 = vmatprep.subr.mxu0 0.0
    %756 = vmatpush1.msra.mxu0 0.0
    %757 = vmatprep.subr.mxu0 0.0
    %758 = vmatpush1.msra.mxu0 0.0
    %759 = vmatprep.subr.mxu0 0.0
    %760 = vmatpush1.msra.mxu0 0.0
    %761 = vmatprep.subr.mxu0 0.0
    %762 = vmatpush1.msra.mxu0 0.0
    %763 = vmatprep.subr.mxu0 0.0
    %764 = vmatpush1.msra.mxu0 0.0
    %765 = vmatprep.subr.mxu0 0.0
    %766 = vmatpush1.msra.mxu0 0.0
    %767 = vmatprep.subr.mxu0 0.0
    %768 = vmatpush1.msra.mxu0 0.0
    %769 = vmatprep.subr.mxu0 0.0
    %770 = vmatpush1.msra.mxu0 0.0
    %771 = vmatprep.subr.mxu0 0.0
    %772 = vmatpush1.msra.mxu0 0.0
    %773 = vmatprep.subr.mxu0 0.0
    %774 = vmatpush1.msra.mxu0 0.0
    %775 = vmatprep.subr.mxu0 0.0
    %776 = vmatpush1.msra.mxu0 0.0
    %777 = vmatprep.subr.mxu0 0.0
    %778 = vmatpush1.msra.mxu0 0.0
    %779 = vmatprep.subr.mxu0 0.0
    %780 = vmatpush1.msra.mxu0 0.0
    %781 = vmatprep.subr.mxu0 0.0
    %782 = vmatpush1.msra.mxu0 0.0
    %783 = vmatprep.subr.mxu0 0.0
    %784 = vmatpush1.msra.mxu0 0.0
    %785 = vmatprep.mubr.f32.mxu0 0.0
    %786 = vmatmul.mubr.f32.gmra.mrb[0].mxu0 %v561
    %v787 = vpop.f32.mrb[0].mxu0
    %v788 = vadd.f32 %v641, %v787
    %v789 = vpop.f32.mrb[0].mxu0
    %v790 = vadd.f32 %v645, %v789
    %791 = vdwg.mxu0
    %v792 = vxor.u32 %v717, 2147483648
    %v793 = vmul.f32 %v792, 1.442695
    %v794 = vpow.pop %v793
    %v795 = vadd.f32 %v794, 1.0
    %v796 = vrcp.pop %v795
    %v797 = vmul.f32 1.0, %v796
    %v798 = vxor.u32 %v719, 2147483648
    %v799 = vmul.f32 %v798, 1.442695
    %v800 = vpow.pop %v799
    %v801 = vadd.f32 %v800, 1.0
    %v802 = vrcp.pop %v801
    %v803 = vmul.f32 1.0, %v802
    %v804 = vtanh.pop %v788
    %v805 = vxor.u32 %v790, 2147483648
    %v806 = vmul.f32 %v805, 1.442695
    %v807 = vpow.pop %v806
    %v808 = vadd.f32 %v807, 1.0
    %v809 = vrcp.pop %v808
    %v810 = vmul.f32 1.0, %v809
    %v811 = vmul.f32 %v803, %v559
    %v812 = vmul.f32 %v797, %v804
    %v813 = vadd.f32 %v811, %v812
    %v814 = vtanh.pop %v813
    %v815 = vmul.f32 %v810, %v814
    %816 = vst [vmem:[#allocation3 + $0x1] sm:$0x1] %v815
    %v817 = vld [vmem:[#allocation9] sm:$0xff]
    %v818 = vld [vmem:[#allocation9 + $0x8] sm:$0xff]
    %v819 = vld [vmem:[#allocation9 + $0x10] sm:$0xff]
    %v820 = vld [vmem:[#allocation9 + $0x18] sm:$0xff]
    %v821 = vld [vmem:[#allocation9 + $0x20] sm:$0xff]
    %v822 = vld [vmem:[#allocation9 + $0x28] sm:$0xff]
    %v823 = vld [vmem:[#allocation9 + $0x30] sm:$0xff]
    %v824 = vld [vmem:[#allocation9 + $0x38] sm:$0xff]
    %v825 = vld [vmem:[#allocation9 + $0x40] sm:$0xff]
    %v826 = vld [vmem:[#allocation9 + $0x48] sm:$0xff]
    %v827 = vld [vmem:[#allocation9 + $0x50] sm:$0xff]
    %v828 = vld [vmem:[#allocation9 + $0x58] sm:$0xff]
    %v829 = vld [vmem:[#allocation9 + $0x60] sm:$0xff]
    %v830 = vld [vmem:[#allocation9 + $0x68] sm:$0xff]
    %v831 = vld [vmem:[#allocation9 + $0x70] sm:$0xff]
    %v832 = vld [vmem:[#allocation9 + $0x78] sm:$0xff]
    %v833 = vld [vmem:[#allocation9 + $0x80] sm:$0xff]
    %v834 = vld [vmem:[#allocation9 + $0x88] sm:$0xff]
    %v835 = vld [vmem:[#allocation9 + $0x90] sm:$0xff]
    %v836 = vld [vmem:[#allocation9 + $0x98] sm:$0xff]
    %v837 = vld [vmem:[#allocation9 + $0xa0] sm:$0xff]
    %v838 = vld [vmem:[#allocation9 + $0xa8] sm:$0xff]
    %v839 = vld [vmem:[#allocation9 + $0xb0] sm:$0xff]
    %v840 = vld [vmem:[#allocation9 + $0xb8] sm:$0xff]
    %v841 = vld [vmem:[#allocation9 + $0xc0] sm:$0xff]
    %v842 = vld [vmem:[#allocation9 + $0xc8] sm:$0xff]
    %v843 = vld [vmem:[#allocation9 + $0xd0] sm:$0xff]
    %v844 = vld [vmem:[#allocation9 + $0xd8] sm:$0xff]
    %v845 = vld [vmem:[#allocation9 + $0xe0] sm:$0xff]
    %v846 = vld [vmem:[#allocation9 + $0xe8] sm:$0xff]
    %v847 = vld [vmem:[#allocation9 + $0xf0] sm:$0xff]
    %v848 = vld [vmem:[#allocation9 + $0xf8] sm:$0xff]
    %v849 = vld [vmem:[#allocation9 + $0x100] sm:$0xff]
    %v850 = vld [vmem:[#allocation9 + $0x108] sm:$0xff]
    %v851 = vld [vmem:[#allocation9 + $0x110] sm:$0xff]
    %v852 = vld [vmem:[#allocation9 + $0x118] sm:$0xff]
    %v853 = vld [vmem:[#allocation9 + $0x120] sm:$0xff]
    %v854 = vld [vmem:[#allocation9 + $0x128] sm:$0xff]
    %v855 = vld [vmem:[#allocation9 + $0x130] sm:$0xff]
    %v856 = vld [vmem:[#allocation9 + $0x138] sm:$0xff]
    %v857 = vld [vmem:[#allocation9 + $0x140] sm:$0xff]
    %v858 = vld [vmem:[#allocation9 + $0x148] sm:$0xff]
    %v859 = vld [vmem:[#allocation9 + $0x150] sm:$0xff]
    %v860 = vld [vmem:[#allocation9 + $0x158] sm:$0xff]
    %v861 = vld [vmem:[#allocation9 + $0x160] sm:$0xff]
    %v862 = vld [vmem:[#allocation9 + $0x168] sm:$0xff]
    %v863 = vld [vmem:[#allocation9 + $0x170] sm:$0xff]
    %v864 = vld [vmem:[#allocation9 + $0x178] sm:$0xff]
    %v865 = vld [vmem:[#allocation9 + $0x180] sm:$0xff]
    %v866 = vld [vmem:[#allocation9 + $0x188] sm:$0xff]
    %v867 = vld [vmem:[#allocation9 + $0x190] sm:$0xff]
    %v868 = vld [vmem:[#allocation9 + $0x198] sm:$0xff]
    %v869 = vld [vmem:[#allocation9 + $0x1a0] sm:$0xff]
    %v870 = vld [vmem:[#allocation9 + $0x1a8] sm:$0xff]
    %v871 = vld [vmem:[#allocation9 + $0x1b0] sm:$0xff]
    %v872 = vld [vmem:[#allocation9 + $0x1b8] sm:$0xff]
    %v873 = vld [vmem:[#allocation9 + $0x1c0] sm:$0xff]
    %v874 = vld [vmem:[#allocation9 + $0x1c8] sm:$0xff]
    %v875 = vld [vmem:[#allocation9 + $0x1d0] sm:$0xff]
    %v876 = vld [vmem:[#allocation9 + $0x1d8] sm:$0xff]
    %v877 = vld [vmem:[#allocation9 + $0x1e0] sm:$0xff]
    %v878 = vld [vmem:[#allocation9 + $0x1e8] sm:$0xff]
    %v879 = vld [vmem:[#allocation9 + $0x1f0] sm:$0xff]
    %v880 = vld [vmem:[#allocation9 + $0x1f8] sm:$0xff]
    %s881 = scalar_lea.vmem [#allocation2], 2
    %v882 = vld [vmem:[%s881] ss:$8 sm:$0xf]
    %v884 = vlaneseq
    %v885 = vshrl.u32 %v884, 7
    %v886 = vsub.s32 0, %v885
    %v887 = vrot.slane %v882, %v886
    %v888 = vlaneseq
    %v889 = vshrl.u32 %v888, 7
    %v890 = vsub.s32 1, %v889
    %v891 = vrot.slane %v882, %v890
    %v892 = vlaneseq
    %v893 = vshrl.u32 %v892, 7
    %v894 = vsub.s32 2, %v893
    %v895 = vrot.slane %v882, %v894
    %v896 = vlaneseq
    %v897 = vshrl.u32 %v896, 7
    %v898 = vsub.s32 3, %v897
    %v899 = vrot.slane %v882, %v898
    %904 = vmatprep.subr.mxu0 %v818
    %905 = vmatpush1.msra.mxu0 %v817
    %906 = vmatprep.subr.mxu0 %v822
    %907 = vmatpush1.msra.mxu0 %v821
    %908 = vmatprep.subr.mxu0 %v826
    %909 = vmatpush1.msra.mxu0 %v825
    %910 = vmatprep.subr.mxu0 %v830
    %911 = vmatpush1.msra.mxu0 %v829
    %912 = vmatprep.subr.mxu0 %v834
    %913 = vmatpush1.msra.mxu0 %v833
    %914 = vmatprep.subr.mxu0 %v838
    %915 = vmatpush1.msra.mxu0 %v837
    %916 = vmatprep.subr.mxu0 %v842
    %917 = vmatpush1.msra.mxu0 %v841
    %918 = vmatprep.subr.mxu0 %v846
    %919 = vmatpush1.msra.mxu0 %v845
    %920 = vmatprep.subr.mxu0 %v850
    %921 = vmatpush1.msra.mxu0 %v849
    %922 = vmatprep.subr.mxu0 %v854
    %923 = vmatpush1.msra.mxu0 %v853
    %924 = vmatprep.subr.mxu0 %v858
    %925 = vmatpush1.msra.mxu0 %v857
    %926 = vmatprep.subr.mxu0 %v862
    %927 = vmatpush1.msra.mxu0 %v861
    %928 = vmatprep.subr.mxu0 %v866
    %929 = vmatpush1.msra.mxu0 %v865
    %930 = vmatprep.subr.mxu0 %v870
    %931 = vmatpush1.msra.mxu0 %v869
    %932 = vmatprep.subr.mxu0 %v874
    %933 = vmatpush1.msra.mxu0 %v873
    %934 = vmatprep.subr.mxu0 %v878
    %935 = vmatpush1.msra.mxu0 %v877
    %936 = vmatprep.subr.mxu0 0.0
    %937 = vmatpush1.msra.mxu0 0.0
    %938 = vmatprep.subr.mxu0 0.0
    %939 = vmatpush1.msra.mxu0 0.0
    %940 = vmatprep.subr.mxu0 0.0
    %941 = vmatpush1.msra.mxu0 0.0
    %942 = vmatprep.subr.mxu0 0.0
    %943 = vmatpush1.msra.mxu0 0.0
    %944 = vmatprep.subr.mxu0 0.0
    %945 = vmatpush1.msra.mxu0 0.0
    %946 = vmatprep.subr.mxu0 0.0
    %947 = vmatpush1.msra.mxu0 0.0
    %948 = vmatprep.subr.mxu0 0.0
    %949 = vmatpush1.msra.mxu0 0.0
    %950 = vmatprep.subr.mxu0 0.0
    %951 = vmatpush1.msra.mxu0 0.0
    %952 = vmatprep.subr.mxu0 0.0
    %953 = vmatpush1.msra.mxu0 0.0
    %954 = vmatprep.subr.mxu0 0.0
    %955 = vmatpush1.msra.mxu0 0.0
    %956 = vmatprep.subr.mxu0 0.0
    %957 = vmatpush1.msra.mxu0 0.0
    %958 = vmatprep.subr.mxu0 0.0
    %959 = vmatpush1.msra.mxu0 0.0
    %960 = vmatprep.subr.mxu0 0.0
    %961 = vmatpush1.msra.mxu0 0.0
    %962 = vmatprep.subr.mxu0 0.0
    %963 = vmatpush1.msra.mxu0 0.0
    %964 = vmatprep.subr.mxu0 0.0
    %965 = vmatpush1.msra.mxu0 0.0
    %966 = vmatprep.subr.mxu0 0.0
    %967 = vmatpush1.msra.mxu0 0.0
    %968 = vmatprep.mubr.f32.mxu0 0.0
    %969 = vmatmul.mubr.f32.gmra.mrb[0].mxu0 %v815
    %v970 = vpop.f32.mrb[0].mxu0
    %v971 = vadd.f32 %v887, %v970
    %v972 = vpop.f32.mrb[0].mxu0
    %v973 = vadd.f32 %v891, %v972
    %974 = vdwg.mxu0
    %975 = vmatprep.subr.mxu0 %v820
    %976 = vmatpush1.msra.mxu0 %v819
    %977 = vmatprep.subr.mxu0 %v824
    %978 = vmatpush1.msra.mxu0 %v823
    %979 = vmatprep.subr.mxu0 %v828
    %980 = vmatpush1.msra.mxu0 %v827
    %981 = vmatprep.subr.mxu0 %v832
    %982 = vmatpush1.msra.mxu0 %v831
    %983 = vmatprep.subr.mxu0 %v836
    %984 = vmatpush1.msra.mxu0 %v835
    %985 = vmatprep.subr.mxu0 %v840
    %986 = vmatpush1.msra.mxu0 %v839
    %987 = vmatprep.subr.mxu0 %v844
    %988 = vmatpush1.msra.mxu0 %v843
    %989 = vmatprep.subr.mxu0 %v848
    %990 = vmatpush1.msra.mxu0 %v847
    %991 = vmatprep.subr.mxu0 %v852
    %992 = vmatpush1.msra.mxu0 %v851
    %993 = vmatprep.subr.mxu0 %v856
    %994 = vmatpush1.msra.mxu0 %v855
    %995 = vmatprep.subr.mxu0 %v860
    %996 = vmatpush1.msra.mxu0 %v859
    %997 = vmatprep.subr.mxu0 %v864
    %998 = vmatpush1.msra.mxu0 %v863
    %999 = vmatprep.subr.mxu0 %v868
    %1000 = vmatpush1.msra.mxu0 %v867
    %1001 = vmatprep.subr.mxu0 %v872
    %1002 = vmatpush1.msra.mxu0 %v871
    %1003 = vmatprep.subr.mxu0 %v876
    %1004 = vmatpush1.msra.mxu0 %v875
    %1005 = vmatprep.subr.mxu0 %v880
    %1006 = vmatpush1.msra.mxu0 %v879
    %1007 = vmatprep.subr.mxu0 0.0
    %1008 = vmatpush1.msra.mxu0 0.0
    %1009 = vmatprep.subr.mxu0 0.0
    %1010 = vmatpush1.msra.mxu0 0.0
    %1011 = vmatprep.subr.mxu0 0.0
    %1012 = vmatpush1.msra.mxu0 0.0
    %1013 = vmatprep.subr.mxu0 0.0
    %1014 = vmatpush1.msra.mxu0 0.0
    %1015 = vmatprep.subr.mxu0 0.0
    %1016 = vmatpush1.msra.mxu0 0.0
    %1017 = vmatprep.subr.mxu0 0.0
    %1018 = vmatpush1.msra.mxu0 0.0
    %1019 = vmatprep.subr.mxu0 0.0
    %1020 = vmatpush1.msra.mxu0 0.0
    %1021 = vmatprep.subr.mxu0 0.0
    %1022 = vmatpush1.msra.mxu0 0.0
    %1023 = vmatprep.subr.mxu0 0.0
    %1024 = vmatpush1.msra.mxu0 0.0
    %1025 = vmatprep.subr.mxu0 0.0
    %1026 = vmatpush1.msra.mxu0 0.0
    %1027 = vmatprep.subr.mxu0 0.0
    %1028 = vmatpush1.msra.mxu0 0.0
    %1029 = vmatprep.subr.mxu0 0.0
    %1030 = vmatpush1.msra.mxu0 0.0
    %1031 = vmatprep.subr.mxu0 0.0
    %1032 = vmatpush1.msra.mxu0 0.0
    %1033 = vmatprep.subr.mxu0 0.0
    %1034 = vmatpush1.msra.mxu0 0.0
    %1035 = vmatprep.subr.mxu0 0.0
    %1036 = vmatpush1.msra.mxu0 0.0
    %1037 = vmatprep.subr.mxu0 0.0
    %1038 = vmatpush1.msra.mxu0 0.0
    %1039 = vmatprep.mubr.f32.mxu0 0.0
    %1040 = vmatmul.mubr.f32.gmra.mrb[0].mxu0 %v815
    %v1041 = vpop.f32.mrb[0].mxu0
    %v1042 = vadd.f32 %v895, %v1041
    %v1043 = vpop.f32.mrb[0].mxu0
    %v1044 = vadd.f32 %v899, %v1043
    %1045 = vdwg.mxu0
    %v1046 = vxor.u32 %v971, 2147483648
    %v1047 = vmul.f32 %v1046, 1.442695
    %v1048 = vpow.pop %v1047
    %v1049 = vadd.f32 %v1048, 1.0
    %v1050 = vrcp.pop %v1049
    %v1051 = vmul.f32 1.0, %v1050
    %v1052 = vxor.u32 %v973, 2147483648
    %v1053 = vmul.f32 %v1052, 1.442695
    %v1054 = vpow.pop %v1053
    %v1055 = vadd.f32 %v1054, 1.0
    %v1056 = vrcp.pop %v1055
    %v1057 = vmul.f32 1.0, %v1056
    %v1058 = vtanh.pop %v1042
    %v1059 = vxor.u32 %v1044, 2147483648
    %v1060 = vmul.f32 %v1059, 1.442695
    %v1061 = vpow.pop %v1060
    %v1062 = vadd.f32 %v1061, 1.0
    %v1063 = vrcp.pop %v1062
    %v1064 = vmul.f32 1.0, %v1063
    %v1065 = vmul.f32 %v1057, %v813
    %v1066 = vmul.f32 %v1051, %v1058
    %v1067 = vadd.f32 %v1065, %v1066
    %v1068 = vtanh.pop %v1067
    %v1069 = vmul.f32 %v1064, %v1068
    %1070 = vst [vmem:[#allocation3 + $0x2] sm:$0x1] %v1069
    %v1071 = vld [vmem:[#allocation9] sm:$0xff]
    %v1072 = vld [vmem:[#allocation9 + $0x8] sm:$0xff]
    %v1073 = vld [vmem:[#allocation9 + $0x10] sm:$0xff]
    %v1074 = vld [vmem:[#allocation9 + $0x18] sm:$0xff]
    %v1075 = vld [vmem:[#allocation9 + $0x20] sm:$0xff]
    %v1076 = vld [vmem:[#allocation9 + $0x28] sm:$0xff]
    %v1077 = vld [vmem:[#allocation9 + $0x30] sm:$0xff]
    %v1078 = vld [vmem:[#allocation9 + $0x38] sm:$0xff]
    %v1079 = vld [vmem:[#allocation9 + $0x40] sm:$0xff]
    %v1080 = vld [vmem:[#allocation9 + $0x48] sm:$0xff]
    %v1081 = vld [vmem:[#allocation9 + $0x50] sm:$0xff]
    %v1082 = vld [vmem:[#allocation9 + $0x58] sm:$0xff]
    %v1083 = vld [vmem:[#allocation9 + $0x60] sm:$0xff]
    %v1084 = vld [vmem:[#allocation9 + $0x68] sm:$0xff]
    %v1085 = vld [vmem:[#allocation9 + $0x70] sm:$0xff]
    %v1086 = vld [vmem:[#allocation9 + $0x78] sm:$0xff]
    %v1087 = vld [vmem:[#allocation9 + $0x80] sm:$0xff]
    %v1088 = vld [vmem:[#allocation9 + $0x88] sm:$0xff]
    %v1089 = vld [vmem:[#allocation9 + $0x90] sm:$0xff]
    %v1090 = vld [vmem:[#allocation9 + $0x98] sm:$0xff]
    %v1091 = vld [vmem:[#allocation9 + $0xa0] sm:$0xff]
    %v1092 = vld [vmem:[#allocation9 + $0xa8] sm:$0xff]
    %v1093 = vld [vmem:[#allocation9 + $0xb0] sm:$0xff]
    %v1094 = vld [vmem:[#allocation9 + $0xb8] sm:$0xff]
    %v1095 = vld [vmem:[#allocation9 + $0xc0] sm:$0xff]
    %v1096 = vld [vmem:[#allocation9 + $0xc8] sm:$0xff]
    %v1097 = vld [vmem:[#allocation9 + $0xd0] sm:$0xff]
    %v1098 = vld [vmem:[#allocation9 + $0xd8] sm:$0xff]
    %v1099 = vld [vmem:[#allocation9 + $0xe0] sm:$0xff]
    %v1100 = vld [vmem:[#allocation9 + $0xe8] sm:$0xff]
    %v1101 = vld [vmem:[#allocation9 + $0xf0] sm:$0xff]
    %v1102 = vld [vmem:[#allocation9 + $0xf8] sm:$0xff]
    %v1103 = vld [vmem:[#allocation9 + $0x100] sm:$0xff]
    %v1104 = vld [vmem:[#allocation9 + $0x108] sm:$0xff]
    %v1105 = vld [vmem:[#allocation9 + $0x110] sm:$0xff]
    %v1106 = vld [vmem:[#allocation9 + $0x118] sm:$0xff]
    %v1107 = vld [vmem:[#allocation9 + $0x120] sm:$0xff]
    %v1108 = vld [vmem:[#allocation9 + $0x128] sm:$0xff]
    %v1109 = vld [vmem:[#allocation9 + $0x130] sm:$0xff]
    %v1110 = vld [vmem:[#allocation9 + $0x138] sm:$0xff]
    %v1111 = vld [vmem:[#allocation9 + $0x140] sm:$0xff]
    %v1112 = vld [vmem:[#allocation9 + $0x148] sm:$0xff]
    %v1113 = vld [vmem:[#allocation9 + $0x150] sm:$0xff]
    %v1114 = vld [vmem:[#allocation9 + $0x158] sm:$0xff]
    %v1115 = vld [vmem:[#allocation9 + $0x160] sm:$0xff]
    %v1116 = vld [vmem:[#allocation9 + $0x168] sm:$0xff]
    %v1117 = vld [vmem:[#allocation9 + $0x170] sm:$0xff]
    %v1118 = vld [vmem:[#allocation9 + $0x178] sm:$0xff]
    %v1119 = vld [vmem:[#allocation9 + $0x180] sm:$0xff]
    %v1120 = vld [vmem:[#allocation9 + $0x188] sm:$0xff]
    %v1121 = vld [vmem:[#allocation9 + $0x190] sm:$0xff]
    %v1122 = vld [vmem:[#allocation9 + $0x198] sm:$0xff]
    %v1123 = vld [vmem:[#allocation9 + $0x1a0] sm:$0xff]
    %v1124 = vld [vmem:[#allocation9 + $0x1a8] sm:$0xff]
    %v1125 = vld [vmem:[#allocation9 + $0x1b0] sm:$0xff]
    %v1126 = vld [vmem:[#allocation9 + $0x1b8] sm:$0xff]
    %v1127 = vld [vmem:[#allocation9 + $0x1c0] sm:$0xff]
    %v1128 = vld [vmem:[#allocation9 + $0x1c8] sm:$0xff]
    %v1129 = vld [vmem:[#allocation9 + $0x1d0] sm:$0xff]
    %v1130 = vld [vmem:[#allocation9 + $0x1d8] sm:$0xff]
    %v1131 = vld [vmem:[#allocation9 + $0x1e0] sm:$0xff]
    %v1132 = vld [vmem:[#allocation9 + $0x1e8] sm:$0xff]
    %v1133 = vld [vmem:[#allocation9 + $0x1f0] sm:$0xff]
    %v1134 = vld [vmem:[#allocation9 + $0x1f8] sm:$0xff]
    %s1135 = scalar_lea.vmem [#allocation2], 3
    %v1136 = vld [vmem:[%s1135] ss:$8 sm:$0xf]
    %v1138 = vlaneseq
    %v1139 = vshrl.u32 %v1138, 7
    %v1140 = vsub.s32 0, %v1139
    %v1141 = vrot.slane %v1136, %v1140
    %v1142 = vlaneseq
    %v1143 = vshrl.u32 %v1142, 7
    %v1144 = vsub.s32 1, %v1143
    %v1145 = vrot.slane %v1136, %v1144
    %v1146 = vlaneseq
    %v1147 = vshrl.u32 %v1146, 7
    %v1148 = vsub.s32 2, %v1147
    %v1149 = vrot.slane %v1136, %v1148
    %v1150 = vlaneseq
    %v1151 = vshrl.u32 %v1150, 7
    %v1152 = vsub.s32 3, %v1151
    %v1153 = vrot.slane %v1136, %v1152
    %1158 = vmatprep.subr.mxu0 %v1072
    %1159 = vmatpush1.msra.mxu0 %v1071
    %1160 = vmatprep.subr.mxu0 %v1076
    %1161 = vmatpush1.msra.mxu0 %v1075
    %1162 = vmatprep.subr.mxu0 %v1080
    %1163 = vmatpush1.msra.mxu0 %v1079
    %1164 = vmatprep.subr.mxu0 %v1084
    %1165 = vmatpush1.msra.mxu0 %v1083
    %1166 = vmatprep.subr.mxu0 %v1088
    %1167 = vmatpush1.msra.mxu0 %v1087
    %1168 = vmatprep.subr.mxu0 %v1092
    %1169 = vmatpush1.msra.mxu0 %v1091
    %1170 = vmatprep.subr.mxu0 %v1096
    %1171 = vmatpush1.msra.mxu0 %v1095
    %1172 = vmatprep.subr.mxu0 %v1100
    %1173 = vmatpush1.msra.mxu0 %v1099
    %1174 = vmatprep.subr.mxu0 %v1104
    %1175 = vmatpush1.msra.mxu0 %v1103
    %1176 = vmatprep.subr.mxu0 %v1108
    %1177 = vmatpush1.msra.mxu0 %v1107
    %1178 = vmatprep.subr.mxu0 %v1112
    %1179 = vmatpush1.msra.mxu0 %v1111
    %1180 = vmatprep.subr.mxu0 %v1116
    %1181 = vmatpush1.msra.mxu0 %v1115
    %1182 = vmatprep.subr.mxu0 %v1120
    %1183 = vmatpush1.msra.mxu0 %v1119
    %1184 = vmatprep.subr.mxu0 %v1124
    %1185 = vmatpush1.msra.mxu0 %v1123
    %1186 = vmatprep.subr.mxu0 %v1128
    %1187 = vmatpush1.msra.mxu0 %v1127
    %1188 = vmatprep.subr.mxu0 %v1132
    %1189 = vmatpush1.msra.mxu0 %v1131
    %1190 = vmatprep.subr.mxu0 0.0
    %1191 = vmatpush1.msra.mxu0 0.0
    %1192 = vmatprep.subr.mxu0 0.0
    %1193 = vmatpush1.msra.mxu0 0.0
    %1194 = vmatprep.subr.mxu0 0.0
    %1195 = vmatpush1.msra.mxu0 0.0
    %1196 = vmatprep.subr.mxu0 0.0
    %1197 = vmatpush1.msra.mxu0 0.0
    %1198 = vmatprep.subr.mxu0 0.0
    %1199 = vmatpush1.msra.mxu0 0.0
    %1200 = vmatprep.subr.mxu0 0.0
    %1201 = vmatpush1.msra.mxu0 0.0
    %1202 = vmatprep.subr.mxu0 0.0
    %1203 = vmatpush1.msra.mxu0 0.0
    %1204 = vmatprep.subr.mxu0 0.0
    %1205 = vmatpush1.msra.mxu0 0.0
    %1206 = vmatprep.subr.mxu0 0.0
    %1207 = vmatpush1.msra.mxu0 0.0
    %1208 = vmatprep.subr.mxu0 0.0
    %1209 = vmatpush1.msra.mxu0 0.0
    %1210 = vmatprep.subr.mxu0 0.0
    %1211 = vmatpush1.msra.mxu0 0.0
    %1212 = vmatprep.subr.mxu0 0.0
    %1213 = vmatpush1.msra.mxu0 0.0
    %1214 = vmatprep.subr.mxu0 0.0
    %1215 = vmatpush1.msra.mxu0 0.0
    %1216 = vmatprep.subr.mxu0 0.0
    %1217 = vmatpush1.msra.mxu0 0.0
    %1218 = vmatprep.subr.mxu0 0.0
    %1219 = vmatpush1.msra.mxu0 0.0
    %1220 = vmatprep.subr.mxu0 0.0
    %1221 = vmatpush1.msra.mxu0 0.0
    %1222 = vmatprep.mubr.f32.mxu0 0.0
    %1223 = vmatmul.mubr.f32.gmra.mrb[0].mxu0 %v1069
    %v1224 = vpop.f32.mrb[0].mxu0
    %v1225 = vadd.f32 %v1141, %v1224
    %v1226 = vpop.f32.mrb[0].mxu0
    %v1227 = vadd.f32 %v1145, %v1226
    %1228 = vdwg.mxu0
    %1229 = vmatprep.subr.mxu0 %v1074
    %1230 = vmatpush1.msra.mxu0 %v1073
    %1231 = vmatprep.subr.mxu0 %v1078
    %1232 = vmatpush1.msra.mxu0 %v1077
    %1233 = vmatprep.subr.mxu0 %v1082
    %1234 = vmatpush1.msra.mxu0 %v1081
    %1235 = vmatprep.subr.mxu0 %v1086
    %1236 = vmatpush1.msra.mxu0 %v1085
    %1237 = vmatprep.subr.mxu0 %v1090
    %1238 = vmatpush1.msra.mxu0 %v1089
    %1239 = vmatprep.subr.mxu0 %v1094
    %1240 = vmatpush1.msra.mxu0 %v1093
    %1241 = vmatprep.subr.mxu0 %v1098
    %1242 = vmatpush1.msra.mxu0 %v1097
    %1243 = vmatprep.subr.mxu0 %v1102
    %1244 = vmatpush1.msra.mxu0 %v1101
    %1245 = vmatprep.subr.mxu0 %v1106
    %1246 = vmatpush1.msra.mxu0 %v1105
    %1247 = vmatprep.subr.mxu0 %v1110
    %1248 = vmatpush1.msra.mxu0 %v1109
    %1249 = vmatprep.subr.mxu0 %v1114
    %1250 = vmatpush1.msra.mxu0 %v1113
    %1251 = vmatprep.subr.mxu0 %v1118
    %1252 = vmatpush1.msra.mxu0 %v1117
    %1253 = vmatprep.subr.mxu0 %v1122
    %1254 = vmatpush1.msra.mxu0 %v1121
    %1255 = vmatprep.subr.mxu0 %v1126
    %1256 = vmatpush1.msra.mxu0 %v1125
    %1257 = vmatprep.subr.mxu0 %v1130
    %1258 = vmatpush1.msra.mxu0 %v1129
    %1259 = vmatprep.subr.mxu0 %v1134
    %1260 = vmatpush1.msra.mxu0 %v1133
    %1261 = vmatprep.subr.mxu0 0.0
    %1262 = vmatpush1.msra.mxu0 0.0
    %1263 = vmatprep.subr.mxu0 0.0
    %1264 = vmatpush1.msra.mxu0 0.0
    %1265 = vmatprep.subr.mxu0 0.0
    %1266 = vmatpush1.msra.mxu0 0.0
    %1267 = vmatprep.subr.mxu0 0.0
    %1268 = vmatpush1.msra.mxu0 0.0
    %1269 = vmatprep.subr.mxu0 0.0
    %1270 = vmatpush1.msra.mxu0 0.0
    %1271 = vmatprep.subr.mxu0 0.0
    %1272 = vmatpush1.msra.mxu0 0.0
    %1273 = vmatprep.subr.mxu0 0.0
    %1274 = vmatpush1.msra.mxu0 0.0
    %1275 = vmatprep.subr.mxu0 0.0
    %1276 = vmatpush1.msra.mxu0 0.0
    %1277 = vmatprep.subr.mxu0 0.0
    %1278 = vmatpush1.msra.mxu0 0.0
    %1279 = vmatprep.subr.mxu0 0.0
    %1280 = vmatpush1.msra.mxu0 0.0
    %1281 = vmatprep.subr.mxu0 0.0
    %1282 = vmatpush1.msra.mxu0 0.0
    %1283 = vmatprep.subr.mxu0 0.0
    %1284 = vmatpush1.msra.mxu0 0.0
    %1285 = vmatprep.subr.mxu0 0.0
    %1286 = vmatpush1.msra.mxu0 0.0
    %1287 = vmatprep.subr.mxu0 0.0
    %1288 = vmatpush1.msra.mxu0 0.0
    %1289 = vmatprep.subr.mxu0 0.0
    %1290 = vmatpush1.msra.mxu0 0.0
    %1291 = vmatprep.subr.mxu0 0.0
    %1292 = vmatpush1.msra.mxu0 0.0
    %1293 = vmatprep.mubr.f32.mxu0 0.0
    %1294 = vmatmul.mubr.f32.gmra.mrb[0].mxu0 %v1069
    %v1295 = vpop.f32.mrb[0].mxu0
    %v1296 = vadd.f32 %v1149, %v1295
    %v1297 = vpop.f32.mrb[0].mxu0
    %v1298 = vadd.f32 %v1153, %v1297
    %1299 = vdwg.mxu0
    %v1300 = vxor.u32 %v1225, 2147483648
    %v1301 = vmul.f32 %v1300, 1.442695
    %v1302 = vpow.pop %v1301
    %v1303 = vadd.f32 %v1302, 1.0
    %v1304 = vrcp.pop %v1303
    %v1305 = vmul.f32 1.0, %v1304
    %v1306 = vxor.u32 %v1227, 2147483648
    %v1307 = vmul.f32 %v1306, 1.442695
    %v1308 = vpow.pop %v1307
    %v1309 = vadd.f32 %v1308, 1.0
    %v1310 = vrcp.pop %v1309
    %v1311 = vmul.f32 1.0, %v1310
    %v1312 = vtanh.pop %v1296
    %v1313 = vxor.u32 %v1298, 2147483648
    %v1314 = vmul.f32 %v1313, 1.442695
    %v1315 = vpow.pop %v1314
    %v1316 = vadd.f32 %v1315, 1.0
    %v1317 = vrcp.pop %v1316
    %v1318 = vmul.f32 1.0, %v1317
    %v1319 = vmul.f32 %v1311, %v1067
    %v1320 = vmul.f32 %v1305, %v1312
    %v1321 = vadd.f32 %v1319, %v1320
    %v1322 = vtanh.pop %v1321
    %v1323 = vmul.f32 %v1318, %v1322
    %1324 = vst [vmem:[#allocation3 + $0x3] sm:$0x1] %v1323
    %v1325 = vld [vmem:[#allocation9] sm:$0xff]
    %v1326 = vld [vmem:[#allocation9 + $0x8] sm:$0xff]
    %v1327 = vld [vmem:[#allocation9 + $0x10] sm:$0xff]
    %v1328 = vld [vmem:[#allocation9 + $0x18] sm:$0xff]
    %v1329 = vld [vmem:[#allocation9 + $0x20] sm:$0xff]
    %v1330 = vld [vmem:[#allocation9 + $0x28] sm:$0xff]
    %v1331 = vld [vmem:[#allocation9 + $0x30] sm:$0xff]
    %v1332 = vld [vmem:[#allocation9 + $0x38] sm:$0xff]
    %v1333 = vld [vmem:[#allocation9 + $0x40] sm:$0xff]
    %v1334 = vld [vmem:[#allocation9 + $0x48] sm:$0xff]
    %v1335 = vld [vmem:[#allocation9 + $0x50] sm:$0xff]
    %v1336 = vld [vmem:[#allocation9 + $0x58] sm:$0xff]
    %v1337 = vld [vmem:[#allocation9 + $0x60] sm:$0xff]
    %v1338 = vld [vmem:[#allocation9 + $0x68] sm:$0xff]
    %v1339 = vld [vmem:[#allocation9 + $0x70] sm:$0xff]
    %v1340 = vld [vmem:[#allocation9 + $0x78] sm:$0xff]
    %v1341 = vld [vmem:[#allocation9 + $0x80] sm:$0xff]
    %v1342 = vld [vmem:[#allocation9 + $0x88] sm:$0xff]
    %v1343 = vld [vmem:[#allocation9 + $0x90] sm:$0xff]
    %v1344 = vld [vmem:[#allocation9 + $0x98] sm:$0xff]
    %v1345 = vld [vmem:[#allocation9 + $0xa0] sm:$0xff]
    %v1346 = vld [vmem:[#allocation9 + $0xa8] sm:$0xff]
    %v1347 = vld [vmem:[#allocation9 + $0xb0] sm:$0xff]
    %v1348 = vld [vmem:[#allocation9 + $0xb8] sm:$0xff]
    %v1349 = vld [vmem:[#allocation9 + $0xc0] sm:$0xff]
    %v1350 = vld [vmem:[#allocation9 + $0xc8] sm:$0xff]
    %v1351 = vld [vmem:[#allocation9 + $0xd0] sm:$0xff]
    %v1352 = vld [vmem:[#allocation9 + $0xd8] sm:$0xff]
    %v1353 = vld [vmem:[#allocation9 + $0xe0] sm:$0xff]
    %v1354 = vld [vmem:[#allocation9 + $0xe8] sm:$0xff]
    %v1355 = vld [vmem:[#allocation9 + $0xf0] sm:$0xff]
    %v1356 = vld [vmem:[#allocation9 + $0xf8] sm:$0xff]
    %v1357 = vld [vmem:[#allocation9 + $0x100] sm:$0xff]
    %v1358 = vld [vmem:[#allocation9 + $0x108] sm:$0xff]
    %v1359 = vld [vmem:[#allocation9 + $0x110] sm:$0xff]
    %v1360 = vld [vmem:[#allocation9 + $0x118] sm:$0xff]
    %v1361 = vld [vmem:[#allocation9 + $0x120] sm:$0xff]
    %v1362 = vld [vmem:[#allocation9 + $0x128] sm:$0xff]
    %v1363 = vld [vmem:[#allocation9 + $0x130] sm:$0xff]
    %v1364 = vld [vmem:[#allocation9 + $0x138] sm:$0xff]
    %v1365 = vld [vmem:[#allocation9 + $0x140] sm:$0xff]
    %v1366 = vld [vmem:[#allocation9 + $0x148] sm:$0xff]
    %v1367 = vld [vmem:[#allocation9 + $0x150] sm:$0xff]
    %v1368 = vld [vmem:[#allocation9 + $0x158] sm:$0xff]
    %v1369 = vld [vmem:[#allocation9 + $0x160] sm:$0xff]
    %v1370 = vld [vmem:[#allocation9 + $0x168] sm:$0xff]
    %v1371 = vld [vmem:[#allocation9 + $0x170] sm:$0xff]
    %v1372 = vld [vmem:[#allocation9 + $0x178] sm:$0xff]
    %v1373 = vld [vmem:[#allocation9 + $0x180] sm:$0xff]
    %v1374 = vld [vmem:[#allocation9 + $0x188] sm:$0xff]
    %v1375 = vld [vmem:[#allocation9 + $0x190] sm:$0xff]
    %v1376 = vld [vmem:[#allocation9 + $0x198] sm:$0xff]
    %v1377 = vld [vmem:[#allocation9 + $0x1a0] sm:$0xff]
    %v1378 = vld [vmem:[#allocation9 + $0x1a8] sm:$0xff]
    %v1379 = vld [vmem:[#allocation9 + $0x1b0] sm:$0xff]
    %v1380 = vld [vmem:[#allocation9 + $0x1b8] sm:$0xff]
    %v1381 = vld [vmem:[#allocation9 + $0x1c0] sm:$0xff]
    %v1382 = vld [vmem:[#allocation9 + $0x1c8] sm:$0xff]
    %v1383 = vld [vmem:[#allocation9 + $0x1d0] sm:$0xff]
    %v1384 = vld [vmem:[#allocation9 + $0x1d8] sm:$0xff]
    %v1385 = vld [vmem:[#allocation9 + $0x1e0] sm:$0xff]
    %v1386 = vld [vmem:[#allocation9 + $0x1e8] sm:$0xff]
    %v1387 = vld [vmem:[#allocation9 + $0x1f0] sm:$0xff]
    %v1388 = vld [vmem:[#allocation9 + $0x1f8] sm:$0xff]
    %s1389 = scalar_lea.vmem [#allocation2], 4
    %v1390 = vld [vmem:[%s1389] ss:$8 sm:$0xf]
    %v1392 = vlaneseq
    %v1393 = vshrl.u32 %v1392, 7
    %v1394 = vsub.s32 0, %v1393
    %v1395 = vrot.slane %v1390, %v1394
    %v1396 = vlaneseq
    %v1397 = vshrl.u32 %v1396, 7
    %v1398 = vsub.s32 1, %v1397
    %v1399 = vrot.slane %v1390, %v1398
    %v1400 = vlaneseq
    %v1401 = vshrl.u32 %v1400, 7
    %v1402 = vsub.s32 2, %v1401
    %v1403 = vrot.slane %v1390, %v1402
    %v1404 = vlaneseq
    %v1405 = vshrl.u32 %v1404, 7
    %v1406 = vsub.s32 3, %v1405
    %v1407 = vrot.slane %v1390, %v1406
    %1412 = vmatprep.subr.mxu0 %v1326
    %1413 = vmatpush1.msra.mxu0 %v1325
    %1414 = vmatprep.subr.mxu0 %v1330
    %1415 = vmatpush1.msra.mxu0 %v1329
    %1416 = vmatprep.subr.mxu0 %v1334
    %1417 = vmatpush1.msra.mxu0 %v1333
    %1418 = vmatprep.subr.mxu0 %v1338
    %1419 = vmatpush1.msra.mxu0 %v1337
    %1420 = vmatprep.subr.mxu0 %v1342
    %1421 = vmatpush1.msra.mxu0 %v1341
    %1422 = vmatprep.subr.mxu0 %v1346
    %1423 = vmatpush1.msra.mxu0 %v1345
    %1424 = vmatprep.subr.mxu0 %v1350
    %1425 = vmatpush1.msra.mxu0 %v1349
    %1426 = vmatprep.subr.mxu0 %v1354
    %1427 = vmatpush1.msra.mxu0 %v1353
    %1428 = vmatprep.subr.mxu0 %v1358
    %1429 = vmatpush1.msra.mxu0 %v1357
    %1430 = vmatprep.subr.mxu0 %v1362
    %1431 = vmatpush1.msra.mxu0 %v1361
    %1432 = vmatprep.subr.mxu0 %v1366
    %1433 = vmatpush1.msra.mxu0 %v1365
    %1434 = vmatprep.subr.mxu0 %v1370
    %1435 = vmatpush1.msra.mxu0 %v1369
    %1436 = vmatprep.subr.mxu0 %v1374
    %1437 = vmatpush1.msra.mxu0 %v1373
    %1438 = vmatprep.subr.mxu0 %v1378
    %1439 = vmatpush1.msra.mxu0 %v1377
    %1440 = vmatprep.subr.mxu0 %v1382
    %1441 = vmatpush1.msra.mxu0 %v1381
    %1442 = vmatprep.subr.mxu0 %v1386
    %1443 = vmatpush1.msra.mxu0 %v1385
    %1444 = vmatprep.subr.mxu0 0.0
    %1445 = vmatpush1.msra.mxu0 0.0
    %1446 = vmatprep.subr.mxu0 0.0
    %1447 = vmatpush1.msra.mxu0 0.0
    %1448 = vmatprep.subr.mxu0 0.0
    %1449 = vmatpush1.msra.mxu0 0.0
    %1450 = vmatprep.subr.mxu0 0.0
    %1451 = vmatpush1.msra.mxu0 0.0
    %1452 = vmatprep.subr.mxu0 0.0
    %1453 = vmatpush1.msra.mxu0 0.0
    %1454 = vmatprep.subr.mxu0 0.0
    %1455 = vmatpush1.msra.mxu0 0.0
    %1456 = vmatprep.subr.mxu0 0.0
    %1457 = vmatpush1.msra.mxu0 0.0
    %1458 = vmatprep.subr.mxu0 0.0
    %1459 = vmatpush1.msra.mxu0 0.0
    %1460 = vmatprep.subr.mxu0 0.0
    %1461 = vmatpush1.msra.mxu0 0.0
    %1462 = vmatprep.subr.mxu0 0.0
    %1463 = vmatpush1.msra.mxu0 0.0
    %1464 = vmatprep.subr.mxu0 0.0
    %1465 = vmatpush1.msra.mxu0 0.0
    %1466 = vmatprep.subr.mxu0 0.0
    %1467 = vmatpush1.msra.mxu0 0.0
    %1468 = vmatprep.subr.mxu0 0.0
    %1469 = vmatpush1.msra.mxu0 0.0
    %1470 = vmatprep.subr.mxu0 0.0
    %1471 = vmatpush1.msra.mxu0 0.0
    %1472 = vmatprep.subr.mxu0 0.0
    %1473 = vmatpush1.msra.mxu0 0.0
    %1474 = vmatprep.subr.mxu0 0.0
    %1475 = vmatpush1.msra.mxu0 0.0
    %1476 = vmatprep.mubr.f32.mxu0 0.0
    %1477 = vmatmul.mubr.f32.gmra.mrb[0].mxu0 %v1323
    %v1478 = vpop.f32.mrb[0].mxu0
    %v1479 = vadd.f32 %v1395, %v1478
    %v1480 = vpop.f32.mrb[0].mxu0
    %v1481 = vadd.f32 %v1399, %v1480
    %1482 = vdwg.mxu0
    %1483 = vmatprep.subr.mxu0 %v1328
    %1484 = vmatpush1.msra.mxu0 %v1327
    %1485 = vmatprep.subr.mxu0 %v1332
    %1486 = vmatpush1.msra.mxu0 %v1331
    %1487 = vmatprep.subr.mxu0 %v1336
    %1488 = vmatpush1.msra.mxu0 %v1335
    %1489 = vmatprep.subr.mxu0 %v1340
    %1490 = vmatpush1.msra.mxu0 %v1339
    %1491 = vmatprep.subr.mxu0 %v1344
    %1492 = vmatpush1.msra.mxu0 %v1343
    %1493 = vmatprep.subr.mxu0 %v1348
    %1494 = vmatpush1.msra.mxu0 %v1347
    %1495 = vmatprep.subr.mxu0 %v1352
    %1496 = vmatpush1.msra.mxu0 %v1351
    %1497 = vmatprep.subr.mxu0 %v1356
    %1498 = vmatpush1.msra.mxu0 %v1355
    %1499 = vmatprep.subr.mxu0 %v1360
    %1500 = vmatpush1.msra.mxu0 %v1359
    %1501 = vmatprep.subr.mxu0 %v1364
    %1502 = vmatpush1.msra.mxu0 %v1363
    %1503 = vmatprep.subr.mxu0 %v1368
    %1504 = vmatpush1.msra.mxu0 %v1367
    %1505 = vmatprep.subr.mxu0 %v1372
    %1506 = vmatpush1.msra.mxu0 %v1371
    %1507 = vmatprep.subr.mxu0 %v1376
    %1508 = vmatpush1.msra.mxu0 %v1375
    %1509 = vmatprep.subr.mxu0 %v1380
    %1510 = vmatpush1.msra.mxu0 %v1379
    %1511 = vmatprep.subr.mxu0 %v1384
    %1512 = vmatpush1.msra.mxu0 %v1383
    %1513 = vmatprep.subr.mxu0 %v1388
    %1514 = vmatpush1.msra.mxu0 %v1387
    %1515 = vmatprep.subr.mxu0 0.0
    %1516 = vmatpush1.msra.mxu0 0.0
    %1517 = vmatprep.subr.mxu0 0.0
    %1518 = vmatpush1.msra.mxu0 0.0
    %1519 = vmatprep.subr.mxu0 0.0
    %1520 = vmatpush1.msra.mxu0 0.0
    %1521 = vmatprep.subr.mxu0 0.0
    %1522 = vmatpush1.msra.mxu0 0.0
    %1523 = vmatprep.subr.mxu0 0.0
    %1524 = vmatpush1.msra.mxu0 0.0
    %1525 = vmatprep.subr.mxu0 0.0
    %1526 = vmatpush1.msra.mxu0 0.0
    %1527 = vmatprep.subr.mxu0 0.0
    %1528 = vmatpush1.msra.mxu0 0.0
    %1529 = vmatprep.subr.mxu0 0.0
    %1530 = vmatpush1.msra.mxu0 0.0
    %1531 = vmatprep.subr.mxu0 0.0
    %1532 = vmatpush1.msra.mxu0 0.0
    %1533 = vmatprep.subr.mxu0 0.0
    %1534 = vmatpush1.msra.mxu0 0.0
    %1535 = vmatprep.subr.mxu0 0.0
    %1536 = vmatpush1.msra.mxu0 0.0
    %1537 = vmatprep.subr.mxu0 0.0
    %1538 = vmatpush1.msra.mxu0 0.0
    %1539 = vmatprep.subr.mxu0 0.0
    %1540 = vmatpush1.msra.mxu0 0.0
    %1541 = vmatprep.subr.mxu0 0.0
    %1542 = vmatpush1.msra.mxu0 0.0
    %1543 = vmatprep.subr.mxu0 0.0
    %1544 = vmatpush1.msra.mxu0 0.0
    %1545 = vmatprep.subr.mxu0 0.0
    %1546 = vmatpush1.msra.mxu0 0.0
    %1547 = vmatprep.mubr.f32.mxu0 0.0
    %1548 = vmatmul.mubr.f32.gmra.mrb[0].mxu0 %v1323
    %v1549 = vpop.f32.mrb[0].mxu0
    %v1550 = vadd.f32 %v1403, %v1549
    %v1551 = vpop.f32.mrb[0].mxu0
    %v1552 = vadd.f32 %v1407, %v1551
    %1553 = vdwg.mxu0
    %v1554 = vxor.u32 %v1479, 2147483648
    %v1555 = vmul.f32 %v1554, 1.442695
    %v1556 = vpow.pop %v1555
    %v1557 = vadd.f32 %v1556, 1.0
    %v1558 = vrcp.pop %v1557
    %v1559 = vmul.f32 1.0, %v1558
    %v1560 = vxor.u32 %v1481, 2147483648
    %v1561 = vmul.f32 %v1560, 1.442695
    %v1562 = vpow.pop %v1561
    %v1563 = vadd.f32 %v1562, 1.0
    %v1564 = vrcp.pop %v1563
    %v1565 = vmul.f32 1.0, %v1564
    %v1566 = vtanh.pop %v1550
    %v1567 = vxor.u32 %v1552, 2147483648
    %v1568 = vmul.f32 %v1567, 1.442695
    %v1569 = vpow.pop %v1568
    %v1570 = vadd.f32 %v1569, 1.0
    %v1571 = vrcp.pop %v1570
    %v1572 = vmul.f32 1.0, %v1571
    %v1573 = vmul.f32 %v1565, %v1321
    %v1574 = vmul.f32 %v1559, %v1566
    %v1575 = vadd.f32 %v1573, %v1574
    %v1576 = vtanh.pop %v1575
    %v1577 = vmul.f32 %v1572, %v1576
    %1578 = vst [vmem:[#allocation3 + $0x4] sm:$0x1] %v1577
    %v1579 = vld [vmem:[#allocation9] sm:$0xff]
    %v1580 = vld [vmem:[#allocation9 + $0x8] sm:$0xff]
    %v1581 = vld [vmem:[#allocation9 + $0x10] sm:$0xff]
    %v1582 = vld [vmem:[#allocation9 + $0x18] sm:$0xff]
    %v1583 = vld [vmem:[#allocation9 + $0x20] sm:$0xff]
    %v1584 = vld [vmem:[#allocation9 + $0x28] sm:$0xff]
    %v1585 = vld [vmem:[#allocation9 + $0x30] sm:$0xff]
    %v1586 = vld [vmem:[#allocation9 + $0x38] sm:$0xff]
    %v1587 = vld [vmem:[#allocation9 + $0x40] sm:$0xff]
    %v1588 = vld [vmem:[#allocation9 + $0x48] sm:$0xff]
    %v1589 = vld [vmem:[#allocation9 + $0x50] sm:$0xff]
    %v1590 = vld [vmem:[#allocation9 + $0x58] sm:$0xff]
    %v1591 = vld [vmem:[#allocation9 + $0x60] sm:$0xff]
    %v1592 = vld [vmem:[#allocation9 + $0x68] sm:$0xff]
    %v1593 = vld [vmem:[#allocation9 + $0x70] sm:$0xff]
    %v1594 = vld [vmem:[#allocation9 + $0x78] sm:$0xff]
    %v1595 = vld [vmem:[#allocation9 + $0x80] sm:$0xff]
    %v1596 = vld [vmem:[#allocation9 + $0x88] sm:$0xff]
    %v1597 = vld [vmem:[#allocation9 + $0x90] sm:$0xff]
    %v1598 = vld [vmem:[#allocation9 + $0x98] sm:$0xff]
    %v1599 = vld [vmem:[#allocation9 + $0xa0] sm:$0xff]
    %v1600 = vld [vmem:[#allocation9 + $0xa8] sm:$0xff]
    %v1601 = vld [vmem:[#allocation9 + $0xb0] sm:$0xff]
    %v1602 = vld [vmem:[#allocation9 + $0xb8] sm:$0xff]
    %v1603 = vld [vmem:[#allocation9 + $0xc0] sm:$0xff]
    %v1604 = vld [vmem:[#allocation9 + $0xc8] sm:$0xff]
    %v1605 = vld [vmem:[#allocation9 + $0xd0] sm:$0xff]
    %v1606 = vld [vmem:[#allocation9 + $0xd8] sm:$0xff]
    %v1607 = vld [vmem:[#allocation9 + $0xe0] sm:$0xff]
    %v1608 = vld [vmem:[#allocation9 + $0xe8] sm:$0xff]
    %v1609 = vld [vmem:[#allocation9 + $0xf0] sm:$0xff]
    %v1610 = vld [vmem:[#allocation9 + $0xf8] sm:$0xff]
    %v1611 = vld [vmem:[#allocation9 + $0x100] sm:$0xff]
    %v1612 = vld [vmem:[#allocation9 + $0x108] sm:$0xff]
    %v1613 = vld [vmem:[#allocation9 + $0x110] sm:$0xff]
    %v1614 = vld [vmem:[#allocation9 + $0x118] sm:$0xff]
    %v1615 = vld [vmem:[#allocation9 + $0x120] sm:$0xff]
    %v1616 = vld [vmem:[#allocation9 + $0x128] sm:$0xff]
    %v1617 = vld [vmem:[#allocation9 + $0x130] sm:$0xff]
    %v1618 = vld [vmem:[#allocation9 + $0x138] sm:$0xff]
    %v1619 = vld [vmem:[#allocation9 + $0x140] sm:$0xff]
    %v1620 = vld [vmem:[#allocation9 + $0x148] sm:$0xff]
    %v1621 = vld [vmem:[#allocation9 + $0x150] sm:$0xff]
    %v1622 = vld [vmem:[#allocation9 + $0x158] sm:$0xff]
    %v1623 = vld [vmem:[#allocation9 + $0x160] sm:$0xff]
    %v1624 = vld [vmem:[#allocation9 + $0x168] sm:$0xff]
    %v1625 = vld [vmem:[#allocation9 + $0x170] sm:$0xff]
    %v1626 = vld [vmem:[#allocation9 + $0x178] sm:$0xff]
    %v1627 = vld [vmem:[#allocation9 + $0x180] sm:$0xff]
    %v1628 = vld [vmem:[#allocation9 + $0x188] sm:$0xff]
    %v1629 = vld [vmem:[#allocation9 + $0x190] sm:$0xff]
    %v1630 = vld [vmem:[#allocation9 + $0x198] sm:$0xff]
    %v1631 = vld [vmem:[#allocation9 + $0x1a0] sm:$0xff]
    %v1632 = vld [vmem:[#allocation9 + $0x1a8] sm:$0xff]
    %v1633 = vld [vmem:[#allocation9 + $0x1b0] sm:$0xff]
    %v1634 = vld [vmem:[#allocation9 + $0x1b8] sm:$0xff]
    %v1635 = vld [vmem:[#allocation9 + $0x1c0] sm:$0xff]
    %v1636 = vld [vmem:[#allocation9 + $0x1c8] sm:$0xff]
    %v1637 = vld [vmem:[#allocation9 + $0x1d0] sm:$0xff]
    %v1638 = vld [vmem:[#allocation9 + $0x1d8] sm:$0xff]
    %v1639 = vld [vmem:[#allocation9 + $0x1e0] sm:$0xff]
    %v1640 = vld [vmem:[#allocation9 + $0x1e8] sm:$0xff]
    %v1641 = vld [vmem:[#allocation9 + $0x1f0] sm:$0xff]
    %v1642 = vld [vmem:[#allocation9 + $0x1f8] sm:$0xff]
    %s1643 = scalar_lea.vmem [#allocation2], 5
    %v1644 = vld [vmem:[%s1643] ss:$8 sm:$0xf]
    %v1646 = vlaneseq
    %v1647 = vshrl.u32 %v1646, 7
    %v1648 = vsub.s32 0, %v1647
    %v1649 = vrot.slane %v1644, %v1648
    %v1650 = vlaneseq
    %v1651 = vshrl.u32 %v1650, 7
    %v1652 = vsub.s32 1, %v1651
    %v1653 = vrot.slane %v1644, %v1652
    %v1654 = vlaneseq
    %v1655 = vshrl.u32 %v1654, 7
    %v1656 = vsub.s32 2, %v1655
    %v1657 = vrot.slane %v1644, %v1656
    %v1658 = vlaneseq
    %v1659 = vshrl.u32 %v1658, 7
    %v1660 = vsub.s32 3, %v1659
    %v1661 = vrot.slane %v1644, %v1660
    %1666 = vmatprep.subr.mxu0 %v1580
    %1667 = vmatpush1.msra.mxu0 %v1579
    %1668 = vmatprep.subr.mxu0 %v1584
    %1669 = vmatpush1.msra.mxu0 %v1583
    %1670 = vmatprep.subr.mxu0 %v1588
    %1671 = vmatpush1.msra.mxu0 %v1587
    %1672 = vmatprep.subr.mxu0 %v1592
    %1673 = vmatpush1.msra.mxu0 %v1591
    %1674 = vmatprep.subr.mxu0 %v1596
    %1675 = vmatpush1.msra.mxu0 %v1595
    %1676 = vmatprep.subr.mxu0 %v1600
    %1677 = vmatpush1.msra.mxu0 %v1599
    %1678 = vmatprep.subr.mxu0 %v1604
    %1679 = vmatpush1.msra.mxu0 %v1603
    %1680 = vmatprep.subr.mxu0 %v1608
    %1681 = vmatpush1.msra.mxu0 %v1607
    %1682 = vmatprep.subr.mxu0 %v1612
    %1683 = vmatpush1.msra.mxu0 %v1611
    %1684 = vmatprep.subr.mxu0 %v1616
    %1685 = vmatpush1.msra.mxu0 %v1615
    %1686 = vmatprep.subr.mxu0 %v1620
    %1687 = vmatpush1.msra.mxu0 %v1619
    %1688 = vmatprep.subr.mxu0 %v1624
    %1689 = vmatpush1.msra.mxu0 %v1623
    %1690 = vmatprep.subr.mxu0 %v1628
    %1691 = vmatpush1.msra.mxu0 %v1627
    %1692 = vmatprep.subr.mxu0 %v1632
    %1693 = vmatpush1.msra.mxu0 %v1631
    %1694 = vmatprep.subr.mxu0 %v1636
    %1695 = vmatpush1.msra.mxu0 %v1635
    %1696 = vmatprep.subr.mxu0 %v1640
    %1697 = vmatpush1.msra.mxu0 %v1639
    %1698 = vmatprep.subr.mxu0 0.0
    %1699 = vmatpush1.msra.mxu0 0.0
    %1700 = vmatprep.subr.mxu0 0.0
    %1701 = vmatpush1.msra.mxu0 0.0
    %1702 = vmatprep.subr.mxu0 0.0
    %1703 = vmatpush1.msra.mxu0 0.0
    %1704 = vmatprep.subr.mxu0 0.0
    %1705 = vmatpush1.msra.mxu0 0.0
    %1706 = vmatprep.subr.mxu0 0.0
    %1707 = vmatpush1.msra.mxu0 0.0
    %1708 = vmatprep.subr.mxu0 0.0
    %1709 = vmatpush1.msra.mxu0 0.0
    %1710 = vmatprep.subr.mxu0 0.0
    %1711 = vmatpush1.msra.mxu0 0.0
    %1712 = vmatprep.subr.mxu0 0.0
    %1713 = vmatpush1.msra.mxu0 0.0
    %1714 = vmatprep.subr.mxu0 0.0
    %1715 = vmatpush1.msra.mxu0 0.0
    %1716 = vmatprep.subr.mxu0 0.0
    %1717 = vmatpush1.msra.mxu0 0.0
    %1718 = vmatprep.subr.mxu0 0.0
    %1719 = vmatpush1.msra.mxu0 0.0
    %1720 = vmatprep.subr.mxu0 0.0
    %1721 = vmatpush1.msra.mxu0 0.0
    %1722 = vmatprep.subr.mxu0 0.0
    %1723 = vmatpush1.msra.mxu0 0.0
    %1724 = vmatprep.subr.mxu0 0.0
    %1725 = vmatpush1.msra.mxu0 0.0
    %1726 = vmatprep.subr.mxu0 0.0
    %1727 = vmatpush1.msra.mxu0 0.0
    %1728 = vmatprep.subr.mxu0 0.0
    %1729 = vmatpush1.msra.mxu0 0.0
    %1730 = vmatprep.mubr.f32.mxu0 0.0
    %1731 = vmatmul.mubr.f32.gmra.mrb[0].mxu0 %v1577
    %v1732 = vpop.f32.mrb[0].mxu0
    %v1733 = vadd.f32 %v1649, %v1732
    %v1734 = vpop.f32.mrb[0].mxu0
    %v1735 = vadd.f32 %v1653, %v1734
    %1736 = vdwg.mxu0
    %1737 = vmatprep.subr.mxu0 %v1582
    %1738 = vmatpush1.msra.mxu0 %v1581
    %1739 = vmatprep.subr.mxu0 %v1586
    %1740 = vmatpush1.msra.mxu0 %v1585
    %1741 = vmatprep.subr.mxu0 %v1590
    %1742 = vmatpush1.msra.mxu0 %v1589
    %1743 = vmatprep.subr.mxu0 %v1594
    %1744 = vmatpush1.msra.mxu0 %v1593
    %1745 = vmatprep.subr.mxu0 %v1598
    %1746 = vmatpush1.msra.mxu0 %v1597
    %1747 = vmatprep.subr.mxu0 %v1602
    %1748 = vmatpush1.msra.mxu0 %v1601
    %1749 = vmatprep.subr.mxu0 %v1606
    %1750 = vmatpush1.msra.mxu0 %v1605
    %1751 = vmatprep.subr.mxu0 %v1610
    %1752 = vmatpush1.msra.mxu0 %v1609
    %1753 = vmatprep.subr.mxu0 %v1614
    %1754 = vmatpush1.msra.mxu0 %v1613
    %1755 = vmatprep.subr.mxu0 %v1618
    %1756 = vmatpush1.msra.mxu0 %v1617
    %1757 = vmatprep.subr.mxu0 %v1622
    %1758 = vmatpush1.msra.mxu0 %v1621
    %1759 = vmatprep.subr.mxu0 %v1626
    %1760 = vmatpush1.msra.mxu0 %v1625
    %1761 = vmatprep.subr.mxu0 %v1630
    %1762 = vmatpush1.msra.mxu0 %v1629
    %1763 = vmatprep.subr.mxu0 %v1634
    %1764 = vmatpush1.msra.mxu0 %v1633
    %1765 = vmatprep.subr.mxu0 %v1638
    %1766 = vmatpush1.msra.mxu0 %v1637
    %1767 = vmatprep.subr.mxu0 %v1642
    %1768 = vmatpush1.msra.mxu0 %v1641
    %1769 = vmatprep.subr.mxu0 0.0
    %1770 = vmatpush1.msra.mxu0 0.0
    %1771 = vmatprep.subr.mxu0 0.0
    %1772 = vmatpush1.msra.mxu0 0.0
    %1773 = vmatprep.subr.mxu0 0.0
    %1774 = vmatpush1.msra.mxu0 0.0
    %1775 = vmatprep.subr.mxu0 0.0
    %1776 = vmatpush1.msra.mxu0 0.0
    %1777 = vmatprep.subr.mxu0 0.0
    %1778 = vmatpush1.msra.mxu0 0.0
    %1779 = vmatprep.subr.mxu0 0.0
    %1780 = vmatpush1.msra.mxu0 0.0
    %1781 = vmatprep.subr.mxu0 0.0
    %1782 = vmatpush1.msra.mxu0 0.0
    %1783 = vmatprep.subr.mxu0 0.0
    %1784 = vmatpush1.msra.mxu0 0.0
    %1785 = vmatprep.subr.mxu0 0.0
    %1786 = vmatpush1.msra.mxu0 0.0
    %1787 = vmatprep.subr.mxu0 0.0
    %1788 = vmatpush1.msra.mxu0 0.0
    %1789 = vmatprep.subr.mxu0 0.0
    %1790 = vmatpush1.msra.mxu0 0.0
    %1791 = vmatprep.subr.mxu0 0.0
    %1792 = vmatpush1.msra.mxu0 0.0
    %1793 = vmatprep.subr.mxu0 0.0
    %1794 = vmatpush1.msra.mxu0 0.0
    %1795 = vmatprep.subr.mxu0 0.0
    %1796 = vmatpush1.msra.mxu0 0.0
    %1797 = vmatprep.subr.mxu0 0.0
    %1798 = vmatpush1.msra.mxu0 0.0
    %1799 = vmatprep.subr.mxu0 0.0
    %1800 = vmatpush1.msra.mxu0 0.0
    %1801 = vmatprep.mubr.f32.mxu0 0.0
    %1802 = vmatmul.mubr.f32.gmra.mrb[0].mxu0 %v1577
    %v1803 = vpop.f32.mrb[0].mxu0
    %v1804 = vadd.f32 %v1657, %v1803
    %v1805 = vpop.f32.mrb[0].mxu0
    %v1806 = vadd.f32 %v1661, %v1805
    %1807 = vdwg.mxu0
    %v1808 = vxor.u32 %v1733, 2147483648
    %v1809 = vmul.f32 %v1808, 1.442695
    %v1810 = vpow.pop %v1809
    %v1811 = vadd.f32 %v1810, 1.0
    %v1812 = vrcp.pop %v1811
    %v1813 = vmul.f32 1.0, %v1812
    %v1814 = vxor.u32 %v1735, 2147483648
    %v1815 = vmul.f32 %v1814, 1.442695
    %v1816 = vpow.pop %v1815
    %v1817 = vadd.f32 %v1816, 1.0
    %v1818 = vrcp.pop %v1817
    %v1819 = vmul.f32 1.0, %v1818
    %v1820 = vtanh.pop %v1804
    %v1821 = vxor.u32 %v1806, 2147483648
    %v1822 = vmul.f32 %v1821, 1.442695
    %v1823 = vpow.pop %v1822
    %v1824 = vadd.f32 %v1823, 1.0
    %v1825 = vrcp.pop %v1824
    %v1826 = vmul.f32 1.0, %v1825
    %v1827 = vmul.f32 %v1819, %v1575
    %v1828 = vmul.f32 %v1813, %v1820
    %v1829 = vadd.f32 %v1827, %v1828
    %v1830 = vtanh.pop %v1829
    %v1831 = vmul.f32 %v1826, %v1830
    %1832 = vst [vmem:[#allocation3 + $0x5] sm:$0x1] %v1831
    %v1833 = vld [vmem:[#allocation9] sm:$0xff]
    %v1834 = vld [vmem:[#allocation9 + $0x8] sm:$0xff]
    %v1835 = vld [vmem:[#allocation9 + $0x10] sm:$0xff]
    %v1836 = vld [vmem:[#allocation9 + $0x18] sm:$0xff]
    %v1837 = vld [vmem:[#allocation9 + $0x20] sm:$0xff]
    %v1838 = vld [vmem:[#allocation9 + $0x28] sm:$0xff]
    %v1839 = vld [vmem:[#allocation9 + $0x30] sm:$0xff]
    %v1840 = vld [vmem:[#allocation9 + $0x38] sm:$0xff]
    %v1841 = vld [vmem:[#allocation9 + $0x40] sm:$0xff]
    %v1842 = vld [vmem:[#allocation9 + $0x48] sm:$0xff]
    %v1843 = vld [vmem:[#allocation9 + $0x50] sm:$0xff]
    %v1844 = vld [vmem:[#allocation9 + $0x58] sm:$0xff]
    %v1845 = vld [vmem:[#allocation9 + $0x60] sm:$0xff]
    %v1846 = vld [vmem:[#allocation9 + $0x68] sm:$0xff]
    %v1847 = vld [vmem:[#allocation9 + $0x70] sm:$0xff]
    %v1848 = vld [vmem:[#allocation9 + $0x78] sm:$0xff]
    %v1849 = vld [vmem:[#allocation9 + $0x80] sm:$0xff]
    %v1850 = vld [vmem:[#allocation9 + $0x88] sm:$0xff]
    %v1851 = vld [vmem:[#allocation9 + $0x90] sm:$0xff]
    %v1852 = vld [vmem:[#allocation9 + $0x98] sm:$0xff]
    %v1853 = vld [vmem:[#allocation9 + $0xa0] sm:$0xff]
    %v1854 = vld [vmem:[#allocation9 + $0xa8] sm:$0xff]
    %v1855 = vld [vmem:[#allocation9 + $0xb0] sm:$0xff]
    %v1856 = vld [vmem:[#allocation9 + $0xb8] sm:$0xff]
    %v1857 = vld [vmem:[#allocation9 + $0xc0] sm:$0xff]
    %v1858 = vld [vmem:[#allocation9 + $0xc8] sm:$0xff]
    %v1859 = vld [vmem:[#allocation9 + $0xd0] sm:$0xff]
    %v1860 = vld [vmem:[#allocation9 + $0xd8] sm:$0xff]
    %v1861 = vld [vmem:[#allocation9 + $0xe0] sm:$0xff]
    %v1862 = vld [vmem:[#allocation9 + $0xe8] sm:$0xff]
    %v1863 = vld [vmem:[#allocation9 + $0xf0] sm:$0xff]
    %v1864 = vld [vmem:[#allocation9 + $0xf8] sm:$0xff]
    %v1865 = vld [vmem:[#allocation9 + $0x100] sm:$0xff]
    %v1866 = vld [vmem:[#allocation9 + $0x108] sm:$0xff]
    %v1867 = vld [vmem:[#allocation9 + $0x110] sm:$0xff]
    %v1868 = vld [vmem:[#allocation9 + $0x118] sm:$0xff]
    %v1869 = vld [vmem:[#allocation9 + $0x120] sm:$0xff]
    %v1870 = vld [vmem:[#allocation9 + $0x128] sm:$0xff]
    %v1871 = vld [vmem:[#allocation9 + $0x130] sm:$0xff]
    %v1872 = vld [vmem:[#allocation9 + $0x138] sm:$0xff]
    %v1873 = vld [vmem:[#allocation9 + $0x140] sm:$0xff]
    %v1874 = vld [vmem:[#allocation9 + $0x148] sm:$0xff]
    %v1875 = vld [vmem:[#allocation9 + $0x150] sm:$0xff]
    %v1876 = vld [vmem:[#allocation9 + $0x158] sm:$0xff]
    %v1877 = vld [vmem:[#allocation9 + $0x160] sm:$0xff]
    %v1878 = vld [vmem:[#allocation9 + $0x168] sm:$0xff]
    %v1879 = vld [vmem:[#allocation9 + $0x170] sm:$0xff]
    %v1880 = vld [vmem:[#allocation9 + $0x178] sm:$0xff]
    %v1881 = vld [vmem:[#allocation9 + $0x180] sm:$0xff]
    %v1882 = vld [vmem:[#allocation9 + $0x188] sm:$0xff]
    %v1883 = vld [vmem:[#allocation9 + $0x190] sm:$0xff]
    %v1884 = vld [vmem:[#allocation9 + $0x198] sm:$0xff]
    %v1885 = vld [vmem:[#allocation9 + $0x1a0] sm:$0xff]
    %v1886 = vld [vmem:[#allocation9 + $0x1a8] sm:$0xff]
    %v1887 = vld [vmem:[#allocation9 + $0x1b0] sm:$0xff]
    %v1888 = vld [vmem:[#allocation9 + $0x1b8] sm:$0xff]
    %v1889 = vld [vmem:[#allocation9 + $0x1c0] sm:$0xff]
    %v1890 = vld [vmem:[#allocation9 + $0x1c8] sm:$0xff]
    %v1891 = vld [vmem:[#allocation9 + $0x1d0] sm:$0xff]
    %v1892 = vld [vmem:[#allocation9 + $0x1d8] sm:$0xff]
    %v1893 = vld [vmem:[#allocation9 + $0x1e0] sm:$0xff]
    %v1894 = vld [vmem:[#allocation9 + $0x1e8] sm:$0xff]
    %v1895 = vld [vmem:[#allocation9 + $0x1f0] sm:$0xff]
    %v1896 = vld [vmem:[#allocation9 + $0x1f8] sm:$0xff]
    %s1897 = scalar_lea.vmem [#allocation2], 6
    %v1898 = vld [vmem:[%s1897] ss:$8 sm:$0xf]
    %v1900 = vlaneseq
    %v1901 = vshrl.u32 %v1900, 7
    %v1902 = vsub.s32 0, %v1901
    %v1903 = vrot.slane %v1898, %v1902
    %v1904 = vlaneseq
    %v1905 = vshrl.u32 %v1904, 7
    %v1906 = vsub.s32 1, %v1905
    %v1907 = vrot.slane %v1898, %v1906
    %v1908 = vlaneseq
    %v1909 = vshrl.u32 %v1908, 7
    %v1910 = vsub.s32 2, %v1909
    %v1911 = vrot.slane %v1898, %v1910
    %v1912 = vlaneseq
    %v1913 = vshrl.u32 %v1912, 7
    %v1914 = vsub.s32 3, %v1913
    %v1915 = vrot.slane %v1898, %v1914
    %1920 = vmatprep.subr.mxu0 %v1834
    %1921 = vmatpush1.msra.mxu0 %v1833
    %1922 = vmatprep.subr.mxu0 %v1838
    %1923 = vmatpush1.msra.mxu0 %v1837
    %1924 = vmatprep.subr.mxu0 %v1842
    %1925 = vmatpush1.msra.mxu0 %v1841
    %1926 = vmatprep.subr.mxu0 %v1846
    %1927 = vmatpush1.msra.mxu0 %v1845
    %1928 = vmatprep.subr.mxu0 %v1850
    %1929 = vmatpush1.msra.mxu0 %v1849
    %1930 = vmatprep.subr.mxu0 %v1854
    %1931 = vmatpush1.msra.mxu0 %v1853
    %1932 = vmatprep.subr.mxu0 %v1858
    %1933 = vmatpush1.msra.mxu0 %v1857
    %1934 = vmatprep.subr.mxu0 %v1862
    %1935 = vmatpush1.msra.mxu0 %v1861
    %1936 = vmatprep.subr.mxu0 %v1866
    %1937 = vmatpush1.msra.mxu0 %v1865
    %1938 = vmatprep.subr.mxu0 %v1870
    %1939 = vmatpush1.msra.mxu0 %v1869
    %1940 = vmatprep.subr.mxu0 %v1874
    %1941 = vmatpush1.msra.mxu0 %v1873
    %1942 = vmatprep.subr.mxu0 %v1878
    %1943 = vmatpush1.msra.mxu0 %v1877
    %1944 = vmatprep.subr.mxu0 %v1882
    %1945 = vmatpush1.msra.mxu0 %v1881
    %1946 = vmatprep.subr.mxu0 %v1886
    %1947 = vmatpush1.msra.mxu0 %v1885
    %1948 = vmatprep.subr.mxu0 %v1890
    %1949 = vmatpush1.msra.mxu0 %v1889
    %1950 = vmatprep.subr.mxu0 %v1894
    %1951 = vmatpush1.msra.mxu0 %v1893
    %1952 = vmatprep.subr.mxu0 0.0
    %1953 = vmatpush1.msra.mxu0 0.0
    %1954 = vmatprep.subr.mxu0 0.0
    %1955 = vmatpush1.msra.mxu0 0.0
    %1956 = vmatprep.subr.mxu0 0.0
    %1957 = vmatpush1.msra.mxu0 0.0
    %1958 = vmatprep.subr.mxu0 0.0
    %1959 = vmatpush1.msra.mxu0 0.0
    %1960 = vmatprep.subr.mxu0 0.0
    %1961 = vmatpush1.msra.mxu0 0.0
    %1962 = vmatprep.subr.mxu0 0.0
    %1963 = vmatpush1.msra.mxu0 0.0
    %1964 = vmatprep.subr.mxu0 0.0
    %1965 = vmatpush1.msra.mxu0 0.0
    %1966 = vmatprep.subr.mxu0 0.0
    %1967 = vmatpush1.msra.mxu0 0.0
    %1968 = vmatprep.subr.mxu0 0.0
    %1969 = vmatpush1.msra.mxu0 0.0
    %1970 = vmatprep.subr.mxu0 0.0
    %1971 = vmatpush1.msra.mxu0 0.0
    %1972 = vmatprep.subr.mxu0 0.0
    %1973 = vmatpush1.msra.mxu0 0.0
    %1974 = vmatprep.subr.mxu0 0.0
    %1975 = vmatpush1.msra.mxu0 0.0
    %1976 = vmatprep.subr.mxu0 0.0
    %1977 = vmatpush1.msra.mxu0 0.0
    %1978 = vmatprep.subr.mxu0 0.0
    %1979 = vmatpush1.msra.mxu0 0.0
    %1980 = vmatprep.subr.mxu0 0.0
    %1981 = vmatpush1.msra.mxu0 0.0
    %1982 = vmatprep.subr.mxu0 0.0
    %1983 = vmatpush1.msra.mxu0 0.0
    %1984 = vmatprep.mubr.f32.mxu0 0.0
    %1985 = vmatmul.mubr.f32.gmra.mrb[0].mxu0 %v1831
    %v1986 = vpop.f32.mrb[0].mxu0
    %v1987 = vadd.f32 %v1903, %v1986
    %v1988 = vpop.f32.mrb[0].mxu0
    %v1989 = vadd.f32 %v1907, %v1988
    %1990 = vdwg.mxu0
    %1991 = vmatprep.subr.mxu0 %v1836
    %1992 = vmatpush1.msra.mxu0 %v1835
    %1993 = vmatprep.subr.mxu0 %v1840
    %1994 = vmatpush1.msra.mxu0 %v1839
    %1995 = vmatprep.subr.mxu0 %v1844
    %1996 = vmatpush1.msra.mxu0 %v1843
    %1997 = vmatprep.subr.mxu0 %v1848
    %1998 = vmatpush1.msra.mxu0 %v1847
    %1999 = vmatprep.subr.mxu0 %v1852
    %2000 = vmatpush1.msra.mxu0 %v1851
    %2001 = vmatprep.subr.mxu0 %v1856
    %2002 = vmatpush1.msra.mxu0 %v1855
    %2003 = vmatprep.subr.mxu0 %v1860
    %2004 = vmatpush1.msra.mxu0 %v1859
    %2005 = vmatprep.subr.mxu0 %v1864
    %2006 = vmatpush1.msra.mxu0 %v1863
    %2007 = vmatprep.subr.mxu0 %v1868
    %2008 = vmatpush1.msra.mxu0 %v1867
    %2009 = vmatprep.subr.mxu0 %v1872
    %2010 = vmatpush1.msra.mxu0 %v1871
    %2011 = vmatprep.subr.mxu0 %v1876
    %2012 = vmatpush1.msra.mxu0 %v1875
    %2013 = vmatprep.subr.mxu0 %v1880
    %2014 = vmatpush1.msra.mxu0 %v1879
    %2015 = vmatprep.subr.mxu0 %v1884
    %2016 = vmatpush1.msra.mxu0 %v1883
    %2017 = vmatprep.subr.mxu0 %v1888
    %2018 = vmatpush1.msra.mxu0 %v1887
    %2019 = vmatprep.subr.mxu0 %v1892
    %2020 = vmatpush1.msra.mxu0 %v1891
    %2021 = vmatprep.subr.mxu0 %v1896
    %2022 = vmatpush1.msra.mxu0 %v1895
    %2023 = vmatprep.subr.mxu0 0.0
    %2024 = vmatpush1.msra.mxu0 0.0
    %2025 = vmatprep.subr.mxu0 0.0
    %2026 = vmatpush1.msra.mxu0 0.0
    %2027 = vmatprep.subr.mxu0 0.0
    %2028 = vmatpush1.msra.mxu0 0.0
    %2029 = vmatprep.subr.mxu0 0.0
    %2030 = vmatpush1.msra.mxu0 0.0
    %2031 = vmatprep.subr.mxu0 0.0
    %2032 = vmatpush1.msra.mxu0 0.0
    %2033 = vmatprep.subr.mxu0 0.0
    %2034 = vmatpush1.msra.mxu0 0.0
    %2035 = vmatprep.subr.mxu0 0.0
    %2036 = vmatpush1.msra.mxu0 0.0
    %2037 = vmatprep.subr.mxu0 0.0
    %2038 = vmatpush1.msra.mxu0 0.0
    %2039 = vmatprep.subr.mxu0 0.0
    %2040 = vmatpush1.msra.mxu0 0.0
    %2041 = vmatprep.subr.mxu0 0.0
    %2042 = vmatpush1.msra.mxu0 0.0
    %2043 = vmatprep.subr.mxu0 0.0
    %2044 = vmatpush1.msra.mxu0 0.0
    %2045 = vmatprep.subr.mxu0 0.0
    %2046 = vmatpush1.msra.mxu0 0.0
    %2047 = vmatprep.subr.mxu0 0.0
    %2048 = vmatpush1.msra.mxu0 0.0
    %2049 = vmatprep.subr.mxu0 0.0
    %2050 = vmatpush1.msra.mxu0 0.0
    %2051 = vmatprep.subr.mxu0 0.0
    %2052 = vmatpush1.msra.mxu0 0.0
    %2053 = vmatprep.subr.mxu0 0.0
    %2054 = vmatpush1.msra.mxu0 0.0
    %2055 = vmatprep.mubr.f32.mxu0 0.0
    %2056 = vmatmul.mubr.f32.gmra.mrb[0].mxu0 %v1831
    %v2057 = vpop.f32.mrb[0].mxu0
    %v2058 = vadd.f32 %v1911, %v2057
    %v2059 = vpop.f32.mrb[0].mxu0
    %v2060 = vadd.f32 %v1915, %v2059
    %2061 = vdwg.mxu0
    %v2062 = vxor.u32 %v1987, 2147483648
    %v2063 = vmul.f32 %v2062, 1.442695
    %v2064 = vpow.pop %v2063
    %v2065 = vadd.f32 %v2064, 1.0
    %v2066 = vrcp.pop %v2065
    %v2067 = vmul.f32 1.0, %v2066
    %v2068 = vxor.u32 %v1989, 2147483648
    %v2069 = vmul.f32 %v2068, 1.442695
    %v2070 = vpow.pop %v2069
    %v2071 = vadd.f32 %v2070, 1.0
    %v2072 = vrcp.pop %v2071
    %v2073 = vmul.f32 1.0, %v2072
    %v2074 = vtanh.pop %v2058
    %v2075 = vxor.u32 %v2060, 2147483648
    %v2076 = vmul.f32 %v2075, 1.442695
    %v2077 = vpow.pop %v2076
    %v2078 = vadd.f32 %v2077, 1.0
    %v2079 = vrcp.pop %v2078
    %v2080 = vmul.f32 1.0, %v2079
    %v2081 = vmul.f32 %v2073, %v1829
    %v2082 = vmul.f32 %v2067, %v2074
    %v2083 = vadd.f32 %v2081, %v2082
    %v2084 = vtanh.pop %v2083
    %v2085 = vmul.f32 %v2080, %v2084
    %2086 = vst [vmem:[#allocation3 + $0x6] sm:$0x1] %v2085
    %v2087 = vld [vmem:[#allocation9] sm:$0xff]
    %v2088 = vld [vmem:[#allocation9 + $0x8] sm:$0xff]
    %v2089 = vld [vmem:[#allocation9 + $0x10] sm:$0xff]
    %v2090 = vld [vmem:[#allocation9 + $0x18] sm:$0xff]
    %v2091 = vld [vmem:[#allocation9 + $0x20] sm:$0xff]
    %v2092 = vld [vmem:[#allocation9 + $0x28] sm:$0xff]
    %v2093 = vld [vmem:[#allocation9 + $0x30] sm:$0xff]
    %v2094 = vld [vmem:[#allocation9 + $0x38] sm:$0xff]
    %v2095 = vld [vmem:[#allocation9 + $0x40] sm:$0xff]
    %v2096 = vld [vmem:[#allocation9 + $0x48] sm:$0xff]
    %v2097 = vld [vmem:[#allocation9 + $0x50] sm:$0xff]
    %v2098 = vld [vmem:[#allocation9 + $0x58] sm:$0xff]
    %v2099 = vld [vmem:[#allocation9 + $0x60] sm:$0xff]
    %v2100 = vld [vmem:[#allocation9 + $0x68] sm:$0xff]
    %v2101 = vld [vmem:[#allocation9 + $0x70] sm:$0xff]
    %v2102 = vld [vmem:[#allocation9 + $0x78] sm:$0xff]
    %v2103 = vld [vmem:[#allocation9 + $0x80] sm:$0xff]
    %v2104 = vld [vmem:[#allocation9 + $0x88] sm:$0xff]
    %v2105 = vld [vmem:[#allocation9 + $0x90] sm:$0xff]
    %v2106 = vld [vmem:[#allocation9 + $0x98] sm:$0xff]
    %v2107 = vld [vmem:[#allocation9 + $0xa0] sm:$0xff]
    %v2108 = vld [vmem:[#allocation9 + $0xa8] sm:$0xff]
    %v2109 = vld [vmem:[#allocation9 + $0xb0] sm:$0xff]
    %v2110 = vld [vmem:[#allocation9 + $0xb8] sm:$0xff]
    %v2111 = vld [vmem:[#allocation9 + $0xc0] sm:$0xff]
    %v2112 = vld [vmem:[#allocation9 + $0xc8] sm:$0xff]
    %v2113 = vld [vmem:[#allocation9 + $0xd0] sm:$0xff]
    %v2114 = vld [vmem:[#allocation9 + $0xd8] sm:$0xff]
    %v2115 = vld [vmem:[#allocation9 + $0xe0] sm:$0xff]
    %v2116 = vld [vmem:[#allocation9 + $0xe8] sm:$0xff]
    %v2117 = vld [vmem:[#allocation9 + $0xf0] sm:$0xff]
    %v2118 = vld [vmem:[#allocation9 + $0xf8] sm:$0xff]
    %v2119 = vld [vmem:[#allocation9 + $0x100] sm:$0xff]
    %v2120 = vld [vmem:[#allocation9 + $0x108] sm:$0xff]
    %v2121 = vld [vmem:[#allocation9 + $0x110] sm:$0xff]
    %v2122 = vld [vmem:[#allocation9 + $0x118] sm:$0xff]
    %v2123 = vld [vmem:[#allocation9 + $0x120] sm:$0xff]
    %v2124 = vld [vmem:[#allocation9 + $0x128] sm:$0xff]
    %v2125 = vld [vmem:[#allocation9 + $0x130] sm:$0xff]
    %v2126 = vld [vmem:[#allocation9 + $0x138] sm:$0xff]
    %v2127 = vld [vmem:[#allocation9 + $0x140] sm:$0xff]
    %v2128 = vld [vmem:[#allocation9 + $0x148] sm:$0xff]
    %v2129 = vld [vmem:[#allocation9 + $0x150] sm:$0xff]
    %v2130 = vld [vmem:[#allocation9 + $0x158] sm:$0xff]
    %v2131 = vld [vmem:[#allocation9 + $0x160] sm:$0xff]
    %v2132 = vld [vmem:[#allocation9 + $0x168] sm:$0xff]
    %v2133 = vld [vmem:[#allocation9 + $0x170] sm:$0xff]
    %v2134 = vld [vmem:[#allocation9 + $0x178] sm:$0xff]
    %v2135 = vld [vmem:[#allocation9 + $0x180] sm:$0xff]
    %v2136 = vld [vmem:[#allocation9 + $0x188] sm:$0xff]
    %v2137 = vld [vmem:[#allocation9 + $0x190] sm:$0xff]
    %v2138 = vld [vmem:[#allocation9 + $0x198] sm:$0xff]
    %v2139 = vld [vmem:[#allocation9 + $0x1a0] sm:$0xff]
    %v2140 = vld [vmem:[#allocation9 + $0x1a8] sm:$0xff]
    %v2141 = vld [vmem:[#allocation9 + $0x1b0] sm:$0xff]
    %v2142 = vld [vmem:[#allocation9 + $0x1b8] sm:$0xff]
    %v2143 = vld [vmem:[#allocation9 + $0x1c0] sm:$0xff]
    %v2144 = vld [vmem:[#allocation9 + $0x1c8] sm:$0xff]
    %v2145 = vld [vmem:[#allocation9 + $0x1d0] sm:$0xff]
    %v2146 = vld [vmem:[#allocation9 + $0x1d8] sm:$0xff]
    %v2147 = vld [vmem:[#allocation9 + $0x1e0] sm:$0xff]
    %v2148 = vld [vmem:[#allocation9 + $0x1e8] sm:$0xff]
    %v2149 = vld [vmem:[#allocation9 + $0x1f0] sm:$0xff]
    %v2150 = vld [vmem:[#allocation9 + $0x1f8] sm:$0xff]
    %s2151 = scalar_lea.vmem [#allocation2], 7
    %v2152 = vld [vmem:[%s2151] ss:$8 sm:$0xf]
    %v2154 = vlaneseq
    %v2155 = vshrl.u32 %v2154, 7
    %v2156 = vsub.s32 0, %v2155
    %v2157 = vrot.slane %v2152, %v2156
    %v2158 = vlaneseq
    %v2159 = vshrl.u32 %v2158, 7
    %v2160 = vsub.s32 1, %v2159
    %v2161 = vrot.slane %v2152, %v2160
    %v2162 = vlaneseq
    %v2163 = vshrl.u32 %v2162, 7
    %v2164 = vsub.s32 2, %v2163
    %v2165 = vrot.slane %v2152, %v2164
    %v2166 = vlaneseq
    %v2167 = vshrl.u32 %v2166, 7
    %v2168 = vsub.s32 3, %v2167
    %v2169 = vrot.slane %v2152, %v2168
    %2174 = vmatprep.subr.mxu0 %v2088
    %2175 = vmatpush1.msra.mxu0 %v2087
    %2176 = vmatprep.subr.mxu0 %v2092
    %2177 = vmatpush1.msra.mxu0 %v2091
    %2178 = vmatprep.subr.mxu0 %v2096
    %2179 = vmatpush1.msra.mxu0 %v2095
    %2180 = vmatprep.subr.mxu0 %v2100
    %2181 = vmatpush1.msra.mxu0 %v2099
    %2182 = vmatprep.subr.mxu0 %v2104
    %2183 = vmatpush1.msra.mxu0 %v2103
    %2184 = vmatprep.subr.mxu0 %v2108
    %2185 = vmatpush1.msra.mxu0 %v2107
    %2186 = vmatprep.subr.mxu0 %v2112
    %2187 = vmatpush1.msra.mxu0 %v2111
    %2188 = vmatprep.subr.mxu0 %v2116
    %2189 = vmatpush1.msra.mxu0 %v2115
    %2190 = vmatprep.subr.mxu0 %v2120
    %2191 = vmatpush1.msra.mxu0 %v2119
    %2192 = vmatprep.subr.mxu0 %v2124
    %2193 = vmatpush1.msra.mxu0 %v2123
    %2194 = vmatprep.subr.mxu0 %v2128
    %2195 = vmatpush1.msra.mxu0 %v2127
    %2196 = vmatprep.subr.mxu0 %v2132
    %2197 = vmatpush1.msra.mxu0 %v2131
    %2198 = vmatprep.subr.mxu0 %v2136
    %2199 = vmatpush1.msra.mxu0 %v2135
    %2200 = vmatprep.subr.mxu0 %v2140
    %2201 = vmatpush1.msra.mxu0 %v2139
    %2202 = vmatprep.subr.mxu0 %v2144
    %2203 = vmatpush1.msra.mxu0 %v2143
    %2204 = vmatprep.subr.mxu0 %v2148
    %2205 = vmatpush1.msra.mxu0 %v2147
    %2206 = vmatprep.subr.mxu0 0.0
    %2207 = vmatpush1.msra.mxu0 0.0
    %2208 = vmatprep.subr.mxu0 0.0
    %2209 = vmatpush1.msra.mxu0 0.0
    %2210 = vmatprep.subr.mxu0 0.0
    %2211 = vmatpush1.msra.mxu0 0.0
    %2212 = vmatprep.subr.mxu0 0.0
    %2213 = vmatpush1.msra.mxu0 0.0
    %2214 = vmatprep.subr.mxu0 0.0
    %2215 = vmatpush1.msra.mxu0 0.0
    %2216 = vmatprep.subr.mxu0 0.0
    %2217 = vmatpush1.msra.mxu0 0.0
    %2218 = vmatprep.subr.mxu0 0.0
    %2219 = vmatpush1.msra.mxu0 0.0
    %2220 = vmatprep.subr.mxu0 0.0
    %2221 = vmatpush1.msra.mxu0 0.0
    %2222 = vmatprep.subr.mxu0 0.0
    %2223 = vmatpush1.msra.mxu0 0.0
    %2224 = vmatprep.subr.mxu0 0.0
    %2225 = vmatpush1.msra.mxu0 0.0
    %2226 = vmatprep.subr.mxu0 0.0
    %2227 = vmatpush1.msra.mxu0 0.0
    %2228 = vmatprep.subr.mxu0 0.0
    %2229 = vmatpush1.msra.mxu0 0.0
    %2230 = vmatprep.subr.mxu0 0.0
    %2231 = vmatpush1.msra.mxu0 0.0
    %2232 = vmatprep.subr.mxu0 0.0
    %2233 = vmatpush1.msra.mxu0 0.0
    %2234 = vmatprep.subr.mxu0 0.0
    %2235 = vmatpush1.msra.mxu0 0.0
    %2236 = vmatprep.subr.mxu0 0.0
    %2237 = vmatpush1.msra.mxu0 0.0
    %2238 = vmatprep.mubr.f32.mxu0 0.0
    %2239 = vmatmul.mubr.f32.gmra.mrb[0].mxu0 %v2085
    %v2240 = vpop.f32.mrb[0].mxu0
    %v2241 = vadd.f32 %v2157, %v2240
    %v2242 = vpop.f32.mrb[0].mxu0
    %v2243 = vadd.f32 %v2161, %v2242
    %2244 = vdwg.mxu0
    %2245 = vmatprep.subr.mxu0 %v2090
    %2246 = vmatpush1.msra.mxu0 %v2089
    %2247 = vmatprep.subr.mxu0 %v2094
    %2248 = vmatpush1.msra.mxu0 %v2093
    %2249 = vmatprep.subr.mxu0 %v2098
    %2250 = vmatpush1.msra.mxu0 %v2097
    %2251 = vmatprep.subr.mxu0 %v2102
    %2252 = vmatpush1.msra.mxu0 %v2101
    %2253 = vmatprep.subr.mxu0 %v2106
    %2254 = vmatpush1.msra.mxu0 %v2105
    %2255 = vmatprep.subr.mxu0 %v2110
    %2256 = vmatpush1.msra.mxu0 %v2109
    %2257 = vmatprep.subr.mxu0 %v2114
    %2258 = vmatpush1.msra.mxu0 %v2113
    %2259 = vmatprep.subr.mxu0 %v2118
    %2260 = vmatpush1.msra.mxu0 %v2117
    %2261 = vmatprep.subr.mxu0 %v2122
    %2262 = vmatpush1.msra.mxu0 %v2121
    %2263 = vmatprep.subr.mxu0 %v2126
    %2264 = vmatpush1.msra.mxu0 %v2125
    %2265 = vmatprep.subr.mxu0 %v2130
    %2266 = vmatpush1.msra.mxu0 %v2129
    %2267 = vmatprep.subr.mxu0 %v2134
    %2268 = vmatpush1.msra.mxu0 %v2133
    %2269 = vmatprep.subr.mxu0 %v2138
    %2270 = vmatpush1.msra.mxu0 %v2137
    %2271 = vmatprep.subr.mxu0 %v2142
    %2272 = vmatpush1.msra.mxu0 %v2141
    %2273 = vmatprep.subr.mxu0 %v2146
    %2274 = vmatpush1.msra.mxu0 %v2145
    %2275 = vmatprep.subr.mxu0 %v2150
    %2276 = vmatpush1.msra.mxu0 %v2149
    %2277 = vmatprep.subr.mxu0 0.0
    %2278 = vmatpush1.msra.mxu0 0.0
    %2279 = vmatprep.subr.mxu0 0.0
    %2280 = vmatpush1.msra.mxu0 0.0
    %2281 = vmatprep.subr.mxu0 0.0
    %2282 = vmatpush1.msra.mxu0 0.0
    %2283 = vmatprep.subr.mxu0 0.0
    %2284 = vmatpush1.msra.mxu0 0.0
    %2285 = vmatprep.subr.mxu0 0.0
    %2286 = vmatpush1.msra.mxu0 0.0
    %2287 = vmatprep.subr.mxu0 0.0
    %2288 = vmatpush1.msra.mxu0 0.0
    %2289 = vmatprep.subr.mxu0 0.0
    %2290 = vmatpush1.msra.mxu0 0.0
    %2291 = vmatprep.subr.mxu0 0.0
    %2292 = vmatpush1.msra.mxu0 0.0
    %2293 = vmatprep.subr.mxu0 0.0
    %2294 = vmatpush1.msra.mxu0 0.0
    %2295 = vmatprep.subr.mxu0 0.0
    %2296 = vmatpush1.msra.mxu0 0.0
    %2297 = vmatprep.subr.mxu0 0.0
    %2298 = vmatpush1.msra.mxu0 0.0
    %2299 = vmatprep.subr.mxu0 0.0
    %2300 = vmatpush1.msra.mxu0 0.0
    %2301 = vmatprep.subr.mxu0 0.0
    %2302 = vmatpush1.msra.mxu0 0.0
    %2303 = vmatprep.subr.mxu0 0.0
    %2304 = vmatpush1.msra.mxu0 0.0
    %2305 = vmatprep.subr.mxu0 0.0
    %2306 = vmatpush1.msra.mxu0 0.0
    %2307 = vmatprep.subr.mxu0 0.0
    %2308 = vmatpush1.msra.mxu0 0.0
    %2309 = vmatprep.mubr.f32.mxu0 0.0
    %2310 = vmatmul.mubr.f32.gmra.mrb[0].mxu0 %v2085
    %v2311 = vpop.f32.mrb[0].mxu0
    %v2312 = vadd.f32 %v2165, %v2311
    %v2313 = vpop.f32.mrb[0].mxu0
    %v2314 = vadd.f32 %v2169, %v2313
    %2315 = vdwg.mxu0
    %v2316 = vxor.u32 %v2241, 2147483648
    %v2317 = vmul.f32 %v2316, 1.442695
    %v2318 = vpow.pop %v2317
    %v2319 = vadd.f32 %v2318, 1.0
    %v2320 = vrcp.pop %v2319
    %v2321 = vmul.f32 1.0, %v2320
    %v2322 = vxor.u32 %v2243, 2147483648
    %v2323 = vmul.f32 %v2322, 1.442695
    %v2324 = vpow.pop %v2323
    %v2325 = vadd.f32 %v2324, 1.0
    %v2326 = vrcp.pop %v2325
    %v2327 = vmul.f32 1.0, %v2326
    %v2328 = vtanh.pop %v2312
    %v2329 = vxor.u32 %v2314, 2147483648
    %v2330 = vmul.f32 %v2329, 1.442695
    %v2331 = vpow.pop %v2330
    %v2332 = vadd.f32 %v2331, 1.0
    %v2333 = vrcp.pop %v2332
    %v2334 = vmul.f32 1.0, %v2333
    %v2335 = vmul.f32 %v2327, %v2083
    %v2336 = vmul.f32 %v2321, %v2328
    %v2337 = vadd.f32 %v2335, %v2336
    %v2338 = vtanh.pop %v2337
    %v2339 = vmul.f32 %v2334, %v2338
    %2340 = vst [vmem:[#allocation3 + $0x7] sm:$0x1] %v2339
    %v2341 = vld [vmem:[#allocation3] sm:$0xff]
    %v2342 = vld [vmem:[#allocation10] sm:$0xff]
    %v2343 = vld [vmem:[#allocation10 + $0x8] sm:$0xff]
    %v2344 = vld [vmem:[#allocation10 + $0x10] sm:$0xff]
    %v2345 = vld [vmem:[#allocation10 + $0x18] sm:$0xff]
    %v2346 = vld [vmem:[#allocation10 + $0x20] sm:$0xff]
    %v2347 = vld [vmem:[#allocation10 + $0x28] sm:$0xff]
    %v2348 = vld [vmem:[#allocation10 + $0x30] sm:$0xff]
    %v2349 = vld [vmem:[#allocation10 + $0x38] sm:$0xff]
    %v2350 = vld [vmem:[#allocation10 + $0x40] sm:$0xff]
    %v2351 = vld [vmem:[#allocation10 + $0x48] sm:$0xff]
    %v2352 = vld [vmem:[#allocation10 + $0x50] sm:$0xff]
    %v2353 = vld [vmem:[#allocation10 + $0x58] sm:$0xff]
    %v2354 = vld [vmem:[#allocation10 + $0x60] sm:$0xff]
    %v2355 = vld [vmem:[#allocation10 + $0x68] sm:$0xff]
    %v2356 = vld [vmem:[#allocation10 + $0x70] sm:$0xff]
    %v2357 = vld [vmem:[#allocation10 + $0x78] sm:$0xff]
    %v2358 = vld [vmem:[%s5] sm:$0x1]
    %v2360 = vlaneseq
    %v2361 = vshrl.u32 %v2360, 7
    %v2362 = vsub.s32 0, %v2361
    %v2363 = vrot.slane %v2358, %v2362
    %2365 = vmatprep.subr.mxu0 0.0
    %2366 = vmatpush1.msra.mxu0 %v2342
    %2367 = vmatprep.subr.mxu0 0.0
    %2368 = vmatpush1.msra.mxu0 %v2343
    %2369 = vmatprep.subr.mxu0 0.0
    %2370 = vmatpush1.msra.mxu0 %v2344
    %2371 = vmatprep.subr.mxu0 0.0
    %2372 = vmatpush1.msra.mxu0 %v2345
    %2373 = vmatprep.subr.mxu0 0.0
    %2374 = vmatpush1.msra.mxu0 %v2346
    %2375 = vmatprep.subr.mxu0 0.0
    %2376 = vmatpush1.msra.mxu0 %v2347
    %2377 = vmatprep.subr.mxu0 0.0
    %2378 = vmatpush1.msra.mxu0 %v2348
    %2379 = vmatprep.subr.mxu0 0.0
    %2380 = vmatpush1.msra.mxu0 %v2349
    %2381 = vmatprep.subr.mxu0 0.0
    %2382 = vmatpush1.msra.mxu0 %v2350
    %2383 = vmatprep.subr.mxu0 0.0
    %2384 = vmatpush1.msra.mxu0 %v2351
    %2385 = vmatprep.subr.mxu0 0.0
    %2386 = vmatpush1.msra.mxu0 %v2352
    %2387 = vmatprep.subr.mxu0 0.0
    %2388 = vmatpush1.msra.mxu0 %v2353
    %2389 = vmatprep.subr.mxu0 0.0
    %2390 = vmatpush1.msra.mxu0 %v2354
    %2391 = vmatprep.subr.mxu0 0.0
    %2392 = vmatpush1.msra.mxu0 %v2355
    %2393 = vmatprep.subr.mxu0 0.0
    %2394 = vmatpush1.msra.mxu0 %v2356
    %2395 = vmatprep.subr.mxu0 0.0
    %2396 = vmatpush1.msra.mxu0 %v2357
    %2397 = vmatprep.subr.mxu0 0.0
    %2398 = vmatpush1.msra.mxu0 0.0
    %2399 = vmatprep.subr.mxu0 0.0
    %2400 = vmatpush1.msra.mxu0 0.0
    %2401 = vmatprep.subr.mxu0 0.0
    %2402 = vmatpush1.msra.mxu0 0.0
    %2403 = vmatprep.subr.mxu0 0.0
    %2404 = vmatpush1.msra.mxu0 0.0
    %2405 = vmatprep.subr.mxu0 0.0
    %2406 = vmatpush1.msra.mxu0 0.0
    %2407 = vmatprep.subr.mxu0 0.0
    %2408 = vmatpush1.msra.mxu0 0.0
    %2409 = vmatprep.subr.mxu0 0.0
    %2410 = vmatpush1.msra.mxu0 0.0
    %2411 = vmatprep.subr.mxu0 0.0
    %2412 = vmatpush1.msra.mxu0 0.0
    %2413 = vmatprep.subr.mxu0 0.0
    %2414 = vmatpush1.msra.mxu0 0.0
    %2415 = vmatprep.subr.mxu0 0.0
    %2416 = vmatpush1.msra.mxu0 0.0
    %2417 = vmatprep.subr.mxu0 0.0
    %2418 = vmatpush1.msra.mxu0 0.0
    %2419 = vmatprep.subr.mxu0 0.0
    %2420 = vmatpush1.msra.mxu0 0.0
    %2421 = vmatprep.subr.mxu0 0.0
    %2422 = vmatpush1.msra.mxu0 0.0
    %2423 = vmatprep.subr.mxu0 0.0
    %2424 = vmatpush1.msra.mxu0 0.0
    %2425 = vmatprep.subr.mxu0 0.0
    %2426 = vmatpush1.msra.mxu0 0.0
    %2427 = vmatprep.subr.mxu0 0.0
    %2428 = vmatpush1.msra.mxu0 0.0
    %2429 = vmatprep.mubr.f32.mxu0 0.0
    %2430 = vmatmul.mubr.f32.gmra.mrb[0].mxu0 %v2341
    %v2431 = vpop.f32.mrb[0].mxu0
    %v2432 = vadd.f32 %v2363, %v2431
    %v2433 = vpop.f32.mrb[0].mxu0
    %2434 = vdwg.mxu0
    %2435 = vmax.xlane.f32.xlu0 %v2432
    %v2436 = vpop.xlane.xlu0 %2435
    %v2437 = vsub.f32 %v2432, %v2436
    %v2438 = vmul.f32 %v2437, 1.442695
    %v2439 = vpow.pop %v2438
    %2440 = vadd.xlane.f32.xlu0 %v2439
    %v2441 = vpop.xlane.xlu0 %2440
    %v2442 = vlog2.pop %v2441
    %v2443 = vmul.f32 %v2442, 0.6931472
    %v2444 = vadd.f32 %v2436, %v2443
    %v2445 = vsub.f32 %v2432, %v2444
    %2446 = vst [vmem:[#allocation12] sm:$0xff] %v2445
    // Predicated region
    $region42: #{tpu_custom_call.1} parent=1 // pred_check
      _
    $region43: #{tpu_custom_call.1} parent=1 // pred_check_branch
      %2448 = sbr.rel (0) target = $region45
    $region44: #{tpu_custom_call.1} parent=1 // pred_region
      %s2450 = ssub.s32 128, 128
      %2451 = vsyncadd [#allocation6], %s2450
      %s2453 = sshll.u32 [#allocation12], 4
      %s2454 = int_to_ptr.vmem [resolvable:$true] %s2453
      %2456 = dma.vmem_to_hbm [thread:$0]  %s2454, 128, %s6, [#allocation6]
    $region45: #{tpu_custom_call.1} parent=1 // pred_fallthru
      _
    // Predicated region
    $region46: #{tpu_custom_call.1} parent=1 // pred_check
      _
    $region47: #{tpu_custom_call.1} parent=1 // pred_check_branch
      %2458 = sbr.rel (0) target = $region49
    $region48: #{tpu_custom_call.1} parent=1 // pred_region
      %2459 = dma.done [#allocation6], 128
    $region49: #{tpu_custom_call.1} parent=1 // pred_fallthru
      _
    %2460 = vsyncpa [#allocation5], 1
    %2461 = vsyncpa [#allocation8], 1
    %2462 = vsyncpa [#allocation11], 1
    %2463 = vsyncpa [#allocation6], 1

</llo_original>
